<compile_context>
chip_gen: v6e
topology: v6e:2x2x1
jax: 0.10.0
libtpu: 0.0.40
codegen_flags: <defaults>
</compile_context>

<pallas_src>
import functools

import jax
import jax.numpy as jnp
from jax.experimental import pallas as pl
from jax.experimental.pallas import tpu as pltpu

BN_EPS = 1e-3  # matches MinkowskiBatchNorm(eps=0.001), eval-mode folding


# ----------------------------------------------------------------------------
# Fused per-stage Pallas kernel (first conv + stride-1 conv chain + deconv)
# ----------------------------------------------------------------------------
def _make_stage_kernel(n_convs, Mband, Wp, halo, first_offs, first_concat,
                       has_up):
    """One RPN stage for a single batch element.

    Activations live in a width-padded flat slab: rows = (Ho rows) * Wp with
    Wp = Wo + 2 (zero column on each side), plus `halo` zero rows above and
    below.  Every 3x3 conv tap is then a constant row shift; no border masks
    are needed on the reads.  Chain intermediates stay in one zero-halo VMEM
    scratch slab; BN is folded into the weights; epilogue is relu(acc + bias)
    in f32.
    """
    s1_offs = [(di - 1) * Wp + (dj - 1) for di in range(3) for dj in range(3)]

    def kernel(*args):
        idx = 0
        x_ref = args[idx]; idx += 1                    # (Mh, K0) s2d input slab
        conv_refs = args[idx:idx + 2 * n_convs]; idx += 2 * n_convs
        if has_up:
            wd_ref, bd_ref = args[idx], args[idx + 1]; idx += 2
        x_out_ref = args[idx]; idx += 1                # (Mband, F)
        if has_up:
            up_out_ref = args[idx]; idx += 1           # (Mband, u*u*U)
        buf = args[idx] if n_convs > 1 else None       # (Mh, F) scratch slab

        # Interior-column mask over the width-padded band, built in-kernel
        # (no lane-padded (M,1) HBM input).  Applied once per *chained* conv
        # output so the zero left/right border stays exact for the next conv.
        q = jax.lax.broadcasted_iota(jnp.int32, (Mband, 1), 0)
        col = q % Wp
        interior = jnp.logical_and(col != 0, col != Wp - 1)

        # Scratch halo rows must be zero.  Zeroed every grid step (only
        # 2*halo rows - cheap) instead of once under program_id==0, so that
        # megacore grid splitting (each core owns a disjoint program_id range
        # and its own scratch) stays correct.
        if buf is not None:
            zrow = jnp.zeros((halo, buf.shape[1]), buf.dtype)
            buf[0:halo, :] = zrow
            buf[halo + Mband:halo + Mband + halo, :] = zrow

        def conv_concat(src, offs, w_ref, b_ref, mask_out):
            # 9-shift K-concat -> one MXU matmul (fills the MXU contraction).
            xcat = jnp.concatenate(
                [src[halo + o:halo + o + Mband, :] for o in offs], axis=1)
            acc = jnp.dot(xcat, w_ref[...], preferred_element_type=jnp.float32)
            y = jnp.maximum(acc + b_ref[...], 0.0)
            return jnp.where(interior, y, 0.0) if mask_out else y

        def conv_grouped(src, offs, w_ref, b_ref, mask_out):
            # Merged-tap matmuls over the full space-to-depth K0 (4 groups
            # at stride 2 instead of 9 taps).
            kg = w_ref.shape[0] // len(offs)
            acc = None
            for g, o in enumerate(offs):
                xs = src[halo + o:halo + o + Mband, :]
                t = jnp.dot(xs, w_ref[g * kg:(g + 1) * kg, :],
                            preferred_element_type=jnp.float32)
                acc = t if acc is None else acc + t
            y = jnp.maximum(acc + b_ref[...], 0.0)
            return jnp.where(interior, y, 0.0) if mask_out else y

        # first (possibly strided) conv reads the space-to-depth input slab
        first_fn = conv_concat if first_concat else conv_grouped
        y = first_fn(x_ref, first_offs, conv_refs[0], conv_refs[1],
                     mask_out=(n_convs > 1))

        # stride-1 chain: previous output -> scratch slab -> one matmul each
        for c in range(1, n_convs):
            buf[halo:halo + Mband, :] = y.astype(buf.dtype)
            y = conv_concat(buf, s1_offs, conv_refs[2 * c],
                            conv_refs[2 * c + 1],
                            mask_out=(c < n_convs - 1))

        yc = y.astype(x_out_ref.dtype)
        x_out_ref[...] = yc

        # fused ConvTranspose(kernel==stride) + BN + ReLU as ONE lane-dense
        # matmul (all u*u phases at once); depth-to-space happens on the host
        # on this final, small tensor only.
        if has_up:
            up = jnp.dot(yc, wd_ref[...], preferred_element_type=jnp.float32)
            up = jnp.maximum(up + bd_ref[...], 0.0)
            up_out_ref[...] = up.astype(up_out_ref.dtype)

    return kernel


def _stage_apply(x, sp, act_dtype):
    """Run one fused RPN stage. x: (N, H, W, Cin) NHWC dense-equivalent."""
    N, H, W, C = x.shape
    s = sp["stride"]
    assert H % s == 0 and W % s == 0
    Ho, Wo = H // s, W // s
    Wp = Wo + 2                                # width-padded row stride
    halo = ((Wp + 1 + 7) // 8) * 8             # zero rows (>= Wp+1, sublane-aligned)
    Mband = Ho * Wp
    Mh = Mband + 2 * halo
    F = sp["b_first"].shape[-1]
    n_convs = 1 + len(sp["w_rest"])
    has_up = sp["w_dec"] is not None
    u = sp["up_stride"] if has_up else 0
    U = (sp["b_dec"].shape[-1] // (u * u)) if has_up else 0

    # space-to-depth so every strided-first-conv tap is a constant row shift
    # of the flat slab (identity when stride == 1)
    if s == 1:
        xs = x
    else:
        xs = x.reshape(N, Ho, s, Wo, s, C)
        xs = xs.transpose(0, 1, 3, 2, 4, 5).reshape(N, Ho, Wo, s * s * C)
    K0 = xs.shape[-1]
    # zero border column on each side, flatten, add zero halo rows
    xs = jnp.pad(xs, ((0, 0), (0, 0), (1, 1), (0, 0))).reshape(N, Mband, K0)
    xs = jnp.pad(xs, ((0, 0), (halo, halo), (0, 0))).astype(act_dtype)

    first_offs = [ri * Wp + rj for (ri, rj) in sp["first_groups"]]
    first_concat = (s == 1)   # stride-1 first conv == regular stride-1 conv

    inputs = [xs]
    in_specs = [pl.BlockSpec((None, Mh, K0), lambda n: (n, 0, 0))]
    ws = [sp["w_first"]] + list(sp["w_rest"])
    bs = [sp["b_first"]] + list(sp["b_rest"])
    for w, b in zip(ws, bs):
        inputs += [w.astype(act_dtype), b.astype(jnp.float32)]
        in_specs += [pl.BlockSpec(w.shape, lambda n: (0, 0)),
                     pl.BlockSpec(b.shape, lambda n: (0, 0))]
    if has_up:
        inputs += [sp["w_dec"].astype(act_dtype),
                   sp["b_dec"].astype(jnp.float32)]
        in_specs += [pl.BlockSpec(sp["w_dec"].shape, lambda n: (0, 0)),
                     pl.BlockSpec(sp["b_dec"].shape, lambda n: (0, 0))]

    x_sds = jax.ShapeDtypeStruct((N, Mband, F), act_dtype)
    x_spec = pl.BlockSpec((None, Mband, F), lambda n: (n, 0, 0))
    if has_up:
        out_shape = (x_sds,
                     jax.ShapeDtypeStruct((N, Mband, u * u * U), act_dtype))
        out_specs = (x_spec,
                     pl.BlockSpec((None, Mband, u * u * U),
                                  lambda n: (n, 0, 0)))
    else:
        out_shape = x_sds
        out_specs = x_spec

    scratch_shapes = []
    if n_convs > 1:
        scratch_shapes.append(pltpu.VMEM((Mh, F), act_dtype))

    # rough cost hint so XLA schedules the host-side pad/s2d around the call
    itemsize = jnp.dtype(act_dtype).itemsize
    flops = 2 * N * Mband * int(sp["w_first"].shape[0]) * F
    flops += 2 * N * Mband * 9 * F * F * (n_convs - 1)
    bytes_accessed = int(xs.size) * itemsize + N * Mband * F * itemsize
    bytes_accessed += sum(int(w.size) for w in ws) * itemsize
    if has_up:
        flops += 2 * N * Mband * F * u * u * U
        bytes_accessed += (N * Mband * u * u * U + int(sp["w_dec"].size)) * itemsize

    kernel = _make_stage_kernel(n_convs, Mband, Wp, halo, first_offs,
                                first_concat, has_up)
    res = pl.pallas_call(
        kernel,
        grid=(N,),
        in_specs=in_specs,
        out_specs=out_specs,
        out_shape=out_shape,
        scratch_shapes=scratch_shapes,
        compiler_params=pltpu.CompilerParams(
            dimension_semantics=("parallel",),
            vmem_limit_bytes=56 * 1024 * 1024),
        cost_estimate=pl.CostEstimate(flops=int(flops), transcendentals=0,
                                      bytes_accessed=int(bytes_accessed)),
    )(*inputs)

    if has_up:
        x_flat, up_flat = res
    else:
        x_flat, up_flat = res, None

    # drop the zero border columns (the only host-side slicing needed)
    x_out = x_flat.reshape(N, Ho, Wp, F)[:, :, 1:Wp - 1, :]
    if up_flat is not None:
        up = up_flat.reshape(N, Ho, Wp, u, u, U)[:, :, 1:Wp - 1]
        up = up.transpose(0, 1, 3, 2, 4, 5).reshape(N, Ho * u, Wo * u, U)
    else:
        up = None
    return x_out, up


# ----------------------------------------------------------------------------
# Parameters (deterministic, synthetic) and host-side packing
# ----------------------------------------------------------------------------
def _conv_bn_init(key, kh, kw, cin, cout):
    kw_, k1, k2, k3, k4 = jax.random.split(key, 5)
    return {
        "w": 0.05 * jax.random.normal(kw_, (kh, kw, cin, cout), jnp.float32),
        "gamma": 1.0 + 0.1 * jax.random.normal(k1, (cout,), jnp.float32),
        "beta": 0.1 * jax.random.normal(k2, (cout,), jnp.float32),
        "mean": 0.05 * jax.random.normal(k3, (cout,), jnp.float32),
        "var": 1.0 + 0.1 * jnp.abs(jax.random.normal(k4, (cout,), jnp.float32)),
    }


class RPNNoHeadBaseMESparseConfig:
    def __init__(self, layer_nums=(1, 2), layer_strides=(2, 2),
                 num_filters=(32, 64), upsample_strides=(1, 2),
                 num_upsample_filters=(64, 64), num_input_features=32):
        assert len(layer_strides) == len(layer_nums)
        assert len(num_filters) == len(layer_nums)
        assert len(num_upsample_filters) == len(upsample_strides)
        self.layer_nums = layer_nums
        self.layer_strides = layer_strides
        self.num_filters = num_filters
        self.upsample_strides = upsample_strides
        self.num_upsample_filters = num_upsample_filters
        self.num_input_features = num_input_features
        self.upsample_start_idx = len(layer_nums) - len(upsample_strides)
        must_equal = []   # same consistency check as the torch module
        for i in range(len(upsample_strides)):
            prod = 1.0
            for v in layer_strides[:i + self.upsample_start_idx + 1]:
                prod *= v
            must_equal.append(upsample_strides[i] / prod)
        for v in must_equal:
            assert v == must_equal[0]


def init_params(key, cfg):
    in_filters = [cfg.num_input_features, *cfg.num_filters[:-1]]
    params = {"blocks": [], "deblocks": []}
    for i, layer_num in enumerate(cfg.layer_nums):
        layers = []
        key, k = jax.random.split(key)
        layers.append(_conv_bn_init(k, 3, 3, in_filters[i], cfg.num_filters[i]))
        for _ in range(layer_num):
            key, k = jax.random.split(key)
            layers.append(_conv_bn_init(k, 3, 3, cfg.num_filters[i],
                                        cfg.num_filters[i]))
        params["blocks"].append(layers)
        if i - cfg.upsample_start_idx >= 0:
            j = i - cfg.upsample_start_idx
            stride = cfg.upsample_strides[j]
            # TODO(synk): upsample_strides < 1 (strided Conv2d deblock branch)
            # is not implemented; only the ConvTranspose branch is used here.
            assert stride >= 1
            u = int(round(stride))
            key, k = jax.random.split(key)
            p = _conv_bn_init(k, u, u, cfg.num_filters[i],
                              cfg.num_upsample_filters[j])
            p["stride"] = u
            params["deblocks"].append(p)
    return params


def _bn_fold(p):
    """Fold eval-mode BN into the conv weight; returns (w*scale, shift)."""
    scale = p["gamma"] / jnp.sqrt(p["var"] + BN_EPS)
    return p["w"] * scale, p["beta"] - p["mean"] * scale


def _pack_first_conv(w, bias, s):
    """Group the stride-s first conv's taps by their row/col shift after
    space-to-depth and sum them into one packed weight per group (taps in a
    group occupy disjoint phase slices of K0 = s*s*Cin, so the sum is exact).
    For s=2 this merges 9 taps into 4 groups."""
    kh, kw, cin, cout = w.shape
    K0 = s * s * cin
    groups = {}
    for di in range(kh):
        for dj in range(kw):
            ri, rj = (di - 1) // s, (dj - 1) // s
            pi, pj = (di - 1) % s, (dj - 1) % s
            ph = pi * s + pj
            key = (ri, rj)
            if key not in groups:
                groups[key] = jnp.zeros((K0, cout), w.dtype)
            groups[key] = groups[key].at[ph * cin:(ph + 1) * cin, :].add(
                w[di, dj])
    keys = sorted(groups.keys())
    wf = jnp.concatenate([groups[k] for k in keys], axis=0)   # (G*K0, cout)
    return wf, bias.reshape(1, cout), keys


def pack_params(params, cfg):
    packed = []
    for i, block in enumerate(params["blocks"]):
        s = int(cfg.layer_strides[i])
        w0, b0 = _bn_fold(block[0])
        wf, bf, gkeys = _pack_first_conv(w0, b0, s)
        w_rest, b_rest = [], []
        for layer in block[1:]:
            w, b = _bn_fold(layer)
            kh, kw, cin, cout = w.shape
            w_rest.append(w.reshape(kh * kw * cin, cout))   # 9-shift K-concat
            b_rest.append(b.reshape(1, cout))
        sp = {"stride": s, "w_first": wf, "b_first": bf, "first_groups": gkeys,
              "w_rest": w_rest, "b_rest": b_rest,
              "up_stride": None, "w_dec": None, "b_dec": None}
        if i - cfg.upsample_start_idx >= 0:
            dp = params["deblocks"][i - cfg.upsample_start_idx]
            u = int(dp["stride"])
            wd, bd = _bn_fold(dp)                      # (u, u, F, U)
            Uc = wd.shape[3]
            sp["up_stride"] = u
            # fused deconv: one (F, u*u*U) lane-dense matmul
            sp["w_dec"] = wd.transpose(2, 0, 1, 3).reshape(wd.shape[2],
                                                           u * u * Uc)
            sp["b_dec"] = jnp.tile(bd, u * u).reshape(1, u * u * Uc)
        packed.append(sp)
    return packed


# ----------------------------------------------------------------------------
# Forward (mirrors RPNNoHeadBaseMESparse.forward on dense-equivalent data)
# ----------------------------------------------------------------------------
def rpn_forward(packed, x, act_dtype=jnp.bfloat16):
    ups, stage_outs = [], []
    for sp in packed:
        x, up = _stage_apply(x, sp, act_dtype)
        stage_outs.append(x)
        if up is not None:
            ups.append(up)
    out = jnp.concatenate(ups, axis=-1) if ups else x
    res = {f"up{i}": u for i, u in enumerate(ups)}
    for i, st in enumerate(stage_outs):
        res[f"stage{i}"] = st
    res["out"] = out
    return res


# Pure-JAX reference (same math, XLA convs) used for an in-script check.
def reference_forward(params, cfg, x):
    ups, stage_outs = [], []
    for i, block in enumerate(params["blocks"]):
        for li, layer in enumerate(block):
            stride = int(cfg.layer_strides[i]) if li == 0 else 1
            scale = layer["gamma"] / jnp.sqrt(layer["var"] + BN_EPS)
            shift = layer["beta"] - layer["mean"] * scale
            y = jax.lax.conv_general_dilated(
                x, layer["w"], window_strides=(stride, stride),
                padding=((1, 1), (1, 1)),
                dimension_numbers=("NHWC", "HWIO", "NHWC"))
            x = jnp.maximum(y * scale + shift, 0.0)
        stage_outs.append(x)
        if i - cfg.upsample_start_idx >= 0:
            dp = params["deblocks"][i - cfg.upsample_start_idx]
            u = int(dp["stride"])
            scale = dp["gamma"] / jnp.sqrt(dp["var"] + BN_EPS)
            shift = dp["beta"] - dp["mean"] * scale
            t = jnp.einsum("nijc,abcd->niajbd", x, dp["w"])
            N, Ho, _, Wo, _, U = t.shape
            t = t.reshape(N, Ho * u, Wo * u, U)
            ups.append(jnp.maximum(t * scale + shift, 0.0))
    out = jnp.concatenate(ups, axis=-1) if ups else x
    res = {f"up{i}": u_ for i, u_ in enumerate(ups)}
    for i, st in enumerate(stage_outs):
        res[f"stage{i}"] = st
    res["out"] = out
    return res


if __name__ == "__main__":
    cfg = RPNNoHeadBaseMESparseConfig()
    key = jax.random.PRNGKey(0)
    kx, kp = jax.random.split(key)

    # dense-equivalent input feature map (NHWC): batch=2, 16x16 spatial, 32 ch
    x = jax.random.normal(kx, (2, 16, 16, cfg.num_input_features), jnp.float32)
    params = init_params(kp, cfg)
    packed = pack_params(params, cfg)

    # 1) f32 run, checked against the pure-JAX reference of the module.
    fwd32 = jax.jit(functools.partial(rpn_forward, packed,
                                      act_dtype=jnp.float32))
    res32 = jax.block_until_ready(fwd32(x))
    ref = jax.block_until_ready(
        jax.jit(functools.partial(reference_forward, params, cfg))(x))
    for name in ref:
        err = float(jnp.max(jnp.abs(res32[name].astype(jnp.float32)
                                    - ref[name].astype(jnp.float32))))
        assert err < 1e-2, (name, err)

    # 2) bf16 performance configuration (bf16 HBM tensors, f32 MXU
    #    accumulate); now tolerance-checked too, not just shape-checked.
    fwd16 = jax.jit(functools.partial(rpn_forward, packed,
                                      act_dtype=jnp.bfloat16))
    res = jax.block_until_ready(fwd16(x))
    scale = float(jnp.max(jnp.abs(ref["out"]))) + 1e-6
    err16 = float(jnp.max(jnp.abs(res["out"].astype(jnp.float32)
                                  - ref["out"])))
    assert err16 < 0.1 * scale + 0.1, ("bf16 out", err16, scale)

    assert res["up0"].shape[:3] == res["up1"].shape[:3]
    assert res["out"].shape == (2, 8, 8, sum(cfg.num_upsample_filters))
    print("KERNEL_OK")
</pallas_src>

<mosaic_0001>
module attributes {stable_mosaic.version = 11 : i64} {
  func.func @kernel(%arg0: i32, %arg1: memref<1x112x128xf32, #tpu.memory_space<vmem>>, %arg2: memref<512x32xf32, #tpu.memory_space<vmem>>, %arg3: memref<1x32xf32, #tpu.memory_space<vmem>>, %arg4: memref<288x32xf32, #tpu.memory_space<vmem>>, %arg5: memref<1x32xf32, #tpu.memory_space<vmem>>, %arg6: memref<32x64xf32, #tpu.memory_space<vmem>>, %arg7: memref<1x64xf32, #tpu.memory_space<vmem>>, %arg8: memref<1x80x32xf32, #tpu.memory_space<vmem>>, %arg9: memref<1x80x64xf32, #tpu.memory_space<vmem>>, %arg10: memref<112x32xf32, #tpu.memory_space<vmem>>) attributes {dimension_semantics = [#tpu.dimension_semantics<parallel>], iteration_bounds = array<i64: 2>, scalar_prefetch = 0 : i64, scratch_operands = 1 : i64, tpu.core_type = #tpu.core_type<tc>, window_params = [{transform_indices = @transform_0, window_bounds = array<i64: 1, 112, 128>}, {pipeline_mode = #tpu.pipeline_mode<synchronous>, transform_indices = @transform_1, window_bounds = array<i64: 512, 32>}, {pipeline_mode = #tpu.pipeline_mode<synchronous>, transform_indices = @transform_2, window_bounds = array<i64: 1, 32>}, {pipeline_mode = #tpu.pipeline_mode<synchronous>, transform_indices = @transform_3, window_bounds = array<i64: 288, 32>}, {pipeline_mode = #tpu.pipeline_mode<synchronous>, transform_indices = @transform_4, window_bounds = array<i64: 1, 32>}, {pipeline_mode = #tpu.pipeline_mode<synchronous>, transform_indices = @transform_5, window_bounds = array<i64: 32, 64>}, {pipeline_mode = #tpu.pipeline_mode<synchronous>, transform_indices = @transform_6, window_bounds = array<i64: 1, 64>}, {transform_indices = @transform_7, window_bounds = array<i64: 1, 80, 32>}, {transform_indices = @transform_8, window_bounds = array<i64: 1, 80, 64>}]} {
    %0 = tpu.iota {dimensions = array<i32: 0>} : vector<80x1xi32>
    %c10_i32 = arith.constant 10 : i32
    %c0_i32 = arith.constant 0 : i32
    %1 = arith.cmpi eq, %c10_i32, %c0_i32 : i32
    %c1_i32 = arith.constant 1 : i32
    %2 = arith.select %1, %c1_i32, %c10_i32 : i32
    %3 = vector.broadcast %2 : i32 to vector<80x1xi32>
    %4 = arith.remsi %0, %3 : vector<80x1xi32>
    %c0_i32_0 = arith.constant 0 : i32
    %5 = vector.broadcast %c0_i32_0 : i32 to vector<80x1xi32>
    %6 = arith.cmpi ne, %4, %5 : vector<80x1xi32>
    %c0_i32_1 = arith.constant 0 : i32
    %7 = vector.broadcast %c0_i32_1 : i32 to vector<80x1xi32>
    %8 = arith.cmpi slt, %4, %7 : vector<80x1xi32>
    %c0_i32_2 = arith.constant 0 : i32
    %9 = arith.cmpi slt, %2, %c0_i32_2 : i32
    %10 = vector.broadcast %9 : i1 to vector<80x1xi1>
    %11 = vector.broadcast %10 : vector<80x1xi1> to vector<80x1xi1>
    %12 = arith.xori %8, %11 : vector<80x1xi1>
    %13 = arith.andi %12, %6 : vector<80x1xi1>
    %14 = vector.broadcast %2 : i32 to vector<80x1xi32>
    %15 = arith.addi %4, %14 : vector<80x1xi32>
    %16 = arith.select %13, %15, %4 : vector<80x1xi1>, vector<80x1xi32>
    %c0_i32_3 = arith.constant 0 : i32
    %17 = vector.broadcast %c0_i32_3 : i32 to vector<80x1xi32>
    %18 = arith.cmpi ne, %16, %17 : vector<80x1xi32>
    %c9_i32 = arith.constant 9 : i32
    %19 = vector.broadcast %c9_i32 : i32 to vector<80x1xi32>
    %20 = arith.cmpi ne, %16, %19 : vector<80x1xi32>
    %21 = arith.andi %18, %20 : vector<80x1xi1>
    %cst = arith.constant 0.000000e+00 : f32
    %22 = vector.broadcast %cst : f32 to vector<16x32xf32>
    %c0 = arith.constant 0 : index
    %c0_4 = arith.constant 0 : index
    %23 = vector.load %arg10[%c0, %c0_4] : memref<112x32xf32, #tpu.memory_space<vmem>>, vector<16x32xf32>
    tpu.vector_store %arg10[%c0, %c0_4], %22 {strides = array<i32>} : memref<112x32xf32, #tpu.memory_space<vmem>>, vector<16x32xf32>,
    %c96 = arith.constant 96 : index
    %c0_5 = arith.constant 0 : index
    %24 = vector.load %arg10[%c96, %c0_5] : memref<112x32xf32, #tpu.memory_space<vmem>>, vector<16x32xf32>
    tpu.vector_store %arg10[%c96, %c0_5], %22 {strides = array<i32>} : memref<112x32xf32, #tpu.memory_space<vmem>>, vector<16x32xf32>,
    %c0_6 = arith.constant 0 : index
    %c5 = arith.constant 5 : index
    %c0_7 = arith.constant 0 : index
    %25 = vector.load %arg1[%c0_6, %c5, %c0_7] : memref<1x112x128xf32, #tpu.memory_space<vmem>>, vector<1x80x128xf32>
    %26 = vector.shape_cast %25 : vector<1x80x128xf32> to vector<80x128xf32>
    %c0_8 = arith.constant 0 : index
    %c0_9 = arith.constant 0 : index
    %27 = vector.load %arg2[%c0_8, %c0_9] : memref<512x32xf32, #tpu.memory_space<vmem>>, vector<128x32xf32>
    %cst_10 = arith.constant dense<0.000000e+00> : vector<80x32xf32>
    %28 = tpu.matmul %26, %27, %cst_10 {dimension_numbers = #tpu.dot_dimension_numbers<[1], [0], [0], [1], [0, 0, 1, 1], [], []>} : vector<80x128xf32>, vector<128x32xf32>, vector<80x32xf32> -> vector<80x32xf32>
    %c0_11 = arith.constant 0 : index
    %c6 = arith.constant 6 : index
    %c0_12 = arith.constant 0 : index
    %29 = vector.load %arg1[%c0_11, %c6, %c0_12] : memref<1x112x128xf32, #tpu.memory_space<vmem>>, vector<1x80x128xf32>
    %30 = vector.shape_cast %29 : vector<1x80x128xf32> to vector<80x128xf32>
    %c128 = arith.constant 128 : index
    %c0_13 = arith.constant 0 : index
    %31 = vector.load %arg2[%c128, %c0_13] : memref<512x32xf32, #tpu.memory_space<vmem>>, vector<128x32xf32>
    %cst_14 = arith.constant dense<0.000000e+00> : vector<80x32xf32>
    %32 = tpu.matmul %30, %31, %cst_14 {dimension_numbers = #tpu.dot_dimension_numbers<[1], [0], [0], [1], [0, 0, 1, 1], [], []>} : vector<80x128xf32>, vector<128x32xf32>, vector<80x32xf32> -> vector<80x32xf32>
    %33 = arith.addf %28, %32 : vector<80x32xf32>
    %c0_15 = arith.constant 0 : index
    %c15 = arith.constant 15 : index
    %c0_16 = arith.constant 0 : index
    %34 = vector.load %arg1[%c0_15, %c15, %c0_16] : memref<1x112x128xf32, #tpu.memory_space<vmem>>, vector<1x80x128xf32>
    %35 = vector.shape_cast %34 : vector<1x80x128xf32> to vector<80x128xf32>
    %c256 = arith.constant 256 : index
    %c0_17 = arith.constant 0 : index
    %36 = vector.load %arg2[%c256, %c0_17] : memref<512x32xf32, #tpu.memory_space<vmem>>, vector<128x32xf32>
    %cst_18 = arith.constant dense<0.000000e+00> : vector<80x32xf32>
    %37 = tpu.matmul %35, %36, %cst_18 {dimension_numbers = #tpu.dot_dimension_numbers<[1], [0], [0], [1], [0, 0, 1, 1], [], []>} : vector<80x128xf32>, vector<128x32xf32>, vector<80x32xf32> -> vector<80x32xf32>
    %38 = arith.addf %33, %37 : vector<80x32xf32>
    %c0_19 = arith.constant 0 : index
    %c16 = arith.constant 16 : index
    %c0_20 = arith.constant 0 : index
    %39 = vector.load %arg1[%c0_19, %c16, %c0_20] : memref<1x112x128xf32, #tpu.memory_space<vmem>>, vector<1x80x128xf32>
    %40 = vector.shape_cast %39 : vector<1x80x128xf32> to vector<80x128xf32>
    %c384 = arith.constant 384 : index
    %c0_21 = arith.constant 0 : index
    %41 = vector.load %arg2[%c384, %c0_21] : memref<512x32xf32, #tpu.memory_space<vmem>>, vector<128x32xf32>
    %cst_22 = arith.constant dense<0.000000e+00> : vector<80x32xf32>
    %42 = tpu.matmul %40, %41, %cst_22 {dimension_numbers = #tpu.dot_dimension_numbers<[1], [0], [0], [1], [0, 0, 1, 1], [], []>} : vector<80x128xf32>, vector<128x32xf32>, vector<80x32xf32> -> vector<80x32xf32>
    %43 = arith.addf %38, %42 : vector<80x32xf32>
    %c0_23 = arith.constant 0 : index
    %c0_24 = arith.constant 0 : index
    %44 = vector.load %arg3[%c0_23, %c0_24] : memref<1x32xf32, #tpu.memory_space<vmem>>, vector<1x32xf32>
    %45 = vector.broadcast %44 : vector<1x32xf32> to vector<80x32xf32>
    %46 = arith.addf %43, %45 : vector<80x32xf32>
    %cst_25 = arith.constant 0.000000e+00 : f32
    %47 = vector.broadcast %cst_25 : f32 to vector<80x32xf32>
    %48 = arith.maximumf %46, %47 : vector<80x32xf32>
    %cst_26 = arith.constant 0.000000e+00 : f32
    %49 = vector.shape_cast %21 : vector<80x1xi1> to vector<80x1xi1>
    %50 = vector.broadcast %49 : vector<80x1xi1> to vector<80x32xi1>
    %51 = vector.broadcast %cst_26 : f32 to vector<80x32xf32>
    %52 = arith.select %50, %48, %51 : vector<80x32xi1>, vector<80x32xf32>
    %c16_27 = arith.constant 16 : index
    %c0_28 = arith.constant 0 : index
    %53 = vector.load %arg10[%c16_27, %c0_28] : memref<112x32xf32, #tpu.memory_space<vmem>>, vector<80x32xf32>
    tpu.vector_store %arg10[%c16_27, %c0_28], %52 {strides = array<i32>} : memref<112x32xf32, #tpu.memory_space<vmem>>, vector<80x32xf32>,
    %c5_29 = arith.constant 5 : index
    %c0_30 = arith.constant 0 : index
    %54 = vector.load %arg10[%c5_29, %c0_30] : memref<112x32xf32, #tpu.memory_space<vmem>>, vector<80x32xf32>
    %c6_31 = arith.constant 6 : index
    %c0_32 = arith.constant 0 : index
    %55 = vector.load %arg10[%c6_31, %c0_32] : memref<112x32xf32, #tpu.memory_space<vmem>>, vector<80x32xf32>
    %c7 = arith.constant 7 : index
    %c0_33 = arith.constant 0 : index
    %56 = vector.load %arg10[%c7, %c0_33] : memref<112x32xf32, #tpu.memory_space<vmem>>, vector<80x32xf32>
    %c15_34 = arith.constant 15 : index
    %c0_35 = arith.constant 0 : index
    %57 = vector.load %arg10[%c15_34, %c0_35] : memref<112x32xf32, #tpu.memory_space<vmem>>, vector<80x32xf32>
    %c16_36 = arith.constant 16 : index
    %c0_37 = arith.constant 0 : index
    %58 = vector.load %arg10[%c16_36, %c0_37] : memref<112x32xf32, #tpu.memory_space<vmem>>, vector<80x32xf32>
    %c17 = arith.constant 17 : index
    %c0_38 = arith.constant 0 : index
    %59 = vector.load %arg10[%c17, %c0_38] : memref<112x32xf32, #tpu.memory_space<vmem>>, vector<80x32xf32>
    %c25 = arith.constant 25 : index
    %c0_39 = arith.constant 0 : index
    %60 = vector.load %arg10[%c25, %c0_39] : memref<112x32xf32, #tpu.memory_space<vmem>>, vector<80x32xf32>
    %c26 = arith.constant 26 : index
    %c0_40 = arith.constant 0 : index
    %61 = vector.load %arg10[%c26, %c0_40] : memref<112x32xf32, #tpu.memory_space<vmem>>, vector<80x32xf32>
    %c27 = arith.constant 27 : index
    %c0_41 = arith.constant 0 : index
    %62 = vector.load %arg10[%c27, %c0_41] : memref<112x32xf32, #tpu.memory_space<vmem>>, vector<80x32xf32>
    %63 = tpu.concatenate %54, %55, %56, %57, %58, %59, %60, %61, %62 in 1 : vector<80x32xf32>, vector<80x32xf32>, vector<80x32xf32>, vector<80x32xf32>, vector<80x32xf32>, vector<80x32xf32>, vector<80x32xf32>, vector<80x32xf32>, vector<80x32xf32> -> vector<80x288xf32>
    %c0_42 = arith.constant 0 : index
    %c0_43 = arith.constant 0 : index
    %64 = vector.load %arg4[%c0_42, %c0_43] : memref<288x32xf32, #tpu.memory_space<vmem>>, vector<288x32xf32>
    %cst_44 = arith.constant dense<0.000000e+00> : vector<80x32xf32>
    %65 = tpu.matmul %63, %64, %cst_44 {dimension_numbers = #tpu.dot_dimension_numbers<[1], [0], [0], [1], [0, 0, 1, 1], [], []>} : vector<80x288xf32>, vector<288x32xf32>, vector<80x32xf32> -> vector<80x32xf32>
    %c0_45 = arith.constant 0 : index
    %c0_46 = arith.constant 0 : index
    %66 = vector.load %arg5[%c0_45, %c0_46] : memref<1x32xf32, #tpu.memory_space<vmem>>, vector<1x32xf32>
    %67 = vector.broadcast %66 : vector<1x32xf32> to vector<80x32xf32>
    %68 = arith.addf %65, %67 : vector<80x32xf32>
    %cst_47 = arith.constant 0.000000e+00 : f32
    %69 = vector.broadcast %cst_47 : f32 to vector<80x32xf32>
    %70 = arith.maximumf %68, %69 : vector<80x32xf32>
    %c0_48 = arith.constant 0 : index
    %c0_49 = arith.constant 0 : index
    %c0_50 = arith.constant 0 : index
    %71 = vector.load %arg8[%c0_48, %c0_49, %c0_50] : memref<1x80x32xf32, #tpu.memory_space<vmem>>, vector<1x80x32xf32>
    %72 = vector.shape_cast %71 : vector<1x80x32xf32> to vector<80x32xf32>
    %73 = vector.shape_cast %70 : vector<80x32xf32> to vector<1x80x32xf32>
    tpu.vector_store %arg8[%c0_48, %c0_49, %c0_50], %73 {strides = array<i32>} : memref<1x80x32xf32, #tpu.memory_space<vmem>>, vector<1x80x32xf32>,
    %c0_51 = arith.constant 0 : index
    %c0_52 = arith.constant 0 : index
    %74 = vector.load %arg6[%c0_51, %c0_52] : memref<32x64xf32, #tpu.memory_space<vmem>>, vector<32x64xf32>
    %cst_53 = arith.constant dense<0.000000e+00> : vector<80x64xf32>
    %75 = tpu.matmul %70, %74, %cst_53 {dimension_numbers = #tpu.dot_dimension_numbers<[1], [0], [0], [1], [0, 0, 1, 1], [], []>} : vector<80x32xf32>, vector<32x64xf32>, vector<80x64xf32> -> vector<80x64xf32>
    %c0_54 = arith.constant 0 : index
    %c0_55 = arith.constant 0 : index
    %76 = vector.load %arg7[%c0_54, %c0_55] : memref<1x64xf32, #tpu.memory_space<vmem>>, vector<1x64xf32>
    %77 = vector.broadcast %76 : vector<1x64xf32> to vector<80x64xf32>
    %78 = arith.addf %75, %77 : vector<80x64xf32>
    %cst_56 = arith.constant 0.000000e+00 : f32
    %79 = vector.broadcast %cst_56 : f32 to vector<80x64xf32>
    %80 = arith.maximumf %78, %79 : vector<80x64xf32>
    %c0_57 = arith.constant 0 : index
    %c0_58 = arith.constant 0 : index
    %c0_59 = arith.constant 0 : index
    %81 = vector.load %arg9[%c0_57, %c0_58, %c0_59] : memref<1x80x64xf32, #tpu.memory_space<vmem>>, vector<1x80x64xf32>
    %82 = vector.shape_cast %81 : vector<1x80x64xf32> to vector<80x64xf32>
    %83 = vector.shape_cast %80 : vector<80x64xf32> to vector<1x80x64xf32>
    tpu.vector_store %arg9[%c0_57, %c0_58, %c0_59], %83 {strides = array<i32>} : memref<1x80x64xf32, #tpu.memory_space<vmem>>, vector<1x80x64xf32>,
    return
  }
  func.func @transform_0(%arg0: i32) -> (i32, i32, i32) {
    %c0_i32 = arith.constant 0 : i32
    %c0_i32_0 = arith.constant 0 : i32
    %c0_i32_1 = arith.constant 0 : i32
    return %arg0, %c0_i32, %c0_i32_0 : i32, i32, i32
  }
  func.func @transform_1(%arg0: i32) -> (i32, i32) {
    %c0_i32 = arith.constant 0 : i32
    %c0_i32_0 = arith.constant 0 : i32
    %c0_i32_1 = arith.constant 0 : i32
    return %c0_i32, %c0_i32_0 : i32, i32
  }
  func.func @transform_2(%arg0: i32) -> (i32, i32) {
    %c0_i32 = arith.constant 0 : i32
    %c0_i32_0 = arith.constant 0 : i32
    %c0_i32_1 = arith.constant 0 : i32
    return %c0_i32, %c0_i32_0 : i32, i32
  }
  func.func @transform_3(%arg0: i32) -> (i32, i32) {
    %c0_i32 = arith.constant 0 : i32
    %c0_i32_0 = arith.constant 0 : i32
    %c0_i32_1 = arith.constant 0 : i32
    return %c0_i32, %c0_i32_0 : i32, i32
  }
  func.func @transform_4(%arg0: i32) -> (i32, i32) {
    %c0_i32 = arith.constant 0 : i32
    %c0_i32_0 = arith.constant 0 : i32
    %c0_i32_1 = arith.constant 0 : i32
    return %c0_i32, %c0_i32_0 : i32, i32
  }
  func.func @transform_5(%arg0: i32) -> (i32, i32) {
    %c0_i32 = arith.constant 0 : i32
    %c0_i32_0 = arith.constant 0 : i32
    %c0_i32_1 = arith.constant 0 : i32
    return %c0_i32, %c0_i32_0 : i32, i32
  }
  func.func @transform_6(%arg0: i32) -> (i32, i32) {
    %c0_i32 = arith.constant 0 : i32
    %c0_i32_0 = arith.constant 0 : i32
    %c0_i32_1 = arith.constant 0 : i32
    return %c0_i32, %c0_i32_0 : i32, i32
  }
  func.func @transform_7(%arg0: i32) -> (i32, i32, i32) {
    %c0_i32 = arith.constant 0 : i32
    %c0_i32_0 = arith.constant 0 : i32
    %c0_i32_1 = arith.constant 0 : i32
    return %arg0, %c0_i32, %c0_i32_0 : i32, i32, i32
  }
  func.func @transform_8(%arg0: i32) -> (i32, i32, i32) {
    %c0_i32 = arith.constant 0 : i32
    %c0_i32_0 = arith.constant 0 : i32
    %c0_i32_1 = arith.constant 0 : i32
    return %arg0, %c0_i32, %c0_i32_0 : i32, i32, i32
  }
}

module attributes {stable_mosaic.version = 11 : i64} {
  func.func @kernel(%arg0: i32, %arg1: memref<1x40x128xf32, #tpu.memory_space<vmem>>, %arg2: memref<512x64xf32, #tpu.memory_space<vmem>>, %arg3: memref<1x64xf32, #tpu.memory_space<vmem>>, %arg4: memref<576x64xf32, #tpu.memory_space<vmem>>, %arg5: memref<1x64xf32, #tpu.memory_space<vmem>>, %arg6: memref<576x64xf32, #tpu.memory_space<vmem>>, %arg7: memref<1x64xf32, #tpu.memory_space<vmem>>, %arg8: memref<64x256xf32, #tpu.memory_space<vmem>>, %arg9: memref<1x256xf32, #tpu.memory_space<vmem>>, %arg10: memref<1x24x64xf32, #tpu.memory_space<vmem>>, %arg11: memref<1x24x256xf32, #tpu.memory_space<vmem>>, %arg12: memref<40x64xf32, #tpu.memory_space<vmem>>) attributes {dimension_semantics = [#tpu.dimension_semantics<parallel>], iteration_bounds = array<i64: 2>, scalar_prefetch = 0 : i64, scratch_operands = 1 : i64, tpu.core_type = #tpu.core_type<tc>, window_params = [{transform_indices = @transform_0, window_bounds = array<i64: 1, 40, 128>}, {pipeline_mode = #tpu.pipeline_mode<synchronous>, transform_indices = @transform_1, window_bounds = array<i64: 512, 64>}, {pipeline_mode = #tpu.pipeline_mode<synchronous>, transform_indices = @transform_2, window_bounds = array<i64: 1, 64>}, {pipeline_mode = #tpu.pipeline_mode<synchronous>, transform_indices = @transform_3, window_bounds = array<i64: 576, 64>}, {pipeline_mode = #tpu.pipeline_mode<synchronous>, transform_indices = @transform_4, window_bounds = array<i64: 1, 64>}, {pipeline_mode = #tpu.pipeline_mode<synchronous>, transform_indices = @transform_5, window_bounds = array<i64: 576, 64>}, {pipeline_mode = #tpu.pipeline_mode<synchronous>, transform_indices = @transform_6, window_bounds = array<i64: 1, 64>}, {pipeline_mode = #tpu.pipeline_mode<synchronous>, transform_indices = @transform_7, window_bounds = array<i64: 64, 256>}, {pipeline_mode = #tpu.pipeline_mode<synchronous>, transform_indices = @transform_8, window_bounds = array<i64: 1, 256>}, {transform_indices = @transform_9, window_bounds = array<i64: 1, 24, 64>}, {transform_indices = @transform_10, window_bounds = array<i64: 1, 24, 256>}]} {
    %0 = tpu.iota {dimensions = array<i32: 0>} : vector<24x1xi32>
    %c6_i32 = arith.constant 6 : i32
    %c0_i32 = arith.constant 0 : i32
    %1 = arith.cmpi eq, %c6_i32, %c0_i32 : i32
    %c1_i32 = arith.constant 1 : i32
    %2 = arith.select %1, %c1_i32, %c6_i32 : i32
    %3 = vector.broadcast %2 : i32 to vector<24x1xi32>
    %4 = arith.remsi %0, %3 : vector<24x1xi32>
    %c0_i32_0 = arith.constant 0 : i32
    %5 = vector.broadcast %c0_i32_0 : i32 to vector<24x1xi32>
    %6 = arith.cmpi ne, %4, %5 : vector<24x1xi32>
    %c0_i32_1 = arith.constant 0 : i32
    %7 = vector.broadcast %c0_i32_1 : i32 to vector<24x1xi32>
    %8 = arith.cmpi slt, %4, %7 : vector<24x1xi32>
    %c0_i32_2 = arith.constant 0 : i32
    %9 = arith.cmpi slt, %2, %c0_i32_2 : i32
    %10 = vector.broadcast %9 : i1 to vector<24x1xi1>
    %11 = vector.broadcast %10 : vector<24x1xi1> to vector<24x1xi1>
    %12 = arith.xori %8, %11 : vector<24x1xi1>
    %13 = arith.andi %12, %6 : vector<24x1xi1>
    %14 = vector.broadcast %2 : i32 to vector<24x1xi32>
    %15 = arith.addi %4, %14 : vector<24x1xi32>
    %16 = arith.select %13, %15, %4 : vector<24x1xi1>, vector<24x1xi32>
    %c0_i32_3 = arith.constant 0 : i32
    %17 = vector.broadcast %c0_i32_3 : i32 to vector<24x1xi32>
    %18 = arith.cmpi ne, %16, %17 : vector<24x1xi32>
    %c5_i32 = arith.constant 5 : i32
    %19 = vector.broadcast %c5_i32 : i32 to vector<24x1xi32>
    %20 = arith.cmpi ne, %16, %19 : vector<24x1xi32>
    %21 = arith.andi %18, %20 : vector<24x1xi1>
    %cst = arith.constant 0.000000e+00 : f32
    %22 = vector.broadcast %cst : f32 to vector<8x64xf32>
    %c0 = arith.constant 0 : index
    %c0_4 = arith.constant 0 : index
    %23 = vector.load %arg12[%c0, %c0_4] : memref<40x64xf32, #tpu.memory_space<vmem>>, vector<8x64xf32>
    tpu.vector_store %arg12[%c0, %c0_4], %22 {strides = array<i32>} : memref<40x64xf32, #tpu.memory_space<vmem>>, vector<8x64xf32>,
    %c32 = arith.constant 32 : index
    %c0_5 = arith.constant 0 : index
    %24 = vector.load %arg12[%c32, %c0_5] : memref<40x64xf32, #tpu.memory_space<vmem>>, vector<8x64xf32>
    tpu.vector_store %arg12[%c32, %c0_5], %22 {strides = array<i32>} : memref<40x64xf32, #tpu.memory_space<vmem>>, vector<8x64xf32>,
    %c0_6 = arith.constant 0 : index
    %c1 = arith.constant 1 : index
    %c0_7 = arith.constant 0 : index
    %25 = vector.load %arg1[%c0_6, %c1, %c0_7] : memref<1x40x128xf32, #tpu.memory_space<vmem>>, vector<1x24x128xf32>
    %26 = vector.shape_cast %25 : vector<1x24x128xf32> to vector<24x128xf32>
    %c0_8 = arith.constant 0 : index
    %c0_9 = arith.constant 0 : index
    %27 = vector.load %arg2[%c0_8, %c0_9] : memref<512x64xf32, #tpu.memory_space<vmem>>, vector<128x64xf32>
    %cst_10 = arith.constant dense<0.000000e+00> : vector<24x64xf32>
    %28 = tpu.matmul %26, %27, %cst_10 {dimension_numbers = #tpu.dot_dimension_numbers<[1], [0], [0], [1], [0, 0, 1, 1], [], []>} : vector<24x128xf32>, vector<128x64xf32>, vector<24x64xf32> -> vector<24x64xf32>
    %c0_11 = arith.constant 0 : index
    %c2 = arith.constant 2 : index
    %c0_12 = arith.constant 0 : index
    %29 = vector.load %arg1[%c0_11, %c2, %c0_12] : memref<1x40x128xf32, #tpu.memory_space<vmem>>, vector<1x24x128xf32>
    %30 = vector.shape_cast %29 : vector<1x24x128xf32> to vector<24x128xf32>
    %c128 = arith.constant 128 : index
    %c0_13 = arith.constant 0 : index
    %31 = vector.load %arg2[%c128, %c0_13] : memref<512x64xf32, #tpu.memory_space<vmem>>, vector<128x64xf32>
    %cst_14 = arith.constant dense<0.000000e+00> : vector<24x64xf32>
    %32 = tpu.matmul %30, %31, %cst_14 {dimension_numbers = #tpu.dot_dimension_numbers<[1], [0], [0], [1], [0, 0, 1, 1], [], []>} : vector<24x128xf32>, vector<128x64xf32>, vector<24x64xf32> -> vector<24x64xf32>
    %33 = arith.addf %28, %32 : vector<24x64xf32>
    %c0_15 = arith.constant 0 : index
    %c7 = arith.constant 7 : index
    %c0_16 = arith.constant 0 : index
    %34 = vector.load %arg1[%c0_15, %c7, %c0_16] : memref<1x40x128xf32, #tpu.memory_space<vmem>>, vector<1x24x128xf32>
    %35 = vector.shape_cast %34 : vector<1x24x128xf32> to vector<24x128xf32>
    %c256 = arith.constant 256 : index
    %c0_17 = arith.constant 0 : index
    %36 = vector.load %arg2[%c256, %c0_17] : memref<512x64xf32, #tpu.memory_space<vmem>>, vector<128x64xf32>
    %cst_18 = arith.constant dense<0.000000e+00> : vector<24x64xf32>
    %37 = tpu.matmul %35, %36, %cst_18 {dimension_numbers = #tpu.dot_dimension_numbers<[1], [0], [0], [1], [0, 0, 1, 1], [], []>} : vector<24x128xf32>, vector<128x64xf32>, vector<24x64xf32> -> vector<24x64xf32>
    %38 = arith.addf %33, %37 : vector<24x64xf32>
    %c0_19 = arith.constant 0 : index
    %c8 = arith.constant 8 : index
    %c0_20 = arith.constant 0 : index
    %39 = vector.load %arg1[%c0_19, %c8, %c0_20] : memref<1x40x128xf32, #tpu.memory_space<vmem>>, vector<1x24x128xf32>
    %40 = vector.shape_cast %39 : vector<1x24x128xf32> to vector<24x128xf32>
    %c384 = arith.constant 384 : index
    %c0_21 = arith.constant 0 : index
    %41 = vector.load %arg2[%c384, %c0_21] : memref<512x64xf32, #tpu.memory_space<vmem>>, vector<128x64xf32>
    %cst_22 = arith.constant dense<0.000000e+00> : vector<24x64xf32>
    %42 = tpu.matmul %40, %41, %cst_22 {dimension_numbers = #tpu.dot_dimension_numbers<[1], [0], [0], [1], [0, 0, 1, 1], [], []>} : vector<24x128xf32>, vector<128x64xf32>, vector<24x64xf32> -> vector<24x64xf32>
    %43 = arith.addf %38, %42 : vector<24x64xf32>
    %c0_23 = arith.constant 0 : index
    %c0_24 = arith.constant 0 : index
    %44 = vector.load %arg3[%c0_23, %c0_24] : memref<1x64xf32, #tpu.memory_space<vmem>>, vector<1x64xf32>
    %45 = vector.broadcast %44 : vector<1x64xf32> to vector<24x64xf32>
    %46 = arith.addf %43, %45 : vector<24x64xf32>
    %cst_25 = arith.constant 0.000000e+00 : f32
    %47 = vector.broadcast %cst_25 : f32 to vector<24x64xf32>
    %48 = arith.maximumf %46, %47 : vector<24x64xf32>
    %cst_26 = arith.constant 0.000000e+00 : f32
    %49 = vector.shape_cast %21 : vector<24x1xi1> to vector<24x1xi1>
    %50 = vector.broadcast %49 : vector<24x1xi1> to vector<24x64xi1>
    %51 = vector.broadcast %cst_26 : f32 to vector<24x64xf32>
    %52 = arith.select %50, %48, %51 : vector<24x64xi1>, vector<24x64xf32>
    %c8_27 = arith.constant 8 : index
    %c0_28 = arith.constant 0 : index
    %53 = vector.load %arg12[%c8_27, %c0_28] : memref<40x64xf32, #tpu.memory_space<vmem>>, vector<24x64xf32>
    tpu.vector_store %arg12[%c8_27, %c0_28], %52 {strides = array<i32>} : memref<40x64xf32, #tpu.memory_space<vmem>>, vector<24x64xf32>,
    %c1_29 = arith.constant 1 : index
    %c0_30 = arith.constant 0 : index
    %54 = vector.load %arg12[%c1_29, %c0_30] : memref<40x64xf32, #tpu.memory_space<vmem>>, vector<24x64xf32>
    %c2_31 = arith.constant 2 : index
    %c0_32 = arith.constant 0 : index
    %55 = vector.load %arg12[%c2_31, %c0_32] : memref<40x64xf32, #tpu.memory_space<vmem>>, vector<24x64xf32>
    %c3 = arith.constant 3 : index
    %c0_33 = arith.constant 0 : index
    %56 = vector.load %arg12[%c3, %c0_33] : memref<40x64xf32, #tpu.memory_space<vmem>>, vector<24x64xf32>
    %c7_34 = arith.constant 7 : index
    %c0_35 = arith.constant 0 : index
    %57 = vector.load %arg12[%c7_34, %c0_35] : memref<40x64xf32, #tpu.memory_space<vmem>>, vector<24x64xf32>
    %c8_36 = arith.constant 8 : index
    %c0_37 = arith.constant 0 : index
    %58 = vector.load %arg12[%c8_36, %c0_37] : memref<40x64xf32, #tpu.memory_space<vmem>>, vector<24x64xf32>
    %c9 = arith.constant 9 : index
    %c0_38 = arith.constant 0 : index
    %59 = vector.load %arg12[%c9, %c0_38] : memref<40x64xf32, #tpu.memory_space<vmem>>, vector<24x64xf32>
    %c13 = arith.constant 13 : index
    %c0_39 = arith.constant 0 : index
    %60 = vector.load %arg12[%c13, %c0_39] : memref<40x64xf32, #tpu.memory_space<vmem>>, vector<24x64xf32>
    %c14 = arith.constant 14 : index
    %c0_40 = arith.constant 0 : index
    %61 = vector.load %arg12[%c14, %c0_40] : memref<40x64xf32, #tpu.memory_space<vmem>>, vector<24x64xf32>
    %c15 = arith.constant 15 : index
    %c0_41 = arith.constant 0 : index
    %62 = vector.load %arg12[%c15, %c0_41] : memref<40x64xf32, #tpu.memory_space<vmem>>, vector<24x64xf32>
    %63 = tpu.concatenate %54, %55, %56, %57, %58, %59, %60, %61, %62 in 1 : vector<24x64xf32>, vector<24x64xf32>, vector<24x64xf32>, vector<24x64xf32>, vector<24x64xf32>, vector<24x64xf32>, vector<24x64xf32>, vector<24x64xf32>, vector<24x64xf32> -> vector<24x576xf32>
    %c0_42 = arith.constant 0 : index
    %c0_43 = arith.constant 0 : index
    %64 = vector.load %arg4[%c0_42, %c0_43] : memref<576x64xf32, #tpu.memory_space<vmem>>, vector<576x64xf32>
    %cst_44 = arith.constant dense<0.000000e+00> : vector<24x64xf32>
    %65 = tpu.matmul %63, %64, %cst_44 {dimension_numbers = #tpu.dot_dimension_numbers<[1], [0], [0], [1], [0, 0, 1, 1], [], []>} : vector<24x576xf32>, vector<576x64xf32>, vector<24x64xf32> -> vector<24x64xf32>
    %c0_45 = arith.constant 0 : index
    %c0_46 = arith.constant 0 : index
    %66 = vector.load %arg5[%c0_45, %c0_46] : memref<1x64xf32, #tpu.memory_space<vmem>>, vector<1x64xf32>
    %67 = vector.broadcast %66 : vector<1x64xf32> to vector<24x64xf32>
    %68 = arith.addf %65, %67 : vector<24x64xf32>
    %cst_47 = arith.constant 0.000000e+00 : f32
    %69 = vector.broadcast %cst_47 : f32 to vector<24x64xf32>
    %70 = arith.maximumf %68, %69 : vector<24x64xf32>
    %cst_48 = arith.constant 0.000000e+00 : f32
    %71 = vector.shape_cast %21 : vector<24x1xi1> to vector<24x1xi1>
    %72 = vector.broadcast %71 : vector<24x1xi1> to vector<24x64xi1>
    %73 = vector.broadcast %cst_48 : f32 to vector<24x64xf32>
    %74 = arith.select %72, %70, %73 : vector<24x64xi1>, vector<24x64xf32>
    %c8_49 = arith.constant 8 : index
    %c0_50 = arith.constant 0 : index
    %75 = vector.load %arg12[%c8_49, %c0_50] : memref<40x64xf32, #tpu.memory_space<vmem>>, vector<24x64xf32>
    tpu.vector_store %arg12[%c8_49, %c0_50], %74 {strides = array<i32>} : memref<40x64xf32, #tpu.memory_space<vmem>>, vector<24x64xf32>,
    %c1_51 = arith.constant 1 : index
    %c0_52 = arith.constant 0 : index
    %76 = vector.load %arg12[%c1_51, %c0_52] : memref<40x64xf32, #tpu.memory_space<vmem>>, vector<24x64xf32>
    %c2_53 = arith.constant 2 : index
    %c0_54 = arith.constant 0 : index
    %77 = vector.load %arg12[%c2_53, %c0_54] : memref<40x64xf32, #tpu.memory_space<vmem>>, vector<24x64xf32>
    %c3_55 = arith.constant 3 : index
    %c0_56 = arith.constant 0 : index
    %78 = vector.load %arg12[%c3_55, %c0_56] : memref<40x64xf32, #tpu.memory_space<vmem>>, vector<24x64xf32>
    %c7_57 = arith.constant 7 : index
    %c0_58 = arith.constant 0 : index
    %79 = vector.load %arg12[%c7_57, %c0_58] : memref<40x64xf32, #tpu.memory_space<vmem>>, vector<24x64xf32>
    %c8_59 = arith.constant 8 : index
    %c0_60 = arith.constant 0 : index
    %80 = vector.load %arg12[%c8_59, %c0_60] : memref<40x64xf32, #tpu.memory_space<vmem>>, vector<24x64xf32>
    %c9_61 = arith.constant 9 : index
    %c0_62 = arith.constant 0 : index
    %81 = vector.load %arg12[%c9_61, %c0_62] : memref<40x64xf32, #tpu.memory_space<vmem>>, vector<24x64xf32>
    %c13_63 = arith.constant 13 : index
    %c0_64 = arith.constant 0 : index
    %82 = vector.load %arg12[%c13_63, %c0_64] : memref<40x64xf32, #tpu.memory_space<vmem>>, vector<24x64xf32>
    %c14_65 = arith.constant 14 : index
    %c0_66 = arith.constant 0 : index
    %83 = vector.load %arg12[%c14_65, %c0_66] : memref<40x64xf32, #tpu.memory_space<vmem>>, vector<24x64xf32>
    %c15_67 = arith.constant 15 : index
    %c0_68 = arith.constant 0 : index
    %84 = vector.load %arg12[%c15_67, %c0_68] : memref<40x64xf32, #tpu.memory_space<vmem>>, vector<24x64xf32>
    %85 = tpu.concatenate %76, %77, %78, %79, %80, %81, %82, %83, %84 in 1 : vector<24x64xf32>, vector<24x64xf32>, vector<24x64xf32>, vector<24x64xf32>, vector<24x64xf32>, vector<24x64xf32>, vector<24x64xf32>, vector<24x64xf32>, vector<24x64xf32> -> vector<24x576xf32>
    %c0_69 = arith.constant 0 : index
    %c0_70 = arith.constant 0 : index
    %86 = vector.load %arg6[%c0_69, %c0_70] : memref<576x64xf32, #tpu.memory_space<vmem>>, vector<576x64xf32>
    %cst_71 = arith.constant dense<0.000000e+00> : vector<24x64xf32>
    %87 = tpu.matmul %85, %86, %cst_71 {dimension_numbers = #tpu.dot_dimension_numbers<[1], [0], [0], [1], [0, 0, 1, 1], [], []>} : vector<24x576xf32>, vector<576x64xf32>, vector<24x64xf32> -> vector<24x64xf32>
    %c0_72 = arith.constant 0 : index
    %c0_73 = arith.constant 0 : index
    %88 = vector.load %arg7[%c0_72, %c0_73] : memref<1x64xf32, #tpu.memory_space<vmem>>, vector<1x64xf32>
    %89 = vector.broadcast %88 : vector<1x64xf32> to vector<24x64xf32>
    %90 = arith.addf %87, %89 : vector<24x64xf32>
    %cst_74 = arith.constant 0.000000e+00 : f32
    %91 = vector.broadcast %cst_74 : f32 to vector<24x64xf32>
    %92 = arith.maximumf %90, %91 : vector<24x64xf32>
    %c0_75 = arith.constant 0 : index
    %c0_76 = arith.constant 0 : index
    %c0_77 = arith.constant 0 : index
    %93 = vector.load %arg10[%c0_75, %c0_76, %c0_77] : memref<1x24x64xf32, #tpu.memory_space<vmem>>, vector<1x24x64xf32>
    %94 = vector.shape_cast %93 : vector<1x24x64xf32> to vector<24x64xf32>
    %95 = vector.shape_cast %92 : vector<24x64xf32> to vector<1x24x64xf32>
    tpu.vector_store %arg10[%c0_75, %c0_76, %c0_77], %95 {strides = array<i32>} : memref<1x24x64xf32, #tpu.memory_space<vmem>>, vector<1x24x64xf32>,
    %c0_78 = arith.constant 0 : index
    %c0_79 = arith.constant 0 : index
    %96 = vector.load %arg8[%c0_78, %c0_79] : memref<64x256xf32, #tpu.memory_space<vmem>>, vector<64x256xf32>
    %cst_80 = arith.constant dense<0.000000e+00> : vector<24x256xf32>
    %97 = tpu.matmul %92, %96, %cst_80 {dimension_numbers = #tpu.dot_dimension_numbers<[1], [0], [0], [1], [0, 0, 1, 1], [], []>} : vector<24x64xf32>, vector<64x256xf32>, vector<24x256xf32> -> vector<24x256xf32>
    %c0_81 = arith.constant 0 : index
    %c0_82 = arith.constant 0 : index
    %98 = vector.load %arg9[%c0_81, %c0_82] : memref<1x256xf32, #tpu.memory_space<vmem>>, vector<1x256xf32>
    %99 = vector.broadcast %98 : vector<1x256xf32> to vector<24x256xf32>
    %100 = arith.addf %97, %99 : vector<24x256xf32>
    %cst_83 = arith.constant 0.000000e+00 : f32
    %101 = vector.broadcast %cst_83 : f32 to vector<24x256xf32>
    %102 = arith.maximumf %100, %101 : vector<24x256xf32>
    %c0_84 = arith.constant 0 : index
    %c0_85 = arith.constant 0 : index
    %c0_86 = arith.constant 0 : index
    %103 = vector.load %arg11[%c0_84, %c0_85, %c0_86] : memref<1x24x256xf32, #tpu.memory_space<vmem>>, vector<1x24x256xf32>
    %104 = vector.shape_cast %103 : vector<1x24x256xf32> to vector<24x256xf32>
    %105 = vector.shape_cast %102 : vector<24x256xf32> to vector<1x24x256xf32>
    tpu.vector_store %arg11[%c0_84, %c0_85, %c0_86], %105 {strides = array<i32>} : memref<1x24x256xf32, #tpu.memory_space<vmem>>, vector<1x24x256xf32>,
    return
  }
  func.func @transform_0(%arg0: i32) -> (i32, i32, i32) {
    %c0_i32 = arith.constant 0 : i32
    %c0_i32_0 = arith.constant 0 : i32
    %c0_i32_1 = arith.constant 0 : i32
    return %arg0, %c0_i32, %c0_i32_0 : i32, i32, i32
  }
  func.func @transform_1(%arg0: i32) -> (i32, i32) {
    %c0_i32 = arith.constant 0 : i32
    %c0_i32_0 = arith.constant 0 : i32
    %c0_i32_1 = arith.constant 0 : i32
    return %c0_i32, %c0_i32_0 : i32, i32
  }
  func.func @transform_2(%arg0: i32) -> (i32, i32) {
    %c0_i32 = arith.constant 0 : i32
    %c0_i32_0 = arith.constant 0 : i32
    %c0_i32_1 = arith.constant 0 : i32
    return %c0_i32, %c0_i32_0 : i32, i32
  }
  func.func @transform_3(%arg0: i32) -> (i32, i32) {
    %c0_i32 = arith.constant 0 : i32
    %c0_i32_0 = arith.constant 0 : i32
    %c0_i32_1 = arith.constant 0 : i32
    return %c0_i32, %c0_i32_0 : i32, i32
  }
  func.func @transform_4(%arg0: i32) -> (i32, i32) {
    %c0_i32 = arith.constant 0 : i32
    %c0_i32_0 = arith.constant 0 : i32
    %c0_i32_1 = arith.constant 0 : i32
    return %c0_i32, %c0_i32_0 : i32, i32
  }
  func.func @transform_5(%arg0: i32) -> (i32, i32) {
    %c0_i32 = arith.constant 0 : i32
    %c0_i32_0 = arith.constant 0 : i32
    %c0_i32_1 = arith.constant 0 : i32
    return %c0_i32, %c0_i32_0 : i32, i32
  }
  func.func @transform_6(%arg0: i32) -> (i32, i32) {
    %c0_i32 = arith.constant 0 : i32
    %c0_i32_0 = arith.constant 0 : i32
    %c0_i32_1 = arith.constant 0 : i32
    return %c0_i32, %c0_i32_0 : i32, i32
  }
  func.func @transform_7(%arg0: i32) -> (i32, i32) {
    %c0_i32 = arith.constant 0 : i32
    %c0_i32_0 = arith.constant 0 : i32
    %c0_i32_1 = arith.constant 0 : i32
    return %c0_i32, %c0_i32_0 : i32, i32
  }
  func.func @transform_8(%arg0: i32) -> (i32, i32) {
    %c0_i32 = arith.constant 0 : i32
    %c0_i32_0 = arith.constant 0 : i32
    %c0_i32_1 = arith.constant 0 : i32
    return %c0_i32, %c0_i32_0 : i32, i32
  }
  func.func @transform_9(%arg0: i32) -> (i32, i32, i32) {
    %c0_i32 = arith.constant 0 : i32
    %c0_i32_0 = arith.constant 0 : i32
    %c0_i32_1 = arith.constant 0 : i32
    return %arg0, %c0_i32, %c0_i32_0 : i32, i32, i32
  }
  func.func @transform_10(%arg0: i32) -> (i32, i32, i32) {
    %c0_i32 = arith.constant 0 : i32
    %c0_i32_0 = arith.constant 0 : i32
    %c0_i32_1 = arith.constant 0 : i32
    return %arg0, %c0_i32, %c0_i32_0 : i32, i32, i32
  }
}

</mosaic_0001>

<llo_original>
// kernel: rpn_forward.2
$region0: #{rpn_forward.2}
  #allocation0 [shape = 'u32[]', space=smem, size = 0x4, offset = 0x4, fixed_abs, tag = 'smem constant byte address 0x4 - core index']
  #allocation1 [shape = 'u32[144,128]{1,0:T(1,128)}', space=vmem, size = 0x12000, scoped, tag = 'internal scratch']
  #allocation2 [shape = 'f32[112,32]{1,0:T(8,128)}', space=vmem, size = 0xe000, scoped, tag = 'scratch operand']
  %s0 = inlined_call_operand.vmem [shape: f32[2,112,128], index: 0, kind: input, shape index: {}]
  %s1 = inlined_call_operand.vmem [shape: f32[512,32], index: 1, kind: input, shape index: {}]
  %s2 = inlined_call_operand.vmem [shape: f32[1,32], index: 2, kind: input, shape index: {}]
  %s3 = inlined_call_operand.vmem [shape: f32[288,32], index: 3, kind: input, shape index: {}]
  %s4 = inlined_call_operand.vmem [shape: f32[1,32], index: 4, kind: input, shape index: {}]
  %s5 = inlined_call_operand.vmem [shape: f32[32,64], index: 5, kind: input, shape index: {}]
  %s6 = inlined_call_operand.vmem [shape: f32[1,64], index: 6, kind: input, shape index: {}]
  %s7 = inlined_call_operand.vmem [shape: f32[2,80,32], index: 7, kind: output, shape index: {0}]
  %s8 = inlined_call_operand.vmem [shape: f32[2,80,64], index: 8, kind: output, shape index: {1}]
  %9 = xla_tuple %s7, %s8
  %s10 = sld [smem:[#allocation0]]
  $region69: #{rpn_forward.2} parent=0
    _
  %s12 = ssub.s32 1, %s10
  %s13 = scalar_select 0, %s12, %s10
  loop: start=0, step=1, limit=4
  $region2: #{rpn_forward.2} parent=0 // loop_pre_header
    _
  $region3: #{rpn_forward.2} parent=0 // loop_header
    %s15 = sphi 0, %s19
    %p16 = scmp.ge.s32.totalorder %s15, 4
    %s25 = sphi 0, %s27
    %s28 = sphi 0, %s25
    %s29 = sphi 0, %s28
    %s45 = sphi 0, %s29
    %s49 = sphi 0, %s49
    %s51 = sphi 0, %s49
    %s52 = sphi 0, %s51
    %s66 = sphi 0, %s52
    %s70 = sphi 0, %s70
    %s72 = sphi 0, %s70
    %s73 = sphi 0, %s72
    %s87 = sphi 0, %s73
    %s91 = sphi 0, %s91
    %s93 = sphi 0, %s91
    %s94 = sphi 0, %s93
    %s108 = sphi 0, %s94
    %s112 = sphi 0, %s112
    %s114 = sphi 0, %s112
    %s115 = sphi 0, %s114
    %s129 = sphi 0, %s115
    %s133 = sphi 0, %s133
    %s135 = sphi 0, %s133
    %s136 = sphi 0, %s135
    %s150 = sphi 0, %s136
    %s154 = sphi 0, %s154
    %s156 = sphi 0, %s154
    %s157 = sphi 0, %s156
    %s171 = sphi 0, %s157
    %s177 = sphi 0, %s179
    %s180 = sphi 0, %s177
    %s181 = sphi 0, %s180
    %s197 = sphi 0, %s181
    %s203 = sphi 0, %s205
    %s206 = sphi 0, %s203
    %s207 = sphi 0, %s206
    %s223 = sphi 0, %s207
  $region4: #{rpn_forward.2} parent=0 // loop_header_branch
    %18 = sbr.rel (%p16) target = $region8
  $region5: #{rpn_forward.2} parent=0 // loop_body
    %s20 = ssub.s32 %s15, 1
    %s21 = ssub.s32 %s15, 2
    %s22 = sadd.s32 %s15, 1
    %s23 = ssub.s32 %s15, %s22
    %p24 = scmp.eq.s32.totalorder %s23, 0
    %s26 = sadd.s32 %s25, 1
    %s27 = scalar_select %p24, %s25, %s26
    %p30 = pneg %p24
    %p31 = scmp.eq.s32.totalorder %s15, 1
    %p32 = por %p30, %p31
    %p33 = scmp.ne.s32.totalorder %s25, %s28
    %p34 = scmp.eq.s32.totalorder %s15, 0
    %p35 = por %p33, %p34
    %p36 = scmp.ne.s32.totalorder %s25, %s28
    %p37 = scmp.eq.s32.totalorder %s20, 1
    %p38 = por %p36, %p37
    %p39 = scmp.ne.s32.totalorder %s28, %s29
    %p40 = scmp.eq.s32.totalorder %s20, 0
    %p41 = por %p39, %p40
    %p42 = scmp.ne.s32.totalorder %s28, %s29
    %p43 = scmp.eq.s32.totalorder %s21, 1
    %p44 = por %p42, %p43
    %p46 = scmp.ne.s32.totalorder %s29, %s45
    %p47 = scmp.eq.s32.totalorder %s21, 0
    %p48 = por %p46, %p47
    %s50 = sadd.s32 %s49, 1
    %p53 = scmp.eq.s32.totalorder %s15, 1
    %p54 = scmp.ne.s32.totalorder %s49, %s51
    %p55 = scmp.eq.s32.totalorder %s15, 0
    %p56 = por %p54, %p55
    %p57 = scmp.ne.s32.totalorder %s49, %s51
    %p58 = scmp.eq.s32.totalorder %s20, 1
    %p59 = por %p57, %p58
    %p60 = scmp.ne.s32.totalorder %s51, %s52
    %p61 = scmp.eq.s32.totalorder %s20, 0
    %p62 = por %p60, %p61
    %p63 = scmp.ne.s32.totalorder %s51, %s52
    %p64 = scmp.eq.s32.totalorder %s21, 1
    %p65 = por %p63, %p64
    %p67 = scmp.ne.s32.totalorder %s52, %s66
    %p68 = scmp.eq.s32.totalorder %s21, 0
    %p69 = por %p67, %p68
    %s71 = sadd.s32 %s70, 1
    %p74 = scmp.eq.s32.totalorder %s15, 1
    %p75 = scmp.ne.s32.totalorder %s70, %s72
    %p76 = scmp.eq.s32.totalorder %s15, 0
    %p77 = por %p75, %p76
    %p78 = scmp.ne.s32.totalorder %s70, %s72
    %p79 = scmp.eq.s32.totalorder %s20, 1
    %p80 = por %p78, %p79
    %p81 = scmp.ne.s32.totalorder %s72, %s73
    %p82 = scmp.eq.s32.totalorder %s20, 0
    %p83 = por %p81, %p82
    %p84 = scmp.ne.s32.totalorder %s72, %s73
    %p85 = scmp.eq.s32.totalorder %s21, 1
    %p86 = por %p84, %p85
    %p88 = scmp.ne.s32.totalorder %s73, %s87
    %p89 = scmp.eq.s32.totalorder %s21, 0
    %p90 = por %p88, %p89
    %s92 = sadd.s32 %s91, 1
    %p95 = scmp.eq.s32.totalorder %s15, 1
    %p96 = scmp.ne.s32.totalorder %s91, %s93
    %p97 = scmp.eq.s32.totalorder %s15, 0
    %p98 = por %p96, %p97
    %p99 = scmp.ne.s32.totalorder %s91, %s93
    %p100 = scmp.eq.s32.totalorder %s20, 1
    %p101 = por %p99, %p100
    %p102 = scmp.ne.s32.totalorder %s93, %s94
    %p103 = scmp.eq.s32.totalorder %s20, 0
    %p104 = por %p102, %p103
    %p105 = scmp.ne.s32.totalorder %s93, %s94
    %p106 = scmp.eq.s32.totalorder %s21, 1
    %p107 = por %p105, %p106
    %p109 = scmp.ne.s32.totalorder %s94, %s108
    %p110 = scmp.eq.s32.totalorder %s21, 0
    %p111 = por %p109, %p110
    %s113 = sadd.s32 %s112, 1
    %p116 = scmp.eq.s32.totalorder %s15, 1
    %p117 = scmp.ne.s32.totalorder %s112, %s114
    %p118 = scmp.eq.s32.totalorder %s15, 0
    %p119 = por %p117, %p118
    %p120 = scmp.ne.s32.totalorder %s112, %s114
    %p121 = scmp.eq.s32.totalorder %s20, 1
    %p122 = por %p120, %p121
    %p123 = scmp.ne.s32.totalorder %s114, %s115
    %p124 = scmp.eq.s32.totalorder %s20, 0
    %p125 = por %p123, %p124
    %p126 = scmp.ne.s32.totalorder %s114, %s115
    %p127 = scmp.eq.s32.totalorder %s21, 1
    %p128 = por %p126, %p127
    %p130 = scmp.ne.s32.totalorder %s115, %s129
    %p131 = scmp.eq.s32.totalorder %s21, 0
    %p132 = por %p130, %p131
    %s134 = sadd.s32 %s133, 1
    %p137 = scmp.eq.s32.totalorder %s15, 1
    %p138 = scmp.ne.s32.totalorder %s133, %s135
    %p139 = scmp.eq.s32.totalorder %s15, 0
    %p140 = por %p138, %p139
    %p141 = scmp.ne.s32.totalorder %s133, %s135
    %p142 = scmp.eq.s32.totalorder %s20, 1
    %p143 = por %p141, %p142
    %p144 = scmp.ne.s32.totalorder %s135, %s136
    %p145 = scmp.eq.s32.totalorder %s20, 0
    %p146 = por %p144, %p145
    %p147 = scmp.ne.s32.totalorder %s135, %s136
    %p148 = scmp.eq.s32.totalorder %s21, 1
    %p149 = por %p147, %p148
    %p151 = scmp.ne.s32.totalorder %s136, %s150
    %p152 = scmp.eq.s32.totalorder %s21, 0
    %p153 = por %p151, %p152
    %s155 = sadd.s32 %s154, 1
    %p158 = scmp.eq.s32.totalorder %s15, 1
    %p159 = scmp.ne.s32.totalorder %s154, %s156
    %p160 = scmp.eq.s32.totalorder %s15, 0
    %p161 = por %p159, %p160
    %p162 = scmp.ne.s32.totalorder %s154, %s156
    %p163 = scmp.eq.s32.totalorder %s20, 1
    %p164 = por %p162, %p163
    %p165 = scmp.ne.s32.totalorder %s156, %s157
    %p166 = scmp.eq.s32.totalorder %s20, 0
    %p167 = por %p165, %p166
    %p168 = scmp.ne.s32.totalorder %s156, %s157
    %p169 = scmp.eq.s32.totalorder %s21, 1
    %p170 = por %p168, %p169
    %p172 = scmp.ne.s32.totalorder %s157, %s171
    %p173 = scmp.eq.s32.totalorder %s21, 0
    %p174 = por %p172, %p173
    %s175 = ssub.s32 %s15, %s22
    %p176 = scmp.eq.s32.totalorder %s175, 0
    %s178 = sadd.s32 %s177, 1
    %s179 = scalar_select %p176, %s177, %s178
    %p182 = pneg %p176
    %p183 = scmp.eq.s32.totalorder %s15, 1
    %p184 = por %p182, %p183
    %p185 = scmp.ne.s32.totalorder %s177, %s180
    %p186 = scmp.eq.s32.totalorder %s15, 0
    %p187 = por %p185, %p186
    %p188 = scmp.ne.s32.totalorder %s177, %s180
    %p189 = scmp.eq.s32.totalorder %s20, 1
    %p190 = por %p188, %p189
    %p191 = scmp.ne.s32.totalorder %s180, %s181
    %p192 = scmp.eq.s32.totalorder %s20, 0
    %p193 = por %p191, %p192
    %p194 = scmp.ne.s32.totalorder %s180, %s181
    %p195 = scmp.eq.s32.totalorder %s21, 1
    %p196 = por %p194, %p195
    %p198 = scmp.ne.s32.totalorder %s181, %s197
    %p199 = scmp.eq.s32.totalorder %s21, 0
    %p200 = por %p198, %p199
    %s201 = ssub.s32 %s15, %s22
    %p202 = scmp.eq.s32.totalorder %s201, 0
    %s204 = sadd.s32 %s203, 1
    %s205 = scalar_select %p202, %s203, %s204
    %p208 = pneg %p202
    %p209 = scmp.eq.s32.totalorder %s15, 1
    %p210 = por %p208, %p209
    %p211 = scmp.ne.s32.totalorder %s203, %s206
    %p212 = scmp.eq.s32.totalorder %s15, 0
    %p213 = por %p211, %p212
    %p214 = scmp.ne.s32.totalorder %s203, %s206
    %p215 = scmp.eq.s32.totalorder %s20, 1
    %p216 = por %p214, %p215
    %p217 = scmp.ne.s32.totalorder %s206, %s207
    %p218 = scmp.eq.s32.totalorder %s20, 0
    %p219 = por %p217, %p218
    %p220 = scmp.ne.s32.totalorder %s206, %s207
    %p221 = scmp.eq.s32.totalorder %s21, 1
    %p222 = por %p220, %p221
    %p224 = scmp.ne.s32.totalorder %s207, %s223
    %p225 = scmp.eq.s32.totalorder %s21, 0
    %p226 = por %p224, %p225
    %p227 = scmp.le.s32.totalorder 1, %s15
    %p228 = scmp.lt.s32.totalorder %s15, 3
    %p229 = pnand %p227, %p228
    %p230 = pneg %p229
    // Predicated region
    $region9: #{rpn_forward.2} parent=5 // pred_check
      _
    $region10: #{rpn_forward.2} parent=5 // pred_check_branch
      %232 = sbr.rel (%p229) target = $region12
    $region11: #{rpn_forward.2} parent=5 // pred_region
      %s233 = ssub.s32 %s15, 1
      // Predicated region
      $region13: #{rpn_forward.2} parent=11 // pred_check
        %p234 = pneg %p62
      $region14: #{rpn_forward.2} parent=11 // pred_check_branch
        %236 = sbr.rel (%p234) target = $region16
      $region15: #{rpn_forward.2} parent=11 // pred_region
        _
      $region16: #{rpn_forward.2} parent=11 // pred_fallthru
        _
      // Predicated region
      $region17: #{rpn_forward.2} parent=11 // pred_check
        %p237 = pneg %p83
      $region18: #{rpn_forward.2} parent=11 // pred_check_branch
        %239 = sbr.rel (%p237) target = $region20
      $region19: #{rpn_forward.2} parent=11 // pred_region
        _
      $region20: #{rpn_forward.2} parent=11 // pred_fallthru
        _
      // Predicated region
      $region21: #{rpn_forward.2} parent=11 // pred_check
        %p240 = pneg %p104
      $region22: #{rpn_forward.2} parent=11 // pred_check_branch
        %242 = sbr.rel (%p240) target = $region24
      $region23: #{rpn_forward.2} parent=11 // pred_region
        _
      $region24: #{rpn_forward.2} parent=11 // pred_fallthru
        _
      // Predicated region
      $region25: #{rpn_forward.2} parent=11 // pred_check
        %p243 = pneg %p125
      $region26: #{rpn_forward.2} parent=11 // pred_check_branch
        %245 = sbr.rel (%p243) target = $region28
      $region27: #{rpn_forward.2} parent=11 // pred_region
        _
      $region28: #{rpn_forward.2} parent=11 // pred_fallthru
        _
      // Predicated region
      $region29: #{rpn_forward.2} parent=11 // pred_check
        %p246 = pneg %p146
      $region30: #{rpn_forward.2} parent=11 // pred_check_branch
        %248 = sbr.rel (%p246) target = $region32
      $region31: #{rpn_forward.2} parent=11 // pred_region
        _
      $region32: #{rpn_forward.2} parent=11 // pred_fallthru
        _
      // Predicated region
      $region33: #{rpn_forward.2} parent=11 // pred_check
        %p249 = pneg %p167
      $region34: #{rpn_forward.2} parent=11 // pred_check_branch
        %251 = sbr.rel (%p249) target = $region36
      $region35: #{rpn_forward.2} parent=11 // pred_region
        _
      $region36: #{rpn_forward.2} parent=11 // pred_fallthru
        _
    $region12: #{rpn_forward.2} parent=5 // pred_fallthru
      _
    %p252 = scmp.lt.s32.totalorder %s15, 2
    // Predicated region
    $region37: #{rpn_forward.2} parent=5 // pred_check
      %p253 = pneg %p252
    $region38: #{rpn_forward.2} parent=5 // pred_check_branch
      %255 = sbr.rel (%p253) target = $region40
    $region39: #{rpn_forward.2} parent=5 // pred_region
      // Predicated region
      $region41: #{rpn_forward.2} parent=39 // pred_check
        %p256 = pneg %p35
      $region42: #{rpn_forward.2} parent=39 // pred_check_branch
        %258 = sbr.rel (%p256) target = $region44
      $region43: #{rpn_forward.2} parent=39 // pred_region
        %p259 = scmp.lt.s32.totalorder %s15, 1
        %s260 = scalar_select %p259, %s15, 1
        %s261 = smul.addr %s260, 14
        %s262 = smul.addr %s261, 8
        %s263 = scalar_lea.vmem %s0, %s262
      $region44: #{rpn_forward.2} parent=39 // pred_fallthru
        _
    $region40: #{rpn_forward.2} parent=5 // pred_fallthru
      _
    %p264 = scmp.le.s32.totalorder 1, %s15
    %p265 = scmp.lt.s32.totalorder %s15, 3
    %p266 = pnand %p264, %p265
    %p267 = pneg %p266
    // Predicated region
    $region45: #{rpn_forward.2} parent=5 // pred_check
      _
    $region46: #{rpn_forward.2} parent=5 // pred_check_branch
      %269 = sbr.rel (%p266) target = $region48
    $region47: #{rpn_forward.2} parent=5 // pred_region
      %s270 = ssub.s32 %s15, 1
      %p271 = scmp.lt.s32.totalorder %s20, 1
      %s272 = scalar_select %p271, %s20, 1
      %s273 = smul.addr %s272, 14
      %s274 = smul.addr %s273, 8
      %s275 = scalar_lea.vmem %s0, %s274
      %p276 = pneg %p41
      %p277 = pneg %p38
      %p278 = pneg %p62
      %p279 = pneg %p59
      %p280 = pneg %p83
      %p281 = pneg %p80
      %p282 = pneg %p104
      %p283 = pneg %p101
      %p284 = pneg %p125
      %p285 = pneg %p122
      %p286 = pneg %p146
      %p287 = pneg %p143
      %p288 = pneg %p167
      %p289 = pneg %p164
      %p290 = pneg %p193
      %p291 = pneg %p190
      %p292 = scmp.lt.s32.totalorder %s20, 1
      %s293 = scalar_select %p292, %s20, 1
      %s294 = smul.addr %s293, 10
      %s295 = smul.addr %s294, 8
      %s296 = scalar_lea.vmem %s7, %s295
      %p297 = pneg %p219
      %p298 = pneg %p216
      %p299 = scmp.lt.s32.totalorder %s20, 1
      %s300 = scalar_select %p299, %s20, 1
      %s301 = smul.addr %s300, 10
      %s302 = smul.addr %s301, 8
      %s303 = scalar_lea.vmem %s8, %s302
      %p304 = scmp.lt.s32.totalorder %s20, 1
      %s305 = scalar_select %p304, %s20, 1
      %s306 = smul.addr %s305, 14
      %s307 = smul.addr %s306, 8
      %s308 = scalar_lea.vmem %s0, %s307
      %p309 = scmp.lt.s32.totalorder %s20, 1
      %s310 = scalar_select %p309, %s20, 1
      %s311 = smul.addr %s310, 10
      %s312 = smul.addr %s311, 8
      %s313 = scalar_lea.vmem %s7, %s312
      %p314 = scmp.lt.s32.totalorder %s20, 1
      %s315 = scalar_select %p314, %s20, 1
      %s316 = smul.addr %s315, 10
      %s317 = smul.addr %s316, 8
      %s318 = scalar_lea.vmem %s8, %s317
      %v319 = vlaneseq
      %v320 = vshrl.u32 %v319, 7
      %v321 = vadd.s32 %v320, 8
      %v322 = vadd.s32 %v320, 16
      %v323 = vadd.s32 %v320, 24
      %v324 = vadd.s32 %v320, 32
      %v325 = vadd.s32 %v320, 40
      %v326 = vadd.s32 %v320, 48
      %v327 = vadd.s32 %v320, 56
      %v328 = vadd.s32 %v320, 64
      %v329 = vadd.s32 %v320, 72
      %vm330 = vcmp.lt.s32.totalorder %v320, 0
      %v331 = vsub.s32 0, %v320
      %v332 = vsel %vm330, %v331, %v320
      %v333 = vmul.u32.u64.compose %v332, 3435973837
      %v334 = vextract.low.u32 %v333
      %v335 = vextract.high.u32 %v333
      %v336 = vshrl.u32 %v335, 3
      %v337 = vmul.u32 %v336, 10
      %v338 = vsub.s32 %v332, %v337
      %v339 = vsub.s32 0, %v338
      %v340 = vsel %vm330, %v339, %v338
      %vm341 = vcmp.lt.s32.totalorder %v321, 0
      %v342 = vsub.s32 0, %v321
      %v343 = vsel %vm341, %v342, %v321
      %v344 = vmul.u32.u64.compose %v343, 3435973837
      %v345 = vextract.low.u32 %v344
      %v346 = vextract.high.u32 %v344
      %v347 = vshrl.u32 %v346, 3
      %v348 = vmul.u32 %v347, 10
      %v349 = vsub.s32 %v343, %v348
      %v350 = vsub.s32 0, %v349
      %v351 = vsel %vm341, %v350, %v349
      %vm352 = vcmp.lt.s32.totalorder %v322, 0
      %v353 = vsub.s32 0, %v322
      %v354 = vsel %vm352, %v353, %v322
      %v355 = vmul.u32.u64.compose %v354, 3435973837
      %v356 = vextract.low.u32 %v355
      %v357 = vextract.high.u32 %v355
      %v358 = vshrl.u32 %v357, 3
      %v359 = vmul.u32 %v358, 10
      %v360 = vsub.s32 %v354, %v359
      %v361 = vsub.s32 0, %v360
      %v362 = vsel %vm352, %v361, %v360
      %vm363 = vcmp.lt.s32.totalorder %v323, 0
      %v364 = vsub.s32 0, %v323
      %v365 = vsel %vm363, %v364, %v323
      %v366 = vmul.u32.u64.compose %v365, 3435973837
      %v367 = vextract.low.u32 %v366
      %v368 = vextract.high.u32 %v366
      %v369 = vshrl.u32 %v368, 3
      %v370 = vmul.u32 %v369, 10
      %v371 = vsub.s32 %v365, %v370
      %v372 = vsub.s32 0, %v371
      %v373 = vsel %vm363, %v372, %v371
      %vm374 = vcmp.lt.s32.totalorder %v324, 0
      %v375 = vsub.s32 0, %v324
      %v376 = vsel %vm374, %v375, %v324
      %v377 = vmul.u32.u64.compose %v376, 3435973837
      %v378 = vextract.low.u32 %v377
      %v379 = vextract.high.u32 %v377
      %v380 = vshrl.u32 %v379, 3
      %v381 = vmul.u32 %v380, 10
      %v382 = vsub.s32 %v376, %v381
      %v383 = vsub.s32 0, %v382
      %v384 = vsel %vm374, %v383, %v382
      %vm385 = vcmp.lt.s32.totalorder %v325, 0
      %v386 = vsub.s32 0, %v325
      %v387 = vsel %vm385, %v386, %v325
      %v388 = vmul.u32.u64.compose %v387, 3435973837
      %v389 = vextract.low.u32 %v388
      %v390 = vextract.high.u32 %v388
      %v391 = vshrl.u32 %v390, 3
      %v392 = vmul.u32 %v391, 10
      %v393 = vsub.s32 %v387, %v392
      %v394 = vsub.s32 0, %v393
      %v395 = vsel %vm385, %v394, %v393
      %vm396 = vcmp.lt.s32.totalorder %v326, 0
      %v397 = vsub.s32 0, %v326
      %v398 = vsel %vm396, %v397, %v326
      %v399 = vmul.u32.u64.compose %v398, 3435973837
      %v400 = vextract.low.u32 %v399
      %v401 = vextract.high.u32 %v399
      %v402 = vshrl.u32 %v401, 3
      %v403 = vmul.u32 %v402, 10
      %v404 = vsub.s32 %v398, %v403
      %v405 = vsub.s32 0, %v404
      %v406 = vsel %vm396, %v405, %v404
      %vm407 = vcmp.lt.s32.totalorder %v327, 0
      %v408 = vsub.s32 0, %v327
      %v409 = vsel %vm407, %v408, %v327
      %v410 = vmul.u32.u64.compose %v409, 3435973837
      %v411 = vextract.low.u32 %v410
      %v412 = vextract.high.u32 %v410
      %v413 = vshrl.u32 %v412, 3
      %v414 = vmul.u32 %v413, 10
      %v415 = vsub.s32 %v409, %v414
      %v416 = vsub.s32 0, %v415
      %v417 = vsel %vm407, %v416, %v415
      %vm418 = vcmp.lt.s32.totalorder %v328, 0
      %v419 = vsub.s32 0, %v328
      %v420 = vsel %vm418, %v419, %v328
      %v421 = vmul.u32.u64.compose %v420, 3435973837
      %v422 = vextract.low.u32 %v421
      %v423 = vextract.high.u32 %v421
      %v424 = vshrl.u32 %v423, 3
      %v425 = vmul.u32 %v424, 10
      %v426 = vsub.s32 %v420, %v425
      %v427 = vsub.s32 0, %v426
      %v428 = vsel %vm418, %v427, %v426
      %vm429 = vcmp.lt.s32.totalorder %v329, 0
      %v430 = vsub.s32 0, %v329
      %v431 = vsel %vm429, %v430, %v329
      %v432 = vmul.u32.u64.compose %v431, 3435973837
      %v433 = vextract.low.u32 %v432
      %v434 = vextract.high.u32 %v432
      %v435 = vshrl.u32 %v434, 3
      %v436 = vmul.u32 %v435, 10
      %v437 = vsub.s32 %v431, %v436
      %v438 = vsub.s32 0, %v437
      %v439 = vsel %vm429, %v438, %v437
      %vm440 = vcmp.ne.s32.totalorder %v340, 0
      %vm441 = vcmp.ne.s32.totalorder %v351, 0
      %vm442 = vcmp.ne.s32.totalorder %v362, 0
      %vm443 = vcmp.ne.s32.totalorder %v373, 0
      %vm444 = vcmp.ne.s32.totalorder %v384, 0
      %vm445 = vcmp.ne.s32.totalorder %v395, 0
      %vm446 = vcmp.ne.s32.totalorder %v406, 0
      %vm447 = vcmp.ne.s32.totalorder %v417, 0
      %vm448 = vcmp.ne.s32.totalorder %v428, 0
      %vm449 = vcmp.ne.s32.totalorder %v439, 0
      %vm450 = vcmp.lt.s32.totalorder %v340, 0
      %vm451 = vcmp.lt.s32.totalorder %v351, 0
      %vm452 = vcmp.lt.s32.totalorder %v362, 0
      %vm453 = vcmp.lt.s32.totalorder %v373, 0
      %vm454 = vcmp.lt.s32.totalorder %v384, 0
      %vm455 = vcmp.lt.s32.totalorder %v395, 0
      %vm456 = vcmp.lt.s32.totalorder %v406, 0
      %vm457 = vcmp.lt.s32.totalorder %v417, 0
      %vm458 = vcmp.lt.s32.totalorder %v428, 0
      %vm459 = vcmp.lt.s32.totalorder %v439, 0
      %vm460 = vmand %vm450, %vm440
      %vm461 = vmand %vm451, %vm441
      %vm462 = vmand %vm452, %vm442
      %vm463 = vmand %vm453, %vm443
      %vm464 = vmand %vm454, %vm444
      %vm465 = vmand %vm455, %vm445
      %vm466 = vmand %vm456, %vm446
      %vm467 = vmand %vm457, %vm447
      %vm468 = vmand %vm458, %vm448
      %vm469 = vmand %vm459, %vm449
      %v470 = vadd.s32 %v340, 10
      %v471 = vadd.s32 %v351, 10
      %v472 = vadd.s32 %v362, 10
      %v473 = vadd.s32 %v373, 10
      %v474 = vadd.s32 %v384, 10
      %v475 = vadd.s32 %v395, 10
      %v476 = vadd.s32 %v406, 10
      %v477 = vadd.s32 %v417, 10
      %v478 = vadd.s32 %v428, 10
      %v479 = vadd.s32 %v439, 10
      %v480 = vsel %vm460, %v470, %v340
      %v481 = vsel %vm461, %v471, %v351
      %v482 = vsel %vm462, %v472, %v362
      %v483 = vsel %vm463, %v473, %v373
      %v484 = vsel %vm464, %v474, %v384
      %v485 = vsel %vm465, %v475, %v395
      %v486 = vsel %vm466, %v476, %v406
      %v487 = vsel %vm467, %v477, %v417
      %v488 = vsel %vm468, %v478, %v428
      %v489 = vsel %vm469, %v479, %v439
      %vm490 = vcmp.ne.s32.totalorder %v480, 0
      %vm491 = vcmp.ne.s32.totalorder %v481, 0
      %vm492 = vcmp.ne.s32.totalorder %v482, 0
      %vm493 = vcmp.ne.s32.totalorder %v483, 0
      %vm494 = vcmp.ne.s32.totalorder %v484, 0
      %vm495 = vcmp.ne.s32.totalorder %v485, 0
      %vm496 = vcmp.ne.s32.totalorder %v486, 0
      %vm497 = vcmp.ne.s32.totalorder %v487, 0
      %vm498 = vcmp.ne.s32.totalorder %v488, 0
      %vm499 = vcmp.ne.s32.totalorder %v489, 0
      %vm500 = vcmp.ne.s32.totalorder %v480, 9
      %vm501 = vcmp.ne.s32.totalorder %v481, 9
      %vm502 = vcmp.ne.s32.totalorder %v482, 9
      %vm503 = vcmp.ne.s32.totalorder %v483, 9
      %vm504 = vcmp.ne.s32.totalorder %v484, 9
      %vm505 = vcmp.ne.s32.totalorder %v485, 9
      %vm506 = vcmp.ne.s32.totalorder %v486, 9
      %vm507 = vcmp.ne.s32.totalorder %v487, 9
      %vm508 = vcmp.ne.s32.totalorder %v488, 9
      %vm509 = vcmp.ne.s32.totalorder %v489, 9
      %vm510 = vmand %vm490, %vm500
      %vm511 = vmand %vm491, %vm501
      %vm512 = vmand %vm492, %vm502
      %vm513 = vmand %vm493, %vm503
      %vm514 = vmand %vm494, %vm504
      %vm515 = vmand %vm495, %vm505
      %vm516 = vmand %vm496, %vm506
      %vm517 = vmand %vm497, %vm507
      %vm518 = vmand %vm498, %vm508
      %vm519 = vmand %vm499, %vm509
      %vm520 = vcmask 261120
      %521 = vst.msk [vmem:[#allocation2] sm:$0xff] %vm520, 0.0
      %522 = vst.msk [vmem:[#allocation2 + $0x8] sm:$0xff] %vm520, 0.0
      %523 = vst.msk [vmem:[#allocation2 + $0x60] sm:$0xff] %vm520, 0.0
      %524 = vst.msk [vmem:[#allocation2 + $0x68] sm:$0xff] %vm520, 0.0
      %v525 = vld [vmem:[%s308 + $0x5] sm:$0xff]
      %v526 = vld [vmem:[%s308 + $0xd] sm:$0xff]
      %v527 = vld [vmem:[%s308 + $0x15] sm:$0xff]
      %v528 = vld [vmem:[%s308 + $0x1d] sm:$0xff]
      %v529 = vld [vmem:[%s308 + $0x25] sm:$0xff]
      %v530 = vld [vmem:[%s308 + $0x2d] sm:$0xff]
      %v531 = vld [vmem:[%s308 + $0x35] sm:$0xff]
      %v532 = vld [vmem:[%s308 + $0x3d] sm:$0xff]
      %v533 = vld [vmem:[%s308 + $0x45] sm:$0xff]
      %v534 = vld [vmem:[%s308 + $0x4d] sm:$0xff]
      %v535 = vld [vmem:[%s1] sm:$0xff]
      %v536 = vld [vmem:[%s1 + $0x8] sm:$0xff]
      %v537 = vld [vmem:[%s1 + $0x10] sm:$0xff]
      %v538 = vld [vmem:[%s1 + $0x18] sm:$0xff]
      %v539 = vld [vmem:[%s1 + $0x20] sm:$0xff]
      %v540 = vld [vmem:[%s1 + $0x28] sm:$0xff]
      %v541 = vld [vmem:[%s1 + $0x30] sm:$0xff]
      %v542 = vld [vmem:[%s1 + $0x38] sm:$0xff]
      %v543 = vld [vmem:[%s1 + $0x40] sm:$0xff]
      %v544 = vld [vmem:[%s1 + $0x48] sm:$0xff]
      %v545 = vld [vmem:[%s1 + $0x50] sm:$0xff]
      %v546 = vld [vmem:[%s1 + $0x58] sm:$0xff]
      %v547 = vld [vmem:[%s1 + $0x60] sm:$0xff]
      %v548 = vld [vmem:[%s1 + $0x68] sm:$0xff]
      %v549 = vld [vmem:[%s1 + $0x70] sm:$0xff]
      %v550 = vld [vmem:[%s1 + $0x78] sm:$0xff]
      %v551 = vld [vmem:[%s308 + $0x6] sm:$0xff]
      %v552 = vld [vmem:[%s308 + $0xe] sm:$0xff]
      %v553 = vld [vmem:[%s308 + $0x16] sm:$0xff]
      %v554 = vld [vmem:[%s308 + $0x1e] sm:$0xff]
      %v555 = vld [vmem:[%s308 + $0x26] sm:$0xff]
      %v556 = vld [vmem:[%s308 + $0x2e] sm:$0xff]
      %v557 = vld [vmem:[%s308 + $0x36] sm:$0xff]
      %v558 = vld [vmem:[%s308 + $0x3e] sm:$0xff]
      %v559 = vld [vmem:[%s308 + $0x46] sm:$0xff]
      %v560 = vld [vmem:[%s308 + $0x4e] sm:$0xff]
      %v561 = vld [vmem:[%s1 + $0x80] sm:$0xff]
      %v562 = vld [vmem:[%s1 + $0x88] sm:$0xff]
      %v563 = vld [vmem:[%s1 + $0x90] sm:$0xff]
      %v564 = vld [vmem:[%s1 + $0x98] sm:$0xff]
      %v565 = vld [vmem:[%s1 + $0xa0] sm:$0xff]
      %v566 = vld [vmem:[%s1 + $0xa8] sm:$0xff]
      %v567 = vld [vmem:[%s1 + $0xb0] sm:$0xff]
      %v568 = vld [vmem:[%s1 + $0xb8] sm:$0xff]
      %v569 = vld [vmem:[%s1 + $0xc0] sm:$0xff]
      %v570 = vld [vmem:[%s1 + $0xc8] sm:$0xff]
      %v571 = vld [vmem:[%s1 + $0xd0] sm:$0xff]
      %v572 = vld [vmem:[%s1 + $0xd8] sm:$0xff]
      %v573 = vld [vmem:[%s1 + $0xe0] sm:$0xff]
      %v574 = vld [vmem:[%s1 + $0xe8] sm:$0xff]
      %v575 = vld [vmem:[%s1 + $0xf0] sm:$0xff]
      %v576 = vld [vmem:[%s1 + $0xf8] sm:$0xff]
      %577 = vmatprep.subr.mxu0 0.0
      %578 = vmatpush1.msra.mxu0 %v576
      %579 = vmatprep.subr.mxu0 0.0
      %580 = vmatpush1.msra.mxu0 %v575
      %581 = vmatprep.subr.mxu0 0.0
      %582 = vmatpush1.msra.mxu0 %v574
      %583 = vmatprep.subr.mxu0 0.0
      %584 = vmatpush1.msra.mxu0 %v573
      %585 = vmatprep.subr.mxu0 0.0
      %586 = vmatpush1.msra.mxu0 %v572
      %587 = vmatprep.subr.mxu0 0.0
      %588 = vmatpush1.msra.mxu0 %v571
      %589 = vmatprep.subr.mxu0 0.0
      %590 = vmatpush1.msra.mxu0 %v570
      %591 = vmatprep.subr.mxu0 0.0
      %592 = vmatpush1.msra.mxu0 %v569
      %593 = vmatprep.subr.mxu0 0.0
      %594 = vmatpush1.msra.mxu0 %v568
      %595 = vmatprep.subr.mxu0 0.0
      %596 = vmatpush1.msra.mxu0 %v567
      %597 = vmatprep.subr.mxu0 0.0
      %598 = vmatpush1.msra.mxu0 %v566
      %599 = vmatprep.subr.mxu0 0.0
      %600 = vmatpush1.msra.mxu0 %v565
      %601 = vmatprep.subr.mxu0 0.0
      %602 = vmatpush1.msra.mxu0 %v564
      %603 = vmatprep.subr.mxu0 0.0
      %604 = vmatpush1.msra.mxu0 %v563
      %605 = vmatprep.subr.mxu0 0.0
      %606 = vmatpush1.msra.mxu0 %v562
      %607 = vmatprep.subr.mxu0 0.0
      %608 = vmatpush1.msra.mxu0 %v561
      %609 = vmatprep.subr.mxu0 0.0
      %610 = vmatpush2.msra.mxu0 0.0
      %611 = vmatprep.subr.mxu0 0.0
      %612 = vmatpush2.msra.mxu0 0.0
      %613 = vmatprep.subr.mxu0 0.0
      %614 = vmatpush2.msra.mxu0 0.0
      %615 = vmatprep.subr.mxu0 0.0
      %616 = vmatpush2.msra.mxu0 0.0
      %617 = vmatprep.subr.mxu0 0.0
      %618 = vmatpush2.msra.mxu0 0.0
      %619 = vmatprep.subr.mxu0 0.0
      %620 = vmatpush2.msra.mxu0 0.0
      %621 = vmatprep.subr.mxu0 0.0
      %622 = vmatpush2.msra.mxu0 0.0
      %623 = vmatprep.subr.mxu0 0.0
      %624 = vmatpush2.msra.mxu0 0.0
      %625 = vmatprep.subr.mxu0 0.0
      %626 = vmatpush2.msra.mxu0 0.0
      %627 = vmatprep.subr.mxu0 0.0
      %628 = vmatpush2.msra.mxu0 0.0
      %629 = vmatprep.subr.mxu0 0.0
      %630 = vmatpush2.msra.mxu0 0.0
      %631 = vmatprep.subr.mxu0 0.0
      %632 = vmatpush2.msra.mxu0 0.0
      %633 = vmatprep.subr.mxu0 0.0
      %634 = vmatpush2.msra.mxu0 0.0
      %635 = vmatprep.subr.mxu0 0.0
      %636 = vmatpush2.msra.mxu0 0.0
      %637 = vmatprep.subr.mxu0 0.0
      %638 = vmatpush2.msra.mxu0 0.0
      %639 = vmatprep.subr.mxu0 0.0
      %640 = vmatpush2.msra.mxu0 0.0
      %641 = vmatprep.mubr.f32.mxu0 0.0
      %642 = vmatmul.mubr.f32.gmra.mxu0 %v551
      %v643 = vpop.f32.mrf.mxu0
      %v644 = vadd.f32 0.0, %v643
      %v645 = vpop.f32.mrf.mxu0
      %646 = vmatprep.mubr.f32.mxu0 0.0
      %647 = vmatmul.mubr.f32.gmra.mxu0 %v552
      %v648 = vpop.f32.mrf.mxu0
      %v649 = vadd.f32 0.0, %v648
      %v650 = vpop.f32.mrf.mxu0
      %651 = vmatprep.mubr.f32.mxu0 0.0
      %652 = vmatmul.mubr.f32.gmra.mxu0 %v553
      %v653 = vpop.f32.mrf.mxu0
      %v654 = vadd.f32 0.0, %v653
      %v655 = vpop.f32.mrf.mxu0
      %656 = vmatprep.mubr.f32.mxu0 0.0
      %657 = vmatmul.mubr.f32.gmra.mxu0 %v554
      %v658 = vpop.f32.mrf.mxu0
      %v659 = vadd.f32 0.0, %v658
      %v660 = vpop.f32.mrf.mxu0
      %661 = vmatprep.mubr.f32.mxu0 0.0
      %662 = vmatmul.mubr.f32.gmra.mxu0 %v555
      %v663 = vpop.f32.mrf.mxu0
      %v664 = vadd.f32 0.0, %v663
      %v665 = vpop.f32.mrf.mxu0
      %666 = vmatprep.mubr.f32.mxu0 0.0
      %667 = vmatmul.mubr.f32.gmra.mxu0 %v556
      %v668 = vpop.f32.mrf.mxu0
      %v669 = vadd.f32 0.0, %v668
      %v670 = vpop.f32.mrf.mxu0
      %671 = vmatprep.mubr.f32.mxu0 0.0
      %672 = vmatmul.mubr.f32.gmra.mxu0 %v557
      %v673 = vpop.f32.mrf.mxu0
      %v674 = vadd.f32 0.0, %v673
      %v675 = vpop.f32.mrf.mxu0
      %676 = vmatprep.mubr.f32.mxu0 0.0
      %677 = vmatmul.mubr.f32.gmra.mxu0 %v558
      %v678 = vpop.f32.mrf.mxu0
      %v679 = vadd.f32 0.0, %v678
      %v680 = vpop.f32.mrf.mxu0
      %681 = vmatprep.mubr.f32.mxu0 0.0
      %682 = vmatmul.mubr.f32.gmra.mxu0 %v559
      %v683 = vpop.f32.mrf.mxu0
      %v684 = vadd.f32 0.0, %v683
      %v685 = vpop.f32.mrf.mxu0
      %686 = vmatprep.mubr.f32.mxu0 0.0
      %687 = vmatmul.mubr.f32.gmra.mxu0 %v560
      %v688 = vpop.f32.mrf.mxu0
      %v689 = vadd.f32 0.0, %v688
      %v690 = vpop.f32.mrf.mxu0
      %691 = vdwg.mxu0
      %692 = vmatprep.subr.mxu0 0.0
      %693 = vmatpush1.msra.mxu0 %v550
      %694 = vmatprep.subr.mxu0 0.0
      %695 = vmatpush1.msra.mxu0 %v549
      %696 = vmatprep.subr.mxu0 0.0
      %697 = vmatpush1.msra.mxu0 %v548
      %698 = vmatprep.subr.mxu0 0.0
      %699 = vmatpush1.msra.mxu0 %v547
      %700 = vmatprep.subr.mxu0 0.0
      %701 = vmatpush1.msra.mxu0 %v546
      %702 = vmatprep.subr.mxu0 0.0
      %703 = vmatpush1.msra.mxu0 %v545
      %704 = vmatprep.subr.mxu0 0.0
      %705 = vmatpush1.msra.mxu0 %v544
      %706 = vmatprep.subr.mxu0 0.0
      %707 = vmatpush1.msra.mxu0 %v543
      %708 = vmatprep.subr.mxu0 0.0
      %709 = vmatpush1.msra.mxu0 %v542
      %710 = vmatprep.subr.mxu0 0.0
      %711 = vmatpush1.msra.mxu0 %v541
      %712 = vmatprep.subr.mxu0 0.0
      %713 = vmatpush1.msra.mxu0 %v540
      %714 = vmatprep.subr.mxu0 0.0
      %715 = vmatpush1.msra.mxu0 %v539
      %716 = vmatprep.subr.mxu0 0.0
      %717 = vmatpush1.msra.mxu0 %v538
      %718 = vmatprep.subr.mxu0 0.0
      %719 = vmatpush1.msra.mxu0 %v537
      %720 = vmatprep.subr.mxu0 0.0
      %721 = vmatpush1.msra.mxu0 %v536
      %722 = vmatprep.subr.mxu0 0.0
      %723 = vmatpush1.msra.mxu0 %v535
      %724 = vmatprep.subr.mxu0 0.0
      %725 = vmatpush2.msra.mxu0 0.0
      %726 = vmatprep.subr.mxu0 0.0
      %727 = vmatpush2.msra.mxu0 0.0
      %728 = vmatprep.subr.mxu0 0.0
      %729 = vmatpush2.msra.mxu0 0.0
      %730 = vmatprep.subr.mxu0 0.0
      %731 = vmatpush2.msra.mxu0 0.0
      %732 = vmatprep.subr.mxu0 0.0
      %733 = vmatpush2.msra.mxu0 0.0
      %734 = vmatprep.subr.mxu0 0.0
      %735 = vmatpush2.msra.mxu0 0.0
      %736 = vmatprep.subr.mxu0 0.0
      %737 = vmatpush2.msra.mxu0 0.0
      %738 = vmatprep.subr.mxu0 0.0
      %739 = vmatpush2.msra.mxu0 0.0
      %740 = vmatprep.subr.mxu0 0.0
      %741 = vmatpush2.msra.mxu0 0.0
      %742 = vmatprep.subr.mxu0 0.0
      %743 = vmatpush2.msra.mxu0 0.0
      %744 = vmatprep.subr.mxu0 0.0
      %745 = vmatpush2.msra.mxu0 0.0
      %746 = vmatprep.subr.mxu0 0.0
      %747 = vmatpush2.msra.mxu0 0.0
      %748 = vmatprep.subr.mxu0 0.0
      %749 = vmatpush2.msra.mxu0 0.0
      %750 = vmatprep.subr.mxu0 0.0
      %751 = vmatpush2.msra.mxu0 0.0
      %752 = vmatprep.subr.mxu0 0.0
      %753 = vmatpush2.msra.mxu0 0.0
      %754 = vmatprep.subr.mxu0 0.0
      %755 = vmatpush2.msra.mxu0 0.0
      %756 = vmatprep.mubr.f32.mxu0 0.0
      %757 = vmatmul.mubr.f32.gmra.mxu0 %v525
      %v758 = vpop.f32.mrf.mxu0
      %v759 = vadd.f32 %v644, %v758
      %v760 = vpop.f32.mrf.mxu0
      %761 = vmatprep.mubr.f32.mxu0 0.0
      %762 = vmatmul.mubr.f32.gmra.mxu0 %v526
      %v763 = vpop.f32.mrf.mxu0
      %v764 = vadd.f32 %v649, %v763
      %v765 = vpop.f32.mrf.mxu0
      %766 = vmatprep.mubr.f32.mxu0 0.0
      %767 = vmatmul.mubr.f32.gmra.mxu0 %v527
      %v768 = vpop.f32.mrf.mxu0
      %v769 = vadd.f32 %v654, %v768
      %v770 = vpop.f32.mrf.mxu0
      %771 = vmatprep.mubr.f32.mxu0 0.0
      %772 = vmatmul.mubr.f32.gmra.mxu0 %v528
      %v773 = vpop.f32.mrf.mxu0
      %v774 = vadd.f32 %v659, %v773
      %v775 = vpop.f32.mrf.mxu0
      %776 = vmatprep.mubr.f32.mxu0 0.0
      %777 = vmatmul.mubr.f32.gmra.mxu0 %v529
      %v778 = vpop.f32.mrf.mxu0
      %v779 = vadd.f32 %v664, %v778
      %v780 = vpop.f32.mrf.mxu0
      %781 = vmatprep.mubr.f32.mxu0 0.0
      %782 = vmatmul.mubr.f32.gmra.mxu0 %v530
      %v783 = vpop.f32.mrf.mxu0
      %v784 = vadd.f32 %v669, %v783
      %v785 = vpop.f32.mrf.mxu0
      %786 = vmatprep.mubr.f32.mxu0 0.0
      %787 = vmatmul.mubr.f32.gmra.mxu0 %v531
      %v788 = vpop.f32.mrf.mxu0
      %v789 = vadd.f32 %v674, %v788
      %v790 = vpop.f32.mrf.mxu0
      %791 = vmatprep.mubr.f32.mxu0 0.0
      %792 = vmatmul.mubr.f32.gmra.mxu0 %v532
      %v793 = vpop.f32.mrf.mxu0
      %v794 = vadd.f32 %v679, %v793
      %v795 = vpop.f32.mrf.mxu0
      %796 = vmatprep.mubr.f32.mxu0 0.0
      %797 = vmatmul.mubr.f32.gmra.mxu0 %v533
      %v798 = vpop.f32.mrf.mxu0
      %v799 = vadd.f32 %v684, %v798
      %v800 = vpop.f32.mrf.mxu0
      %801 = vmatprep.mubr.f32.mxu0 0.0
      %802 = vmatmul.mubr.f32.gmra.mxu0 %v534
      %v803 = vpop.f32.mrf.mxu0
      %v804 = vadd.f32 %v689, %v803
      %v805 = vpop.f32.mrf.mxu0
      %806 = vdwg.mxu0
      %v807 = vld [vmem:[%s308 + $0xf] sm:$0xff]
      %v808 = vld [vmem:[%s308 + $0x17] sm:$0xff]
      %v809 = vld [vmem:[%s308 + $0x1f] sm:$0xff]
      %v810 = vld [vmem:[%s308 + $0x27] sm:$0xff]
      %v811 = vld [vmem:[%s308 + $0x2f] sm:$0xff]
      %v812 = vld [vmem:[%s308 + $0x37] sm:$0xff]
      %v813 = vld [vmem:[%s308 + $0x3f] sm:$0xff]
      %v814 = vld [vmem:[%s308 + $0x47] sm:$0xff]
      %v815 = vld [vmem:[%s308 + $0x4f] sm:$0xff]
      %v816 = vld [vmem:[%s308 + $0x57] sm:$0xff]
      %v817 = vld [vmem:[%s1 + $0x100] sm:$0xff]
      %v818 = vld [vmem:[%s1 + $0x108] sm:$0xff]
      %v819 = vld [vmem:[%s1 + $0x110] sm:$0xff]
      %v820 = vld [vmem:[%s1 + $0x118] sm:$0xff]
      %v821 = vld [vmem:[%s1 + $0x120] sm:$0xff]
      %v822 = vld [vmem:[%s1 + $0x128] sm:$0xff]
      %v823 = vld [vmem:[%s1 + $0x130] sm:$0xff]
      %v824 = vld [vmem:[%s1 + $0x138] sm:$0xff]
      %v825 = vld [vmem:[%s1 + $0x140] sm:$0xff]
      %v826 = vld [vmem:[%s1 + $0x148] sm:$0xff]
      %v827 = vld [vmem:[%s1 + $0x150] sm:$0xff]
      %v828 = vld [vmem:[%s1 + $0x158] sm:$0xff]
      %v829 = vld [vmem:[%s1 + $0x160] sm:$0xff]
      %v830 = vld [vmem:[%s1 + $0x168] sm:$0xff]
      %v831 = vld [vmem:[%s1 + $0x170] sm:$0xff]
      %v832 = vld [vmem:[%s1 + $0x178] sm:$0xff]
      %833 = vmatprep.subr.mxu0 0.0
      %834 = vmatpush1.msra.mxu0 %v832
      %835 = vmatprep.subr.mxu0 0.0
      %836 = vmatpush1.msra.mxu0 %v831
      %837 = vmatprep.subr.mxu0 0.0
      %838 = vmatpush1.msra.mxu0 %v830
      %839 = vmatprep.subr.mxu0 0.0
      %840 = vmatpush1.msra.mxu0 %v829
      %841 = vmatprep.subr.mxu0 0.0
      %842 = vmatpush1.msra.mxu0 %v828
      %843 = vmatprep.subr.mxu0 0.0
      %844 = vmatpush1.msra.mxu0 %v827
      %845 = vmatprep.subr.mxu0 0.0
      %846 = vmatpush1.msra.mxu0 %v826
      %847 = vmatprep.subr.mxu0 0.0
      %848 = vmatpush1.msra.mxu0 %v825
      %849 = vmatprep.subr.mxu0 0.0
      %850 = vmatpush1.msra.mxu0 %v824
      %851 = vmatprep.subr.mxu0 0.0
      %852 = vmatpush1.msra.mxu0 %v823
      %853 = vmatprep.subr.mxu0 0.0
      %854 = vmatpush1.msra.mxu0 %v822
      %855 = vmatprep.subr.mxu0 0.0
      %856 = vmatpush1.msra.mxu0 %v821
      %857 = vmatprep.subr.mxu0 0.0
      %858 = vmatpush1.msra.mxu0 %v820
      %859 = vmatprep.subr.mxu0 0.0
      %860 = vmatpush1.msra.mxu0 %v819
      %861 = vmatprep.subr.mxu0 0.0
      %862 = vmatpush1.msra.mxu0 %v818
      %863 = vmatprep.subr.mxu0 0.0
      %864 = vmatpush1.msra.mxu0 %v817
      %865 = vmatprep.subr.mxu0 0.0
      %866 = vmatpush2.msra.mxu0 0.0
      %867 = vmatprep.subr.mxu0 0.0
      %868 = vmatpush2.msra.mxu0 0.0
      %869 = vmatprep.subr.mxu0 0.0
      %870 = vmatpush2.msra.mxu0 0.0
      %871 = vmatprep.subr.mxu0 0.0
      %872 = vmatpush2.msra.mxu0 0.0
      %873 = vmatprep.subr.mxu0 0.0
      %874 = vmatpush2.msra.mxu0 0.0
      %875 = vmatprep.subr.mxu0 0.0
      %876 = vmatpush2.msra.mxu0 0.0
      %877 = vmatprep.subr.mxu0 0.0
      %878 = vmatpush2.msra.mxu0 0.0
      %879 = vmatprep.subr.mxu0 0.0
      %880 = vmatpush2.msra.mxu0 0.0
      %881 = vmatprep.subr.mxu0 0.0
      %882 = vmatpush2.msra.mxu0 0.0
      %883 = vmatprep.subr.mxu0 0.0
      %884 = vmatpush2.msra.mxu0 0.0
      %885 = vmatprep.subr.mxu0 0.0
      %886 = vmatpush2.msra.mxu0 0.0
      %887 = vmatprep.subr.mxu0 0.0
      %888 = vmatpush2.msra.mxu0 0.0
      %889 = vmatprep.subr.mxu0 0.0
      %890 = vmatpush2.msra.mxu0 0.0
      %891 = vmatprep.subr.mxu0 0.0
      %892 = vmatpush2.msra.mxu0 0.0
      %893 = vmatprep.subr.mxu0 0.0
      %894 = vmatpush2.msra.mxu0 0.0
      %895 = vmatprep.subr.mxu0 0.0
      %896 = vmatpush2.msra.mxu0 0.0
      %897 = vmatprep.mubr.f32.mxu0 0.0
      %898 = vmatmul.mubr.f32.gmra.mxu0 %v807
      %v899 = vpop.f32.mrf.mxu0
      %v900 = vadd.f32 0.0, %v899
      %v901 = vpop.f32.mrf.mxu0
      %902 = vmatprep.mubr.f32.mxu0 0.0
      %903 = vmatmul.mubr.f32.gmra.mxu0 %v808
      %v904 = vpop.f32.mrf.mxu0
      %v905 = vadd.f32 0.0, %v904
      %v906 = vpop.f32.mrf.mxu0
      %907 = vmatprep.mubr.f32.mxu0 0.0
      %908 = vmatmul.mubr.f32.gmra.mxu0 %v809
      %v909 = vpop.f32.mrf.mxu0
      %v910 = vadd.f32 0.0, %v909
      %v911 = vpop.f32.mrf.mxu0
      %912 = vmatprep.mubr.f32.mxu0 0.0
      %913 = vmatmul.mubr.f32.gmra.mxu0 %v810
      %v914 = vpop.f32.mrf.mxu0
      %v915 = vadd.f32 0.0, %v914
      %v916 = vpop.f32.mrf.mxu0
      %917 = vmatprep.mubr.f32.mxu0 0.0
      %918 = vmatmul.mubr.f32.gmra.mxu0 %v811
      %v919 = vpop.f32.mrf.mxu0
      %v920 = vadd.f32 0.0, %v919
      %v921 = vpop.f32.mrf.mxu0
      %922 = vmatprep.mubr.f32.mxu0 0.0
      %923 = vmatmul.mubr.f32.gmra.mxu0 %v812
      %v924 = vpop.f32.mrf.mxu0
      %v925 = vadd.f32 0.0, %v924
      %v926 = vpop.f32.mrf.mxu0
      %927 = vmatprep.mubr.f32.mxu0 0.0
      %928 = vmatmul.mubr.f32.gmra.mxu0 %v813
      %v929 = vpop.f32.mrf.mxu0
      %v930 = vadd.f32 0.0, %v929
      %v931 = vpop.f32.mrf.mxu0
      %932 = vmatprep.mubr.f32.mxu0 0.0
      %933 = vmatmul.mubr.f32.gmra.mxu0 %v814
      %v934 = vpop.f32.mrf.mxu0
      %v935 = vadd.f32 0.0, %v934
      %v936 = vpop.f32.mrf.mxu0
      %937 = vmatprep.mubr.f32.mxu0 0.0
      %938 = vmatmul.mubr.f32.gmra.mxu0 %v815
      %v939 = vpop.f32.mrf.mxu0
      %v940 = vadd.f32 0.0, %v939
      %v941 = vpop.f32.mrf.mxu0
      %942 = vmatprep.mubr.f32.mxu0 0.0
      %943 = vmatmul.mubr.f32.gmra.mxu0 %v816
      %v944 = vpop.f32.mrf.mxu0
      %v945 = vadd.f32 0.0, %v944
      %v946 = vpop.f32.mrf.mxu0
      %947 = vdwg.mxu0
      %v948 = vadd.f32 %v759, %v900
      %v949 = vadd.f32 %v764, %v905
      %v950 = vadd.f32 %v769, %v910
      %v951 = vadd.f32 %v774, %v915
      %v952 = vadd.f32 %v779, %v920
      %v953 = vadd.f32 %v784, %v925
      %v954 = vadd.f32 %v789, %v930
      %v955 = vadd.f32 %v794, %v935
      %v956 = vadd.f32 %v799, %v940
      %v957 = vadd.f32 %v804, %v945
      %v958 = vld [vmem:[%s308 + $0x10] sm:$0xff]
      %v959 = vld [vmem:[%s308 + $0x18] sm:$0xff]
      %v960 = vld [vmem:[%s308 + $0x20] sm:$0xff]
      %v961 = vld [vmem:[%s308 + $0x28] sm:$0xff]
      %v962 = vld [vmem:[%s308 + $0x30] sm:$0xff]
      %v963 = vld [vmem:[%s308 + $0x38] sm:$0xff]
      %v964 = vld [vmem:[%s308 + $0x40] sm:$0xff]
      %v965 = vld [vmem:[%s308 + $0x48] sm:$0xff]
      %v966 = vld [vmem:[%s308 + $0x50] sm:$0xff]
      %v967 = vld [vmem:[%s308 + $0x58] sm:$0xff]
      %v968 = vld [vmem:[%s1 + $0x180] sm:$0xff]
      %v969 = vld [vmem:[%s1 + $0x188] sm:$0xff]
      %v970 = vld [vmem:[%s1 + $0x190] sm:$0xff]
      %v971 = vld [vmem:[%s1 + $0x198] sm:$0xff]
      %v972 = vld [vmem:[%s1 + $0x1a0] sm:$0xff]
      %v973 = vld [vmem:[%s1 + $0x1a8] sm:$0xff]
      %v974 = vld [vmem:[%s1 + $0x1b0] sm:$0xff]
      %v975 = vld [vmem:[%s1 + $0x1b8] sm:$0xff]
      %v976 = vld [vmem:[%s1 + $0x1c0] sm:$0xff]
      %v977 = vld [vmem:[%s1 + $0x1c8] sm:$0xff]
      %v978 = vld [vmem:[%s1 + $0x1d0] sm:$0xff]
      %v979 = vld [vmem:[%s1 + $0x1d8] sm:$0xff]
      %v980 = vld [vmem:[%s1 + $0x1e0] sm:$0xff]
      %v981 = vld [vmem:[%s1 + $0x1e8] sm:$0xff]
      %v982 = vld [vmem:[%s1 + $0x1f0] sm:$0xff]
      %v983 = vld [vmem:[%s1 + $0x1f8] sm:$0xff]
      %984 = vmatprep.subr.mxu0 0.0
      %985 = vmatpush1.msra.mxu0 %v983
      %986 = vmatprep.subr.mxu0 0.0
      %987 = vmatpush1.msra.mxu0 %v982
      %988 = vmatprep.subr.mxu0 0.0
      %989 = vmatpush1.msra.mxu0 %v981
      %990 = vmatprep.subr.mxu0 0.0
      %991 = vmatpush1.msra.mxu0 %v980
      %992 = vmatprep.subr.mxu0 0.0
      %993 = vmatpush1.msra.mxu0 %v979
      %994 = vmatprep.subr.mxu0 0.0
      %995 = vmatpush1.msra.mxu0 %v978
      %996 = vmatprep.subr.mxu0 0.0
      %997 = vmatpush1.msra.mxu0 %v977
      %998 = vmatprep.subr.mxu0 0.0
      %999 = vmatpush1.msra.mxu0 %v976
      %1000 = vmatprep.subr.mxu0 0.0
      %1001 = vmatpush1.msra.mxu0 %v975
      %1002 = vmatprep.subr.mxu0 0.0
      %1003 = vmatpush1.msra.mxu0 %v974
      %1004 = vmatprep.subr.mxu0 0.0
      %1005 = vmatpush1.msra.mxu0 %v973
      %1006 = vmatprep.subr.mxu0 0.0
      %1007 = vmatpush1.msra.mxu0 %v972
      %1008 = vmatprep.subr.mxu0 0.0
      %1009 = vmatpush1.msra.mxu0 %v971
      %1010 = vmatprep.subr.mxu0 0.0
      %1011 = vmatpush1.msra.mxu0 %v970
      %1012 = vmatprep.subr.mxu0 0.0
      %1013 = vmatpush1.msra.mxu0 %v969
      %1014 = vmatprep.subr.mxu0 0.0
      %1015 = vmatpush1.msra.mxu0 %v968
      %1016 = vmatprep.subr.mxu0 0.0
      %1017 = vmatpush2.msra.mxu0 0.0
      %1018 = vmatprep.subr.mxu0 0.0
      %1019 = vmatpush2.msra.mxu0 0.0
      %1020 = vmatprep.subr.mxu0 0.0
      %1021 = vmatpush2.msra.mxu0 0.0
      %1022 = vmatprep.subr.mxu0 0.0
      %1023 = vmatpush2.msra.mxu0 0.0
      %1024 = vmatprep.subr.mxu0 0.0
      %1025 = vmatpush2.msra.mxu0 0.0
      %1026 = vmatprep.subr.mxu0 0.0
      %1027 = vmatpush2.msra.mxu0 0.0
      %1028 = vmatprep.subr.mxu0 0.0
      %1029 = vmatpush2.msra.mxu0 0.0
      %1030 = vmatprep.subr.mxu0 0.0
      %1031 = vmatpush2.msra.mxu0 0.0
      %1032 = vmatprep.subr.mxu0 0.0
      %1033 = vmatpush2.msra.mxu0 0.0
      %1034 = vmatprep.subr.mxu0 0.0
      %1035 = vmatpush2.msra.mxu0 0.0
      %1036 = vmatprep.subr.mxu0 0.0
      %1037 = vmatpush2.msra.mxu0 0.0
      %1038 = vmatprep.subr.mxu0 0.0
      %1039 = vmatpush2.msra.mxu0 0.0
      %1040 = vmatprep.subr.mxu0 0.0
      %1041 = vmatpush2.msra.mxu0 0.0
      %1042 = vmatprep.subr.mxu0 0.0
      %1043 = vmatpush2.msra.mxu0 0.0
      %1044 = vmatprep.subr.mxu0 0.0
      %1045 = vmatpush2.msra.mxu0 0.0
      %1046 = vmatprep.subr.mxu0 0.0
      %1047 = vmatpush2.msra.mxu0 0.0
      %1048 = vmatprep.mubr.f32.mxu0 0.0
      %1049 = vmatmul.mubr.f32.gmra.mxu0 %v958
      %v1050 = vpop.f32.mrf.mxu0
      %v1051 = vadd.f32 0.0, %v1050
      %v1052 = vpop.f32.mrf.mxu0
      %1053 = vmatprep.mubr.f32.mxu0 0.0
      %1054 = vmatmul.mubr.f32.gmra.mxu0 %v959
      %v1055 = vpop.f32.mrf.mxu0
      %v1056 = vadd.f32 0.0, %v1055
      %v1057 = vpop.f32.mrf.mxu0
      %1058 = vmatprep.mubr.f32.mxu0 0.0
      %1059 = vmatmul.mubr.f32.gmra.mxu0 %v960
      %v1060 = vpop.f32.mrf.mxu0
      %v1061 = vadd.f32 0.0, %v1060
      %v1062 = vpop.f32.mrf.mxu0
      %1063 = vmatprep.mubr.f32.mxu0 0.0
      %1064 = vmatmul.mubr.f32.gmra.mxu0 %v961
      %v1065 = vpop.f32.mrf.mxu0
      %v1066 = vadd.f32 0.0, %v1065
      %v1067 = vpop.f32.mrf.mxu0
      %1068 = vmatprep.mubr.f32.mxu0 0.0
      %1069 = vmatmul.mubr.f32.gmra.mxu0 %v962
      %v1070 = vpop.f32.mrf.mxu0
      %v1071 = vadd.f32 0.0, %v1070
      %v1072 = vpop.f32.mrf.mxu0
      %1073 = vmatprep.mubr.f32.mxu0 0.0
      %1074 = vmatmul.mubr.f32.gmra.mxu0 %v963
      %v1075 = vpop.f32.mrf.mxu0
      %v1076 = vadd.f32 0.0, %v1075
      %v1077 = vpop.f32.mrf.mxu0
      %1078 = vmatprep.mubr.f32.mxu0 0.0
      %1079 = vmatmul.mubr.f32.gmra.mxu0 %v964
      %v1080 = vpop.f32.mrf.mxu0
      %v1081 = vadd.f32 0.0, %v1080
      %v1082 = vpop.f32.mrf.mxu0
      %1083 = vmatprep.mubr.f32.mxu0 0.0
      %1084 = vmatmul.mubr.f32.gmra.mxu0 %v965
      %v1085 = vpop.f32.mrf.mxu0
      %v1086 = vadd.f32 0.0, %v1085
      %v1087 = vpop.f32.mrf.mxu0
      %1088 = vmatprep.mubr.f32.mxu0 0.0
      %1089 = vmatmul.mubr.f32.gmra.mxu0 %v966
      %v1090 = vpop.f32.mrf.mxu0
      %v1091 = vadd.f32 0.0, %v1090
      %v1092 = vpop.f32.mrf.mxu0
      %1093 = vmatprep.mubr.f32.mxu0 0.0
      %1094 = vmatmul.mubr.f32.gmra.mxu0 %v967
      %v1095 = vpop.f32.mrf.mxu0
      %v1096 = vadd.f32 0.0, %v1095
      %v1097 = vpop.f32.mrf.mxu0
      %1098 = vdwg.mxu0
      %v1099 = vadd.f32 %v948, %v1051
      %v1100 = vadd.f32 %v949, %v1056
      %v1101 = vadd.f32 %v950, %v1061
      %v1102 = vadd.f32 %v951, %v1066
      %v1103 = vadd.f32 %v952, %v1071
      %v1104 = vadd.f32 %v953, %v1076
      %v1105 = vadd.f32 %v954, %v1081
      %v1106 = vadd.f32 %v955, %v1086
      %v1107 = vadd.f32 %v956, %v1091
      %v1108 = vadd.f32 %v957, %v1096
      %v1109 = vld [vmem:[%s2] sm:$0x1]
      %v1111 = vlaneseq
      %v1112 = vshrl.u32 %v1111, 7
      %v1113 = vsub.s32 0, %v1112
      %v1114 = vrot.slane %v1109, %v1113
      %v1116 = vadd.f32 %v1099, %v1114
      %v1117 = vadd.f32 %v1100, %v1114
      %v1118 = vadd.f32 %v1101, %v1114
      %v1119 = vadd.f32 %v1102, %v1114
      %v1120 = vadd.f32 %v1103, %v1114
      %v1121 = vadd.f32 %v1104, %v1114
      %v1122 = vadd.f32 %v1105, %v1114
      %v1123 = vadd.f32 %v1106, %v1114
      %v1124 = vadd.f32 %v1107, %v1114
      %v1125 = vadd.f32 %v1108, %v1114
      %v1126 = vmax.f32 %v1116, 0.0
      %v1127 = vmax.f32 %v1117, 0.0
      %v1128 = vmax.f32 %v1118, 0.0
      %v1129 = vmax.f32 %v1119, 0.0
      %v1130 = vmax.f32 %v1120, 0.0
      %v1131 = vmax.f32 %v1121, 0.0
      %v1132 = vmax.f32 %v1122, 0.0
      %v1133 = vmax.f32 %v1123, 0.0
      %v1134 = vmax.f32 %v1124, 0.0
      %v1135 = vmax.f32 %v1125, 0.0
      %v1136 = vsel %vm510, 1, 0
      %v1137 = vsel %vm511, 1, 0
      %v1138 = vsel %vm512, 1, 0
      %v1139 = vsel %vm513, 1, 0
      %v1140 = vsel %vm514, 1, 0
      %v1141 = vsel %vm515, 1, 0
      %v1142 = vsel %vm516, 1, 0
      %v1143 = vsel %vm517, 1, 0
      %v1144 = vsel %vm518, 1, 0
      %v1145 = vsel %vm519, 1, 0
      %vm1146 = vcmp.eq.s32.totalorder %v1136, 1
      %vm1147 = vcmp.eq.s32.totalorder %v1137, 1
      %vm1148 = vcmp.eq.s32.totalorder %v1138, 1
      %vm1149 = vcmp.eq.s32.totalorder %v1139, 1
      %vm1150 = vcmp.eq.s32.totalorder %v1140, 1
      %vm1151 = vcmp.eq.s32.totalorder %v1141, 1
      %vm1152 = vcmp.eq.s32.totalorder %v1142, 1
      %vm1153 = vcmp.eq.s32.totalorder %v1143, 1
      %vm1154 = vcmp.eq.s32.totalorder %v1144, 1
      %vm1155 = vcmp.eq.s32.totalorder %v1145, 1
      %v1156 = vsel %vm1146, %v1126, 0.0
      %v1157 = vsel %vm1147, %v1127, 0.0
      %v1158 = vsel %vm1148, %v1128, 0.0
      %v1159 = vsel %vm1149, %v1129, 0.0
      %v1160 = vsel %vm1150, %v1130, 0.0
      %v1161 = vsel %vm1151, %v1131, 0.0
      %v1162 = vsel %vm1152, %v1132, 0.0
      %v1163 = vsel %vm1153, %v1133, 0.0
      %v1164 = vsel %vm1154, %v1134, 0.0
      %v1165 = vsel %vm1155, %v1135, 0.0
      %1166 = vst.msk [vmem:[#allocation2 + $0x10] sm:$0xff] %vm520, %v1156
      %1167 = vst.msk [vmem:[#allocation2 + $0x18] sm:$0xff] %vm520, %v1157
      %1168 = vst.msk [vmem:[#allocation2 + $0x20] sm:$0xff] %vm520, %v1158
      %1169 = vst.msk [vmem:[#allocation2 + $0x28] sm:$0xff] %vm520, %v1159
      %1170 = vst.msk [vmem:[#allocation2 + $0x30] sm:$0xff] %vm520, %v1160
      %1171 = vst.msk [vmem:[#allocation2 + $0x38] sm:$0xff] %vm520, %v1161
      %1172 = vst.msk [vmem:[#allocation2 + $0x40] sm:$0xff] %vm520, %v1162
      %1173 = vst.msk [vmem:[#allocation2 + $0x48] sm:$0xff] %vm520, %v1163
      %1174 = vst.msk [vmem:[#allocation2 + $0x50] sm:$0xff] %vm520, %v1164
      %1175 = vst.msk [vmem:[#allocation2 + $0x58] sm:$0xff] %vm520, %v1165
      %v1176 = vld [vmem:[#allocation2 + $0x5] sm:$0xff]
      %v1177 = vld [vmem:[#allocation2 + $0xd] sm:$0xff]
      %v1178 = vld [vmem:[#allocation2 + $0x15] sm:$0xff]
      %v1179 = vld [vmem:[#allocation2 + $0x1d] sm:$0xff]
      %v1180 = vld [vmem:[#allocation2 + $0x25] sm:$0xff]
      %v1181 = vld [vmem:[#allocation2 + $0x2d] sm:$0xff]
      %v1182 = vld [vmem:[#allocation2 + $0x35] sm:$0xff]
      %v1183 = vld [vmem:[#allocation2 + $0x3d] sm:$0xff]
      %v1184 = vld [vmem:[#allocation2 + $0x45] sm:$0xff]
      %v1185 = vld [vmem:[#allocation2 + $0x4d] sm:$0xff]
      %v1186 = vld [vmem:[#allocation2 + $0x6] sm:$0xff]
      %v1187 = vld [vmem:[#allocation2 + $0xe] sm:$0xff]
      %v1188 = vld [vmem:[#allocation2 + $0x16] sm:$0xff]
      %v1189 = vld [vmem:[#allocation2 + $0x1e] sm:$0xff]
      %v1190 = vld [vmem:[#allocation2 + $0x26] sm:$0xff]
      %v1191 = vld [vmem:[#allocation2 + $0x2e] sm:$0xff]
      %v1192 = vld [vmem:[#allocation2 + $0x36] sm:$0xff]
      %v1193 = vld [vmem:[#allocation2 + $0x3e] sm:$0xff]
      %v1194 = vld [vmem:[#allocation2 + $0x46] sm:$0xff]
      %v1195 = vld [vmem:[#allocation2 + $0x4e] sm:$0xff]
      %v1196 = vld [vmem:[#allocation2 + $0x7] sm:$0xff]
      %v1197 = vld [vmem:[#allocation2 + $0xf] sm:$0xff]
      %v1198 = vld [vmem:[#allocation2 + $0x17] sm:$0xff]
      %v1199 = vld [vmem:[#allocation2 + $0x1f] sm:$0xff]
      %v1200 = vld [vmem:[#allocation2 + $0x27] sm:$0xff]
      %v1201 = vld [vmem:[#allocation2 + $0x2f] sm:$0xff]
      %v1202 = vld [vmem:[#allocation2 + $0x37] sm:$0xff]
      %v1203 = vld [vmem:[#allocation2 + $0x3f] sm:$0xff]
      %v1204 = vld [vmem:[#allocation2 + $0x47] sm:$0xff]
      %v1205 = vld [vmem:[#allocation2 + $0x4f] sm:$0xff]
      %v1206 = vld [vmem:[#allocation2 + $0x57] sm:$0xff]
      %v1207 = vld [vmem:[#allocation2 + $0x10] sm:$0xff]
      %v1208 = vld [vmem:[#allocation2 + $0x18] sm:$0xff]
      %v1209 = vld [vmem:[#allocation2 + $0x20] sm:$0xff]
      %v1210 = vld [vmem:[#allocation2 + $0x28] sm:$0xff]
      %v1211 = vld [vmem:[#allocation2 + $0x30] sm:$0xff]
      %v1212 = vld [vmem:[#allocation2 + $0x38] sm:$0xff]
      %v1213 = vld [vmem:[#allocation2 + $0x40] sm:$0xff]
      %v1214 = vld [vmem:[#allocation2 + $0x48] sm:$0xff]
      %v1215 = vld [vmem:[#allocation2 + $0x50] sm:$0xff]
      %v1216 = vld [vmem:[#allocation2 + $0x58] sm:$0xff]
      %v1217 = vld [vmem:[#allocation2 + $0x11] sm:$0xff]
      %v1218 = vld [vmem:[#allocation2 + $0x19] sm:$0xff]
      %v1219 = vld [vmem:[#allocation2 + $0x21] sm:$0xff]
      %v1220 = vld [vmem:[#allocation2 + $0x29] sm:$0xff]
      %v1221 = vld [vmem:[#allocation2 + $0x31] sm:$0xff]
      %v1222 = vld [vmem:[#allocation2 + $0x39] sm:$0xff]
      %v1223 = vld [vmem:[#allocation2 + $0x41] sm:$0xff]
      %v1224 = vld [vmem:[#allocation2 + $0x49] sm:$0xff]
      %v1225 = vld [vmem:[#allocation2 + $0x51] sm:$0xff]
      %v1226 = vld [vmem:[#allocation2 + $0x59] sm:$0xff]
      %v1227 = vld [vmem:[#allocation2 + $0x61] sm:$0xff]
      %v1228 = vld [vmem:[#allocation2 + $0x1a] sm:$0xff]
      %v1229 = vld [vmem:[#allocation2 + $0x22] sm:$0xff]
      %v1230 = vld [vmem:[#allocation2 + $0x2a] sm:$0xff]
      %v1231 = vld [vmem:[#allocation2 + $0x32] sm:$0xff]
      %v1232 = vld [vmem:[#allocation2 + $0x3a] sm:$0xff]
      %v1233 = vld [vmem:[#allocation2 + $0x42] sm:$0xff]
      %v1234 = vld [vmem:[#allocation2 + $0x4a] sm:$0xff]
      %v1235 = vld [vmem:[#allocation2 + $0x52] sm:$0xff]
      %v1236 = vld [vmem:[#allocation2 + $0x5a] sm:$0xff]
      %v1237 = vld [vmem:[#allocation2 + $0x62] sm:$0xff]
      %v1238 = vld [vmem:[#allocation2 + $0x1b] sm:$0xff]
      %v1239 = vld [vmem:[#allocation2 + $0x23] sm:$0xff]
      %v1240 = vld [vmem:[#allocation2 + $0x2b] sm:$0xff]
      %v1241 = vld [vmem:[#allocation2 + $0x33] sm:$0xff]
      %v1242 = vld [vmem:[#allocation2 + $0x3b] sm:$0xff]
      %v1243 = vld [vmem:[#allocation2 + $0x43] sm:$0xff]
      %v1244 = vld [vmem:[#allocation2 + $0x4b] sm:$0xff]
      %v1245 = vld [vmem:[#allocation2 + $0x53] sm:$0xff]
      %v1246 = vld [vmem:[#allocation2 + $0x5b] sm:$0xff]
      %v1247 = vld [vmem:[#allocation2 + $0x63] sm:$0xff]
      %1258 = vrot.lane.b32.xlu0 %v1186, 32
      %v1259 = vpop.permute.xlu0 %1258
      %1260 = vrot.lane.b32.xlu0 %v1187, 32
      %v1261 = vpop.permute.xlu0 %1260
      %1262 = vrot.lane.b32.xlu0 %v1188, 32
      %v1263 = vpop.permute.xlu0 %1262
      %1264 = vrot.lane.b32.xlu0 %v1189, 32
      %v1265 = vpop.permute.xlu0 %1264
      %1266 = vrot.lane.b32.xlu0 %v1190, 32
      %v1267 = vpop.permute.xlu0 %1266
      %1268 = vrot.lane.b32.xlu0 %v1191, 32
      %v1269 = vpop.permute.xlu0 %1268
      %1270 = vrot.lane.b32.xlu0 %v1192, 32
      %v1271 = vpop.permute.xlu0 %1270
      %1272 = vrot.lane.b32.xlu0 %v1193, 32
      %v1273 = vpop.permute.xlu0 %1272
      %1274 = vrot.lane.b32.xlu0 %v1194, 32
      %v1275 = vpop.permute.xlu0 %1274
      %1276 = vrot.lane.b32.xlu0 %v1195, 32
      %v1277 = vpop.permute.xlu0 %1276
      %1298 = vrot.lane.b32.xlu0 %v1196, 64
      %v1299 = vpop.permute.xlu0 %1298
      %1300 = vrot.lane.b32.xlu0 %v1197, 64
      %v1301 = vpop.permute.xlu0 %1300
      %1302 = vrot.lane.b32.xlu0 %v1198, 64
      %v1303 = vpop.permute.xlu0 %1302
      %1304 = vrot.lane.b32.xlu0 %v1199, 64
      %v1305 = vpop.permute.xlu0 %1304
      %1306 = vrot.lane.b32.xlu0 %v1200, 64
      %v1307 = vpop.permute.xlu0 %1306
      %1308 = vrot.lane.b32.xlu0 %v1201, 64
      %v1309 = vpop.permute.xlu0 %1308
      %1310 = vrot.lane.b32.xlu0 %v1202, 64
      %v1311 = vpop.permute.xlu0 %1310
      %1312 = vrot.lane.b32.xlu0 %v1203, 64
      %v1313 = vpop.permute.xlu0 %1312
      %1314 = vrot.lane.b32.xlu0 %v1204, 64
      %v1315 = vpop.permute.xlu0 %1314
      %1316 = vrot.lane.b32.xlu0 %v1205, 64
      %v1317 = vpop.permute.xlu0 %1316
      %1329 = vrot.lane.b32.xlu0 %v1197, 96
      %v1330 = vpop.permute.xlu0 %1329
      %1331 = vrot.lane.b32.xlu0 %v1198, 96
      %v1332 = vpop.permute.xlu0 %1331
      %1333 = vrot.lane.b32.xlu0 %v1199, 96
      %v1334 = vpop.permute.xlu0 %1333
      %1335 = vrot.lane.b32.xlu0 %v1200, 96
      %v1336 = vpop.permute.xlu0 %1335
      %1337 = vrot.lane.b32.xlu0 %v1201, 96
      %v1338 = vpop.permute.xlu0 %1337
      %1339 = vrot.lane.b32.xlu0 %v1202, 96
      %v1340 = vpop.permute.xlu0 %1339
      %1341 = vrot.lane.b32.xlu0 %v1203, 96
      %v1342 = vpop.permute.xlu0 %1341
      %1343 = vrot.lane.b32.xlu0 %v1204, 96
      %v1344 = vpop.permute.xlu0 %1343
      %1345 = vrot.lane.b32.xlu0 %v1205, 96
      %v1346 = vpop.permute.xlu0 %1345
      %1347 = vrot.lane.b32.xlu0 %v1206, 96
      %v1348 = vpop.permute.xlu0 %1347
      %1369 = vrot.lane.b32.xlu0 %v1217, 32
      %v1370 = vpop.permute.xlu0 %1369
      %1371 = vrot.lane.b32.xlu0 %v1218, 32
      %v1372 = vpop.permute.xlu0 %1371
      %1373 = vrot.lane.b32.xlu0 %v1219, 32
      %v1374 = vpop.permute.xlu0 %1373
      %1375 = vrot.lane.b32.xlu0 %v1220, 32
      %v1376 = vpop.permute.xlu0 %1375
      %1377 = vrot.lane.b32.xlu0 %v1221, 32
      %v1378 = vpop.permute.xlu0 %1377
      %1379 = vrot.lane.b32.xlu0 %v1222, 32
      %v1380 = vpop.permute.xlu0 %1379
      %1381 = vrot.lane.b32.xlu0 %v1223, 32
      %v1382 = vpop.permute.xlu0 %1381
      %1383 = vrot.lane.b32.xlu0 %v1224, 32
      %v1384 = vpop.permute.xlu0 %1383
      %1385 = vrot.lane.b32.xlu0 %v1225, 32
      %v1386 = vpop.permute.xlu0 %1385
      %1387 = vrot.lane.b32.xlu0 %v1226, 32
      %v1388 = vpop.permute.xlu0 %1387
      %1400 = vrot.lane.b32.xlu0 %v1218, 64
      %v1401 = vpop.permute.xlu0 %1400
      %1402 = vrot.lane.b32.xlu0 %v1219, 64
      %v1403 = vpop.permute.xlu0 %1402
      %1404 = vrot.lane.b32.xlu0 %v1220, 64
      %v1405 = vpop.permute.xlu0 %1404
      %1406 = vrot.lane.b32.xlu0 %v1221, 64
      %v1407 = vpop.permute.xlu0 %1406
      %1408 = vrot.lane.b32.xlu0 %v1222, 64
      %v1409 = vpop.permute.xlu0 %1408
      %1410 = vrot.lane.b32.xlu0 %v1223, 64
      %v1411 = vpop.permute.xlu0 %1410
      %1412 = vrot.lane.b32.xlu0 %v1224, 64
      %v1413 = vpop.permute.xlu0 %1412
      %1414 = vrot.lane.b32.xlu0 %v1225, 64
      %v1415 = vpop.permute.xlu0 %1414
      %1416 = vrot.lane.b32.xlu0 %v1226, 64
      %v1417 = vpop.permute.xlu0 %1416
      %1418 = vrot.lane.b32.xlu0 %v1227, 64
      %v1419 = vpop.permute.xlu0 %1418
      %1440 = vrot.lane.b32.xlu0 %v1228, 96
      %v1441 = vpop.permute.xlu0 %1440
      %1442 = vrot.lane.b32.xlu0 %v1229, 96
      %v1443 = vpop.permute.xlu0 %1442
      %1444 = vrot.lane.b32.xlu0 %v1230, 96
      %v1445 = vpop.permute.xlu0 %1444
      %1446 = vrot.lane.b32.xlu0 %v1231, 96
      %v1447 = vpop.permute.xlu0 %1446
      %1448 = vrot.lane.b32.xlu0 %v1232, 96
      %v1449 = vpop.permute.xlu0 %1448
      %1450 = vrot.lane.b32.xlu0 %v1233, 96
      %v1451 = vpop.permute.xlu0 %1450
      %1452 = vrot.lane.b32.xlu0 %v1234, 96
      %v1453 = vpop.permute.xlu0 %1452
      %1454 = vrot.lane.b32.xlu0 %v1235, 96
      %v1455 = vpop.permute.xlu0 %1454
      %1456 = vrot.lane.b32.xlu0 %v1236, 96
      %v1457 = vpop.permute.xlu0 %1456
      %1458 = vrot.lane.b32.xlu0 %v1237, 96
      %v1459 = vpop.permute.xlu0 %1458
      %v1470 = vsel %vm520, %v1176, %v1259
      %v1471 = vsel %vm520, %v1177, %v1261
      %v1472 = vsel %vm520, %v1178, %v1263
      %v1473 = vsel %vm520, %v1179, %v1265
      %v1474 = vsel %vm520, %v1180, %v1267
      %v1475 = vsel %vm520, %v1181, %v1269
      %v1476 = vsel %vm520, %v1182, %v1271
      %v1477 = vsel %vm520, %v1183, %v1273
      %v1478 = vsel %vm520, %v1184, %v1275
      %v1479 = vsel %vm520, %v1185, %v1277
      %vm1480 = vcmask 523264
      %v1481 = vsel %vm1480, %v1470, %v1299
      %v1482 = vsel %vm1480, %v1471, %v1301
      %v1483 = vsel %vm1480, %v1472, %v1303
      %v1484 = vsel %vm1480, %v1473, %v1305
      %v1485 = vsel %vm1480, %v1474, %v1307
      %v1486 = vsel %vm1480, %v1475, %v1309
      %v1487 = vsel %vm1480, %v1476, %v1311
      %v1488 = vsel %vm1480, %v1477, %v1313
      %v1489 = vsel %vm1480, %v1478, %v1315
      %v1490 = vsel %vm1480, %v1479, %v1317
      %vm1491 = vcmask 785408
      %v1492 = vsel %vm1491, %v1481, %v1330
      %v1493 = vsel %vm1491, %v1482, %v1332
      %v1494 = vsel %vm1491, %v1483, %v1334
      %v1495 = vsel %vm1491, %v1484, %v1336
      %v1496 = vsel %vm1491, %v1485, %v1338
      %v1497 = vsel %vm1491, %v1486, %v1340
      %v1498 = vsel %vm1491, %v1487, %v1342
      %v1499 = vsel %vm1491, %v1488, %v1344
      %v1500 = vsel %vm1491, %v1489, %v1346
      %v1501 = vsel %vm1491, %v1490, %v1348
      %v1502 = vsel %vm520, %v1207, %v1370
      %v1503 = vsel %vm520, %v1208, %v1372
      %v1504 = vsel %vm520, %v1209, %v1374
      %v1505 = vsel %vm520, %v1210, %v1376
      %v1506 = vsel %vm520, %v1211, %v1378
      %v1507 = vsel %vm520, %v1212, %v1380
      %v1508 = vsel %vm520, %v1213, %v1382
      %v1509 = vsel %vm520, %v1214, %v1384
      %v1510 = vsel %vm520, %v1215, %v1386
      %v1511 = vsel %vm520, %v1216, %v1388
      %v1512 = vsel %vm1480, %v1502, %v1401
      %v1513 = vsel %vm1480, %v1503, %v1403
      %v1514 = vsel %vm1480, %v1504, %v1405
      %v1515 = vsel %vm1480, %v1505, %v1407
      %v1516 = vsel %vm1480, %v1506, %v1409
      %v1517 = vsel %vm1480, %v1507, %v1411
      %v1518 = vsel %vm1480, %v1508, %v1413
      %v1519 = vsel %vm1480, %v1509, %v1415
      %v1520 = vsel %vm1480, %v1510, %v1417
      %v1521 = vsel %vm1480, %v1511, %v1419
      %v1522 = vsel %vm1491, %v1512, %v1441
      %v1523 = vsel %vm1491, %v1513, %v1443
      %v1524 = vsel %vm1491, %v1514, %v1445
      %v1525 = vsel %vm1491, %v1515, %v1447
      %v1526 = vsel %vm1491, %v1516, %v1449
      %v1527 = vsel %vm1491, %v1517, %v1451
      %v1528 = vsel %vm1491, %v1518, %v1453
      %v1529 = vsel %vm1491, %v1519, %v1455
      %v1530 = vsel %vm1491, %v1520, %v1457
      %v1531 = vsel %vm1491, %v1521, %v1459
      %v1532 = vld [vmem:[%s3] sm:$0xff]
      %v1533 = vld [vmem:[%s3 + $0x8] sm:$0xff]
      %v1534 = vld [vmem:[%s3 + $0x10] sm:$0xff]
      %v1535 = vld [vmem:[%s3 + $0x18] sm:$0xff]
      %v1536 = vld [vmem:[%s3 + $0x20] sm:$0xff]
      %v1537 = vld [vmem:[%s3 + $0x28] sm:$0xff]
      %v1538 = vld [vmem:[%s3 + $0x30] sm:$0xff]
      %v1539 = vld [vmem:[%s3 + $0x38] sm:$0xff]
      %v1540 = vld [vmem:[%s3 + $0x40] sm:$0xff]
      %v1541 = vld [vmem:[%s3 + $0x48] sm:$0xff]
      %v1542 = vld [vmem:[%s3 + $0x50] sm:$0xff]
      %v1543 = vld [vmem:[%s3 + $0x58] sm:$0xff]
      %v1544 = vld [vmem:[%s3 + $0x60] sm:$0xff]
      %v1545 = vld [vmem:[%s3 + $0x68] sm:$0xff]
      %v1546 = vld [vmem:[%s3 + $0x70] sm:$0xff]
      %v1547 = vld [vmem:[%s3 + $0x78] sm:$0xff]
      %v1548 = vld [vmem:[%s3 + $0x80] sm:$0xff]
      %v1549 = vld [vmem:[%s3 + $0x88] sm:$0xff]
      %v1550 = vld [vmem:[%s3 + $0x90] sm:$0xff]
      %v1551 = vld [vmem:[%s3 + $0x98] sm:$0xff]
      %v1552 = vld [vmem:[%s3 + $0xa0] sm:$0xff]
      %v1553 = vld [vmem:[%s3 + $0xa8] sm:$0xff]
      %v1554 = vld [vmem:[%s3 + $0xb0] sm:$0xff]
      %v1555 = vld [vmem:[%s3 + $0xb8] sm:$0xff]
      %v1556 = vld [vmem:[%s3 + $0xc0] sm:$0xff]
      %v1557 = vld [vmem:[%s3 + $0xc8] sm:$0xff]
      %v1558 = vld [vmem:[%s3 + $0xd0] sm:$0xff]
      %v1559 = vld [vmem:[%s3 + $0xd8] sm:$0xff]
      %v1560 = vld [vmem:[%s3 + $0xe0] sm:$0xff]
      %v1561 = vld [vmem:[%s3 + $0xe8] sm:$0xff]
      %v1562 = vld [vmem:[%s3 + $0xf0] sm:$0xff]
      %v1563 = vld [vmem:[%s3 + $0xf8] sm:$0xff]
      %v1564 = vld [vmem:[%s3 + $0x100] sm:$0xff]
      %v1565 = vld [vmem:[%s3 + $0x108] sm:$0xff]
      %v1566 = vld [vmem:[%s3 + $0x110] sm:$0xff]
      %v1567 = vld [vmem:[%s3 + $0x118] sm:$0xff]
      %v1568 = vld [vmem:[%s4] sm:$0x1]
      %v1570 = vlaneseq
      %v1571 = vshrl.u32 %v1570, 7
      %v1572 = vsub.s32 0, %v1571
      %v1573 = vrot.slane %v1568, %v1572
      %v1576 = vsel %vm520, %v1238, 0
      %v1579 = vsel %vm520, %v1239, 0
      %v1582 = vsel %vm520, %v1240, 0
      %v1585 = vsel %vm520, %v1241, 0
      %v1588 = vsel %vm520, %v1242, 0
      %v1591 = vsel %vm520, %v1243, 0
      %v1594 = vsel %vm520, %v1244, 0
      %v1597 = vsel %vm520, %v1245, 0
      %v1600 = vsel %vm520, %v1246, 0
      %v1603 = vsel %vm520, %v1247, 0
      %1605 = vmatprep.subr.mxu0 0.0
      %1606 = vmatpush1.msra.mxu0 %v1547
      %1607 = vmatprep.subr.mxu0 0.0
      %1608 = vmatpush1.msra.mxu0 %v1546
      %1609 = vmatprep.subr.mxu0 0.0
      %1610 = vmatpush1.msra.mxu0 %v1545
      %1611 = vmatprep.subr.mxu0 0.0
      %1612 = vmatpush1.msra.mxu0 %v1544
      %1613 = vmatprep.subr.mxu0 0.0
      %1614 = vmatpush1.msra.mxu0 %v1543
      %1615 = vmatprep.subr.mxu0 0.0
      %1616 = vmatpush1.msra.mxu0 %v1542
      %1617 = vmatprep.subr.mxu0 0.0
      %1618 = vmatpush1.msra.mxu0 %v1541
      %1619 = vmatprep.subr.mxu0 0.0
      %1620 = vmatpush1.msra.mxu0 %v1540
      %1621 = vmatprep.subr.mxu0 0.0
      %1622 = vmatpush1.msra.mxu0 %v1539
      %1623 = vmatprep.subr.mxu0 0.0
      %1624 = vmatpush1.msra.mxu0 %v1538
      %1625 = vmatprep.subr.mxu0 0.0
      %1626 = vmatpush1.msra.mxu0 %v1537
      %1627 = vmatprep.subr.mxu0 0.0
      %1628 = vmatpush1.msra.mxu0 %v1536
      %1629 = vmatprep.subr.mxu0 0.0
      %1630 = vmatpush1.msra.mxu0 %v1535
      %1631 = vmatprep.subr.mxu0 0.0
      %1632 = vmatpush1.msra.mxu0 %v1534
      %1633 = vmatprep.subr.mxu0 0.0
      %1634 = vmatpush1.msra.mxu0 %v1533
      %1635 = vmatprep.subr.mxu0 0.0
      %1636 = vmatpush1.msra.mxu0 %v1532
      %1637 = vmatprep.subr.mxu0 0.0
      %1638 = vmatpush2.msra.mxu0 %v1563
      %1639 = vmatprep.subr.mxu0 0.0
      %1640 = vmatpush2.msra.mxu0 %v1562
      %1641 = vmatprep.subr.mxu0 0.0
      %1642 = vmatpush2.msra.mxu0 %v1561
      %1643 = vmatprep.subr.mxu0 0.0
      %1644 = vmatpush2.msra.mxu0 %v1560
      %1645 = vmatprep.subr.mxu0 0.0
      %1646 = vmatpush2.msra.mxu0 %v1559
      %1647 = vmatprep.subr.mxu0 0.0
      %1648 = vmatpush2.msra.mxu0 %v1558
      %1649 = vmatprep.subr.mxu0 0.0
      %1650 = vmatpush2.msra.mxu0 %v1557
      %1651 = vmatprep.subr.mxu0 0.0
      %1652 = vmatpush2.msra.mxu0 %v1556
      %1653 = vmatprep.subr.mxu0 0.0
      %1654 = vmatpush2.msra.mxu0 %v1555
      %1655 = vmatprep.subr.mxu0 0.0
      %1656 = vmatpush2.msra.mxu0 %v1554
      %1657 = vmatprep.subr.mxu0 0.0
      %1658 = vmatpush2.msra.mxu0 %v1553
      %1659 = vmatprep.subr.mxu0 0.0
      %1660 = vmatpush2.msra.mxu0 %v1552
      %1661 = vmatprep.subr.mxu0 0.0
      %1662 = vmatpush2.msra.mxu0 %v1551
      %1663 = vmatprep.subr.mxu0 0.0
      %1664 = vmatpush2.msra.mxu0 %v1550
      %1665 = vmatprep.subr.mxu0 0.0
      %1666 = vmatpush2.msra.mxu0 %v1549
      %1667 = vmatprep.subr.mxu0 0.0
      %1668 = vmatpush2.msra.mxu0 %v1548
      %1669 = vmatprep.mubr.f32.mxu0 %v1522
      %1670 = vmatmul.mubr.f32.gmra.mxu0 %v1492
      %v1671 = vpop.f32.mrf.mxu0
      %v1672 = vadd.f32 %v1573, %v1671
      %v1673 = vpop.f32.mrf.mxu0
      %1674 = vmatprep.mubr.f32.mxu0 %v1523
      %1675 = vmatmul.mubr.f32.gmra.mxu0 %v1493
      %v1676 = vpop.f32.mrf.mxu0
      %v1677 = vadd.f32 %v1573, %v1676
      %v1678 = vpop.f32.mrf.mxu0
      %1679 = vmatprep.mubr.f32.mxu0 %v1524
      %1680 = vmatmul.mubr.f32.gmra.mxu0 %v1494
      %v1681 = vpop.f32.mrf.mxu0
      %v1682 = vadd.f32 %v1573, %v1681
      %v1683 = vpop.f32.mrf.mxu0
      %1684 = vmatprep.mubr.f32.mxu0 %v1525
      %1685 = vmatmul.mubr.f32.gmra.mxu0 %v1495
      %v1686 = vpop.f32.mrf.mxu0
      %v1687 = vadd.f32 %v1573, %v1686
      %v1688 = vpop.f32.mrf.mxu0
      %1689 = vmatprep.mubr.f32.mxu0 %v1526
      %1690 = vmatmul.mubr.f32.gmra.mxu0 %v1496
      %v1691 = vpop.f32.mrf.mxu0
      %v1692 = vadd.f32 %v1573, %v1691
      %v1693 = vpop.f32.mrf.mxu0
      %1694 = vmatprep.mubr.f32.mxu0 %v1527
      %1695 = vmatmul.mubr.f32.gmra.mxu0 %v1497
      %v1696 = vpop.f32.mrf.mxu0
      %v1697 = vadd.f32 %v1573, %v1696
      %v1698 = vpop.f32.mrf.mxu0
      %1699 = vmatprep.mubr.f32.mxu0 %v1528
      %1700 = vmatmul.mubr.f32.gmra.mxu0 %v1498
      %v1701 = vpop.f32.mrf.mxu0
      %v1702 = vadd.f32 %v1573, %v1701
      %v1703 = vpop.f32.mrf.mxu0
      %1704 = vmatprep.mubr.f32.mxu0 %v1529
      %1705 = vmatmul.mubr.f32.gmra.mxu0 %v1499
      %v1706 = vpop.f32.mrf.mxu0
      %v1707 = vadd.f32 %v1573, %v1706
      %v1708 = vpop.f32.mrf.mxu0
      %1709 = vmatprep.mubr.f32.mxu0 %v1530
      %1710 = vmatmul.mubr.f32.gmra.mxu0 %v1500
      %v1711 = vpop.f32.mrf.mxu0
      %v1712 = vadd.f32 %v1573, %v1711
      %v1713 = vpop.f32.mrf.mxu0
      %1714 = vmatprep.mubr.f32.mxu0 %v1531
      %1715 = vmatmul.mubr.f32.gmra.mxu0 %v1501
      %v1716 = vpop.f32.mrf.mxu0
      %v1717 = vadd.f32 %v1573, %v1716
      %v1718 = vpop.f32.mrf.mxu0
      %1719 = vdwg.mxu0
      %1720 = vmatprep.subr.mxu0 0.0
      %1721 = vmatpush1.msra.mxu0 0.0
      %1722 = vmatprep.subr.mxu0 0.0
      %1723 = vmatpush1.msra.mxu0 0.0
      %1724 = vmatprep.subr.mxu0 0.0
      %1725 = vmatpush1.msra.mxu0 0.0
      %1726 = vmatprep.subr.mxu0 0.0
      %1727 = vmatpush1.msra.mxu0 0.0
      %1728 = vmatprep.subr.mxu0 0.0
      %1729 = vmatpush1.msra.mxu0 0.0
      %1730 = vmatprep.subr.mxu0 0.0
      %1731 = vmatpush1.msra.mxu0 0.0
      %1732 = vmatprep.subr.mxu0 0.0
      %1733 = vmatpush1.msra.mxu0 0.0
      %1734 = vmatprep.subr.mxu0 0.0
      %1735 = vmatpush1.msra.mxu0 0.0
      %1736 = vmatprep.subr.mxu0 0.0
      %1737 = vmatpush1.msra.mxu0 0.0
      %1738 = vmatprep.subr.mxu0 0.0
      %1739 = vmatpush1.msra.mxu0 0.0
      %1740 = vmatprep.subr.mxu0 0.0
      %1741 = vmatpush1.msra.mxu0 0.0
      %1742 = vmatprep.subr.mxu0 0.0
      %1743 = vmatpush1.msra.mxu0 0.0
      %1744 = vmatprep.subr.mxu0 0.0
      %1745 = vmatpush1.msra.mxu0 %v1567
      %1746 = vmatprep.subr.mxu0 0.0
      %1747 = vmatpush1.msra.mxu0 %v1566
      %1748 = vmatprep.subr.mxu0 0.0
      %1749 = vmatpush1.msra.mxu0 %v1565
      %1750 = vmatprep.subr.mxu0 0.0
      %1751 = vmatpush1.msra.mxu0 %v1564
      %1752 = vmatprep.subr.mxu0 0.0
      %1753 = vmatpush2.msra.mxu0 0.0
      %1754 = vmatprep.subr.mxu0 0.0
      %1755 = vmatpush2.msra.mxu0 0.0
      %1756 = vmatprep.subr.mxu0 0.0
      %1757 = vmatpush2.msra.mxu0 0.0
      %1758 = vmatprep.subr.mxu0 0.0
      %1759 = vmatpush2.msra.mxu0 0.0
      %1760 = vmatprep.subr.mxu0 0.0
      %1761 = vmatpush2.msra.mxu0 0.0
      %1762 = vmatprep.subr.mxu0 0.0
      %1763 = vmatpush2.msra.mxu0 0.0
      %1764 = vmatprep.subr.mxu0 0.0
      %1765 = vmatpush2.msra.mxu0 0.0
      %1766 = vmatprep.subr.mxu0 0.0
      %1767 = vmatpush2.msra.mxu0 0.0
      %1768 = vmatprep.subr.mxu0 0.0
      %1769 = vmatpush2.msra.mxu0 0.0
      %1770 = vmatprep.subr.mxu0 0.0
      %1771 = vmatpush2.msra.mxu0 0.0
      %1772 = vmatprep.subr.mxu0 0.0
      %1773 = vmatpush2.msra.mxu0 0.0
      %1774 = vmatprep.subr.mxu0 0.0
      %1775 = vmatpush2.msra.mxu0 0.0
      %1776 = vmatprep.subr.mxu0 0.0
      %1777 = vmatpush2.msra.mxu0 0.0
      %1778 = vmatprep.subr.mxu0 0.0
      %1779 = vmatpush2.msra.mxu0 0.0
      %1780 = vmatprep.subr.mxu0 0.0
      %1781 = vmatpush2.msra.mxu0 0.0
      %1782 = vmatprep.subr.mxu0 0.0
      %1783 = vmatpush2.msra.mxu0 0.0
      %1784 = vmatprep.mubr.f32.mxu0 0.0
      %1785 = vmatmul.mubr.f32.gmra.mxu0 %v1576
      %v1786 = vpop.f32.mrf.mxu0
      %v1787 = vadd.f32 %v1672, %v1786
      %v1788 = vpop.f32.mrf.mxu0
      %1789 = vmatprep.mubr.f32.mxu0 0.0
      %1790 = vmatmul.mubr.f32.gmra.mxu0 %v1579
      %v1791 = vpop.f32.mrf.mxu0
      %v1792 = vadd.f32 %v1677, %v1791
      %v1793 = vpop.f32.mrf.mxu0
      %1794 = vmatprep.mubr.f32.mxu0 0.0
      %1795 = vmatmul.mubr.f32.gmra.mxu0 %v1582
      %v1796 = vpop.f32.mrf.mxu0
      %v1797 = vadd.f32 %v1682, %v1796
      %v1798 = vpop.f32.mrf.mxu0
      %1799 = vmatprep.mubr.f32.mxu0 0.0
      %1800 = vmatmul.mubr.f32.gmra.mxu0 %v1585
      %v1801 = vpop.f32.mrf.mxu0
      %v1802 = vadd.f32 %v1687, %v1801
      %v1803 = vpop.f32.mrf.mxu0
      %1804 = vmatprep.mubr.f32.mxu0 0.0
      %1805 = vmatmul.mubr.f32.gmra.mxu0 %v1588
      %v1806 = vpop.f32.mrf.mxu0
      %v1807 = vadd.f32 %v1692, %v1806
      %v1808 = vpop.f32.mrf.mxu0
      %1809 = vmatprep.mubr.f32.mxu0 0.0
      %1810 = vmatmul.mubr.f32.gmra.mxu0 %v1591
      %v1811 = vpop.f32.mrf.mxu0
      %v1812 = vadd.f32 %v1697, %v1811
      %v1813 = vpop.f32.mrf.mxu0
      %1814 = vmatprep.mubr.f32.mxu0 0.0
      %1815 = vmatmul.mubr.f32.gmra.mxu0 %v1594
      %v1816 = vpop.f32.mrf.mxu0
      %v1817 = vadd.f32 %v1702, %v1816
      %v1818 = vpop.f32.mrf.mxu0
      %1819 = vmatprep.mubr.f32.mxu0 0.0
      %1820 = vmatmul.mubr.f32.gmra.mxu0 %v1597
      %v1821 = vpop.f32.mrf.mxu0
      %v1822 = vadd.f32 %v1707, %v1821
      %v1823 = vpop.f32.mrf.mxu0
      %1824 = vmatprep.mubr.f32.mxu0 0.0
      %1825 = vmatmul.mubr.f32.gmra.mxu0 %v1600
      %v1826 = vpop.f32.mrf.mxu0
      %v1827 = vadd.f32 %v1712, %v1826
      %v1828 = vpop.f32.mrf.mxu0
      %1829 = vmatprep.mubr.f32.mxu0 0.0
      %1830 = vmatmul.mubr.f32.gmra.mxu0 %v1603
      %v1831 = vpop.f32.mrf.mxu0
      %v1832 = vadd.f32 %v1717, %v1831
      %v1833 = vpop.f32.mrf.mxu0
      %1834 = vdwg.mxu0
      %v1835 = vmax.f32 %v1787, 0.0
      %v1836 = vmax.f32 %v1792, 0.0
      %v1837 = vmax.f32 %v1797, 0.0
      %v1838 = vmax.f32 %v1802, 0.0
      %v1839 = vmax.f32 %v1807, 0.0
      %v1840 = vmax.f32 %v1812, 0.0
      %v1841 = vmax.f32 %v1817, 0.0
      %v1842 = vmax.f32 %v1822, 0.0
      %v1843 = vmax.f32 %v1827, 0.0
      %v1844 = vmax.f32 %v1832, 0.0
      %1845 = vst.msk [vmem:[%s313] sm:$0xff] %vm520, %v1835
      %1846 = vst.msk [vmem:[%s313 + $0x8] sm:$0xff] %vm520, %v1836
      %1847 = vst.msk [vmem:[%s313 + $0x10] sm:$0xff] %vm520, %v1837
      %1848 = vst.msk [vmem:[%s313 + $0x18] sm:$0xff] %vm520, %v1838
      %1849 = vst.msk [vmem:[%s313 + $0x20] sm:$0xff] %vm520, %v1839
      %1850 = vst.msk [vmem:[%s313 + $0x28] sm:$0xff] %vm520, %v1840
      %1851 = vst.msk [vmem:[%s313 + $0x30] sm:$0xff] %vm520, %v1841
      %1852 = vst.msk [vmem:[%s313 + $0x38] sm:$0xff] %vm520, %v1842
      %1853 = vst.msk [vmem:[%s313 + $0x40] sm:$0xff] %vm520, %v1843
      %1854 = vst.msk [vmem:[%s313 + $0x48] sm:$0xff] %vm520, %v1844
      %v1855 = vld [vmem:[%s5] sm:$0xff]
      %v1856 = vld [vmem:[%s5 + $0x8] sm:$0xff]
      %v1857 = vld [vmem:[%s5 + $0x10] sm:$0xff]
      %v1858 = vld [vmem:[%s5 + $0x18] sm:$0xff]
      %v1859 = vld [vmem:[%s6] sm:$0x1]
      %v1861 = vlaneseq
      %v1862 = vshrl.u32 %v1861, 7
      %v1863 = vsub.s32 0, %v1862
      %v1864 = vrot.slane %v1859, %v1863
      %v1867 = vsel %vm520, %v1835, 0
      %v1870 = vsel %vm520, %v1836, 0
      %v1873 = vsel %vm520, %v1837, 0
      %v1876 = vsel %vm520, %v1838, 0
      %v1879 = vsel %vm520, %v1839, 0
      %v1882 = vsel %vm520, %v1840, 0
      %v1885 = vsel %vm520, %v1841, 0
      %v1888 = vsel %vm520, %v1842, 0
      %v1891 = vsel %vm520, %v1843, 0
      %v1894 = vsel %vm520, %v1844, 0
      %1896 = vmatprep.subr.mxu0 0.0
      %1897 = vmatpush1.msra.mxu0 0.0
      %1898 = vmatprep.subr.mxu0 0.0
      %1899 = vmatpush1.msra.mxu0 0.0
      %1900 = vmatprep.subr.mxu0 0.0
      %1901 = vmatpush1.msra.mxu0 0.0
      %1902 = vmatprep.subr.mxu0 0.0
      %1903 = vmatpush1.msra.mxu0 0.0
      %1904 = vmatprep.subr.mxu0 0.0
      %1905 = vmatpush1.msra.mxu0 0.0
      %1906 = vmatprep.subr.mxu0 0.0
      %1907 = vmatpush1.msra.mxu0 0.0
      %1908 = vmatprep.subr.mxu0 0.0
      %1909 = vmatpush1.msra.mxu0 0.0
      %1910 = vmatprep.subr.mxu0 0.0
      %1911 = vmatpush1.msra.mxu0 0.0
      %1912 = vmatprep.subr.mxu0 0.0
      %1913 = vmatpush1.msra.mxu0 0.0
      %1914 = vmatprep.subr.mxu0 0.0
      %1915 = vmatpush1.msra.mxu0 0.0
      %1916 = vmatprep.subr.mxu0 0.0
      %1917 = vmatpush1.msra.mxu0 0.0
      %1918 = vmatprep.subr.mxu0 0.0
      %1919 = vmatpush1.msra.mxu0 0.0
      %1920 = vmatprep.subr.mxu0 0.0
      %1921 = vmatpush1.msra.mxu0 %v1858
      %1922 = vmatprep.subr.mxu0 0.0
      %1923 = vmatpush1.msra.mxu0 %v1857
      %1924 = vmatprep.subr.mxu0 0.0
      %1925 = vmatpush1.msra.mxu0 %v1856
      %1926 = vmatprep.subr.mxu0 0.0
      %1927 = vmatpush1.msra.mxu0 %v1855
      %1928 = vmatprep.subr.mxu0 0.0
      %1929 = vmatpush2.msra.mxu0 0.0
      %1930 = vmatprep.subr.mxu0 0.0
      %1931 = vmatpush2.msra.mxu0 0.0
      %1932 = vmatprep.subr.mxu0 0.0
      %1933 = vmatpush2.msra.mxu0 0.0
      %1934 = vmatprep.subr.mxu0 0.0
      %1935 = vmatpush2.msra.mxu0 0.0
      %1936 = vmatprep.subr.mxu0 0.0
      %1937 = vmatpush2.msra.mxu0 0.0
      %1938 = vmatprep.subr.mxu0 0.0
      %1939 = vmatpush2.msra.mxu0 0.0
      %1940 = vmatprep.subr.mxu0 0.0
      %1941 = vmatpush2.msra.mxu0 0.0
      %1942 = vmatprep.subr.mxu0 0.0
      %1943 = vmatpush2.msra.mxu0 0.0
      %1944 = vmatprep.subr.mxu0 0.0
      %1945 = vmatpush2.msra.mxu0 0.0
      %1946 = vmatprep.subr.mxu0 0.0
      %1947 = vmatpush2.msra.mxu0 0.0
      %1948 = vmatprep.subr.mxu0 0.0
      %1949 = vmatpush2.msra.mxu0 0.0
      %1950 = vmatprep.subr.mxu0 0.0
      %1951 = vmatpush2.msra.mxu0 0.0
      %1952 = vmatprep.subr.mxu0 0.0
      %1953 = vmatpush2.msra.mxu0 0.0
      %1954 = vmatprep.subr.mxu0 0.0
      %1955 = vmatpush2.msra.mxu0 0.0
      %1956 = vmatprep.subr.mxu0 0.0
      %1957 = vmatpush2.msra.mxu0 0.0
      %1958 = vmatprep.subr.mxu0 0.0
      %1959 = vmatpush2.msra.mxu0 0.0
      %1960 = vmatprep.mubr.f32.mxu0 0.0
      %1961 = vmatmul.mubr.f32.gmra.mxu0 %v1867
      %v1962 = vpop.f32.mrf.mxu0
      %v1963 = vadd.f32 %v1864, %v1962
      %v1964 = vpop.f32.mrf.mxu0
      %1965 = vmatprep.mubr.f32.mxu0 0.0
      %1966 = vmatmul.mubr.f32.gmra.mxu0 %v1870
      %v1967 = vpop.f32.mrf.mxu0
      %v1968 = vadd.f32 %v1864, %v1967
      %v1969 = vpop.f32.mrf.mxu0
      %1970 = vmatprep.mubr.f32.mxu0 0.0
      %1971 = vmatmul.mubr.f32.gmra.mxu0 %v1873
      %v1972 = vpop.f32.mrf.mxu0
      %v1973 = vadd.f32 %v1864, %v1972
      %v1974 = vpop.f32.mrf.mxu0
      %1975 = vmatprep.mubr.f32.mxu0 0.0
      %1976 = vmatmul.mubr.f32.gmra.mxu0 %v1876
      %v1977 = vpop.f32.mrf.mxu0
      %v1978 = vadd.f32 %v1864, %v1977
      %v1979 = vpop.f32.mrf.mxu0
      %1980 = vmatprep.mubr.f32.mxu0 0.0
      %1981 = vmatmul.mubr.f32.gmra.mxu0 %v1879
      %v1982 = vpop.f32.mrf.mxu0
      %v1983 = vadd.f32 %v1864, %v1982
      %v1984 = vpop.f32.mrf.mxu0
      %1985 = vmatprep.mubr.f32.mxu0 0.0
      %1986 = vmatmul.mubr.f32.gmra.mxu0 %v1882
      %v1987 = vpop.f32.mrf.mxu0
      %v1988 = vadd.f32 %v1864, %v1987
      %v1989 = vpop.f32.mrf.mxu0
      %1990 = vmatprep.mubr.f32.mxu0 0.0
      %1991 = vmatmul.mubr.f32.gmra.mxu0 %v1885
      %v1992 = vpop.f32.mrf.mxu0
      %v1993 = vadd.f32 %v1864, %v1992
      %v1994 = vpop.f32.mrf.mxu0
      %1995 = vmatprep.mubr.f32.mxu0 0.0
      %1996 = vmatmul.mubr.f32.gmra.mxu0 %v1888
      %v1997 = vpop.f32.mrf.mxu0
      %v1998 = vadd.f32 %v1864, %v1997
      %v1999 = vpop.f32.mrf.mxu0
      %2000 = vmatprep.mubr.f32.mxu0 0.0
      %2001 = vmatmul.mubr.f32.gmra.mxu0 %v1891
      %v2002 = vpop.f32.mrf.mxu0
      %v2003 = vadd.f32 %v1864, %v2002
      %v2004 = vpop.f32.mrf.mxu0
      %2005 = vmatprep.mubr.f32.mxu0 0.0
      %2006 = vmatmul.mubr.f32.gmra.mxu0 %v1894
      %v2007 = vpop.f32.mrf.mxu0
      %v2008 = vadd.f32 %v1864, %v2007
      %v2009 = vpop.f32.mrf.mxu0
      %2010 = vdwg.mxu0
      %v2011 = vmax.f32 %v1963, 0.0
      %v2012 = vmax.f32 %v1968, 0.0
      %v2013 = vmax.f32 %v1973, 0.0
      %v2014 = vmax.f32 %v1978, 0.0
      %v2015 = vmax.f32 %v1983, 0.0
      %v2016 = vmax.f32 %v1988, 0.0
      %v2017 = vmax.f32 %v1993, 0.0
      %v2018 = vmax.f32 %v1998, 0.0
      %v2019 = vmax.f32 %v2003, 0.0
      %v2020 = vmax.f32 %v2008, 0.0
      %2021 = vst.msk [vmem:[%s318] sm:$0xff] %vm1480, %v2011
      %2022 = vst.msk [vmem:[%s318 + $0x8] sm:$0xff] %vm1480, %v2012
      %2023 = vst.msk [vmem:[%s318 + $0x10] sm:$0xff] %vm1480, %v2013
      %2024 = vst.msk [vmem:[%s318 + $0x18] sm:$0xff] %vm1480, %v2014
      %2025 = vst.msk [vmem:[%s318 + $0x20] sm:$0xff] %vm1480, %v2015
      %2026 = vst.msk [vmem:[%s318 + $0x28] sm:$0xff] %vm1480, %v2016
      %2027 = vst.msk [vmem:[%s318 + $0x30] sm:$0xff] %vm1480, %v2017
      %2028 = vst.msk [vmem:[%s318 + $0x38] sm:$0xff] %vm1480, %v2018
      %2029 = vst.msk [vmem:[%s318 + $0x40] sm:$0xff] %vm1480, %v2019
      %2030 = vst.msk [vmem:[%s318 + $0x48] sm:$0xff] %vm1480, %v2020
      %p2031 = scmp.lt.s32.totalorder %s20, 1
      %s2032 = scalar_select %p2031, %s20, 1
      %s2033 = smul.addr %s2032, 10
      %s2034 = smul.addr %s2033, 8
      %s2035 = scalar_lea.vmem %s7, %s2034
      %p2036 = scmp.lt.s32.totalorder %s20, 1
      %s2037 = scalar_select %p2036, %s20, 1
      %s2038 = smul.addr %s2037, 10
      %s2039 = smul.addr %s2038, 8
      %s2040 = scalar_lea.vmem %s8, %s2039
      // Predicated region
      $region49: #{rpn_forward.2} parent=47 // pred_check
        %p2041 = pneg %p190
      $region50: #{rpn_forward.2} parent=47 // pred_check_branch
        %2043 = sbr.rel (%p2041) target = $region52
      $region51: #{rpn_forward.2} parent=47 // pred_region
        _
      $region52: #{rpn_forward.2} parent=47 // pred_fallthru
        _
      // Predicated region
      $region53: #{rpn_forward.2} parent=47 // pred_check
        %p2044 = pneg %p216
      $region54: #{rpn_forward.2} parent=47 // pred_check_branch
        %2046 = sbr.rel (%p2044) target = $region56
      $region55: #{rpn_forward.2} parent=47 // pred_region
        _
      $region56: #{rpn_forward.2} parent=47 // pred_fallthru
        _
    $region48: #{rpn_forward.2} parent=5 // pred_fallthru
      _
    %p2047 = scmp.le.s32.totalorder 2, %s15
    // Predicated region
    $region57: #{rpn_forward.2} parent=5 // pred_check
      %p2048 = pneg %p2047
    $region58: #{rpn_forward.2} parent=5 // pred_check_branch
      %2050 = sbr.rel (%p2048) target = $region60
    $region59: #{rpn_forward.2} parent=5 // pred_region
      %s2051 = ssub.s32 %s15, 2
      // Predicated region
      $region61: #{rpn_forward.2} parent=59 // pred_check
        %p2052 = pneg %p196
      $region62: #{rpn_forward.2} parent=59 // pred_check_branch
        %2054 = sbr.rel (%p2052) target = $region64
      $region63: #{rpn_forward.2} parent=59 // pred_region
        %p2055 = scmp.lt.s32.totalorder %s21, 1
        %s2056 = scalar_select %p2055, %s21, 1
        %s2057 = smul.addr %s2056, 10
        %s2058 = smul.addr %s2057, 8
        %s2059 = scalar_lea.vmem %s7, %s2058
      $region64: #{rpn_forward.2} parent=59 // pred_fallthru
        _
      // Predicated region
      $region65: #{rpn_forward.2} parent=59 // pred_check
        %p2060 = pneg %p222
      $region66: #{rpn_forward.2} parent=59 // pred_check_branch
        %2062 = sbr.rel (%p2060) target = $region68
      $region67: #{rpn_forward.2} parent=59 // pred_region
        %p2063 = scmp.lt.s32.totalorder %s21, 1
        %s2064 = scalar_select %p2063, %s21, 1
        %s2065 = smul.addr %s2064, 10
        %s2066 = smul.addr %s2065, 8
        %s2067 = scalar_lea.vmem %s8, %s2066
      $region68: #{rpn_forward.2} parent=59 // pred_fallthru
        _
    $region60: #{rpn_forward.2} parent=5 // pred_fallthru
      _
  $region6: #{rpn_forward.2} parent=0 // loop_footer
    %s19 = sadd.s32 1, %s15
  $region7: #{rpn_forward.2} parent=0 // loop_footer_branch
    %14 = sbr.rel target = $region3
  $region8: #{rpn_forward.2} parent=0 // loop_exit
    _

// kernel: rpn_forward.3
$region0: #{rpn_forward.3}
  #allocation0 [shape = 'u32[]', space=smem, size = 0x4, offset = 0x4, fixed_abs, tag = 'smem constant byte address 0x4 - core index']
  #allocation1 [shape = 'u32[144,128]{1,0:T(1,128)}', space=vmem, size = 0x12000, scoped, tag = 'internal scratch']
  #allocation2 [shape = 'f32[40,64]{1,0:T(8,128)}', space=vmem, size = 0x5000, scoped, tag = 'scratch operand']
  %s0 = inlined_call_operand.vmem [shape: f32[2,40,128], index: 0, kind: input, shape index: {}]
  %s1 = inlined_call_operand.vmem [shape: f32[512,64], index: 1, kind: input, shape index: {}]
  %s2 = inlined_call_operand.vmem [shape: f32[1,64], index: 2, kind: input, shape index: {}]
  %s3 = inlined_call_operand.vmem [shape: f32[576,64], index: 3, kind: input, shape index: {}]
  %s4 = inlined_call_operand.vmem [shape: f32[1,64], index: 4, kind: input, shape index: {}]
  %s5 = inlined_call_operand.vmem [shape: f32[576,64], index: 5, kind: input, shape index: {}]
  %s6 = inlined_call_operand.vmem [shape: f32[1,64], index: 6, kind: input, shape index: {}]
  %s7 = inlined_call_operand.vmem [shape: f32[64,256], index: 7, kind: input, shape index: {}]
  %s8 = inlined_call_operand.vmem [shape: f32[1,256], index: 8, kind: input, shape index: {}]
  %s9 = inlined_call_operand.vmem [shape: f32[2,24,64], index: 9, kind: output, shape index: {0}]
  %s10 = inlined_call_operand.vmem [shape: f32[2,24,256], index: 10, kind: output, shape index: {1}]
  %11 = xla_tuple %s9, %s10
  %s12 = sld [smem:[#allocation0]]
  $region77: #{rpn_forward.3} parent=0
    _
  %s14 = ssub.s32 1, %s12
  %s15 = scalar_select 0, %s14, %s12
  loop: start=0, step=1, limit=4
  $region2: #{rpn_forward.3} parent=0 // loop_pre_header
    _
  $region3: #{rpn_forward.3} parent=0 // loop_header
    %s17 = sphi 0, %s21
    %p18 = scmp.ge.s32.totalorder %s17, 4
    %s27 = sphi 0, %s29
    %s30 = sphi 0, %s27
    %s31 = sphi 0, %s30
    %s47 = sphi 0, %s31
    %s51 = sphi 0, %s51
    %s53 = sphi 0, %s51
    %s54 = sphi 0, %s53
    %s68 = sphi 0, %s54
    %s72 = sphi 0, %s72
    %s74 = sphi 0, %s72
    %s75 = sphi 0, %s74
    %s89 = sphi 0, %s75
    %s93 = sphi 0, %s93
    %s95 = sphi 0, %s93
    %s96 = sphi 0, %s95
    %s110 = sphi 0, %s96
    %s114 = sphi 0, %s114
    %s116 = sphi 0, %s114
    %s117 = sphi 0, %s116
    %s131 = sphi 0, %s117
    %s135 = sphi 0, %s135
    %s137 = sphi 0, %s135
    %s138 = sphi 0, %s137
    %s152 = sphi 0, %s138
    %s156 = sphi 0, %s156
    %s158 = sphi 0, %s156
    %s159 = sphi 0, %s158
    %s173 = sphi 0, %s159
    %s177 = sphi 0, %s177
    %s179 = sphi 0, %s177
    %s180 = sphi 0, %s179
    %s194 = sphi 0, %s180
    %s198 = sphi 0, %s198
    %s200 = sphi 0, %s198
    %s201 = sphi 0, %s200
    %s215 = sphi 0, %s201
    %s221 = sphi 0, %s223
    %s224 = sphi 0, %s221
    %s225 = sphi 0, %s224
    %s241 = sphi 0, %s225
    %s247 = sphi 0, %s249
    %s250 = sphi 0, %s247
    %s251 = sphi 0, %s250
    %s267 = sphi 0, %s251
  $region4: #{rpn_forward.3} parent=0 // loop_header_branch
    %20 = sbr.rel (%p18) target = $region8
  $region5: #{rpn_forward.3} parent=0 // loop_body
    %s22 = ssub.s32 %s17, 1
    %s23 = ssub.s32 %s17, 2
    %s24 = sadd.s32 %s17, 1
    %s25 = ssub.s32 %s17, %s24
    %p26 = scmp.eq.s32.totalorder %s25, 0
    %s28 = sadd.s32 %s27, 1
    %s29 = scalar_select %p26, %s27, %s28
    %p32 = pneg %p26
    %p33 = scmp.eq.s32.totalorder %s17, 1
    %p34 = por %p32, %p33
    %p35 = scmp.ne.s32.totalorder %s27, %s30
    %p36 = scmp.eq.s32.totalorder %s17, 0
    %p37 = por %p35, %p36
    %p38 = scmp.ne.s32.totalorder %s27, %s30
    %p39 = scmp.eq.s32.totalorder %s22, 1
    %p40 = por %p38, %p39
    %p41 = scmp.ne.s32.totalorder %s30, %s31
    %p42 = scmp.eq.s32.totalorder %s22, 0
    %p43 = por %p41, %p42
    %p44 = scmp.ne.s32.totalorder %s30, %s31
    %p45 = scmp.eq.s32.totalorder %s23, 1
    %p46 = por %p44, %p45
    %p48 = scmp.ne.s32.totalorder %s31, %s47
    %p49 = scmp.eq.s32.totalorder %s23, 0
    %p50 = por %p48, %p49
    %s52 = sadd.s32 %s51, 1
    %p55 = scmp.eq.s32.totalorder %s17, 1
    %p56 = scmp.ne.s32.totalorder %s51, %s53
    %p57 = scmp.eq.s32.totalorder %s17, 0
    %p58 = por %p56, %p57
    %p59 = scmp.ne.s32.totalorder %s51, %s53
    %p60 = scmp.eq.s32.totalorder %s22, 1
    %p61 = por %p59, %p60
    %p62 = scmp.ne.s32.totalorder %s53, %s54
    %p63 = scmp.eq.s32.totalorder %s22, 0
    %p64 = por %p62, %p63
    %p65 = scmp.ne.s32.totalorder %s53, %s54
    %p66 = scmp.eq.s32.totalorder %s23, 1
    %p67 = por %p65, %p66
    %p69 = scmp.ne.s32.totalorder %s54, %s68
    %p70 = scmp.eq.s32.totalorder %s23, 0
    %p71 = por %p69, %p70
    %s73 = sadd.s32 %s72, 1
    %p76 = scmp.eq.s32.totalorder %s17, 1
    %p77 = scmp.ne.s32.totalorder %s72, %s74
    %p78 = scmp.eq.s32.totalorder %s17, 0
    %p79 = por %p77, %p78
    %p80 = scmp.ne.s32.totalorder %s72, %s74
    %p81 = scmp.eq.s32.totalorder %s22, 1
    %p82 = por %p80, %p81
    %p83 = scmp.ne.s32.totalorder %s74, %s75
    %p84 = scmp.eq.s32.totalorder %s22, 0
    %p85 = por %p83, %p84
    %p86 = scmp.ne.s32.totalorder %s74, %s75
    %p87 = scmp.eq.s32.totalorder %s23, 1
    %p88 = por %p86, %p87
    %p90 = scmp.ne.s32.totalorder %s75, %s89
    %p91 = scmp.eq.s32.totalorder %s23, 0
    %p92 = por %p90, %p91
    %s94 = sadd.s32 %s93, 1
    %p97 = scmp.eq.s32.totalorder %s17, 1
    %p98 = scmp.ne.s32.totalorder %s93, %s95
    %p99 = scmp.eq.s32.totalorder %s17, 0
    %p100 = por %p98, %p99
    %p101 = scmp.ne.s32.totalorder %s93, %s95
    %p102 = scmp.eq.s32.totalorder %s22, 1
    %p103 = por %p101, %p102
    %p104 = scmp.ne.s32.totalorder %s95, %s96
    %p105 = scmp.eq.s32.totalorder %s22, 0
    %p106 = por %p104, %p105
    %p107 = scmp.ne.s32.totalorder %s95, %s96
    %p108 = scmp.eq.s32.totalorder %s23, 1
    %p109 = por %p107, %p108
    %p111 = scmp.ne.s32.totalorder %s96, %s110
    %p112 = scmp.eq.s32.totalorder %s23, 0
    %p113 = por %p111, %p112
    %s115 = sadd.s32 %s114, 1
    %p118 = scmp.eq.s32.totalorder %s17, 1
    %p119 = scmp.ne.s32.totalorder %s114, %s116
    %p120 = scmp.eq.s32.totalorder %s17, 0
    %p121 = por %p119, %p120
    %p122 = scmp.ne.s32.totalorder %s114, %s116
    %p123 = scmp.eq.s32.totalorder %s22, 1
    %p124 = por %p122, %p123
    %p125 = scmp.ne.s32.totalorder %s116, %s117
    %p126 = scmp.eq.s32.totalorder %s22, 0
    %p127 = por %p125, %p126
    %p128 = scmp.ne.s32.totalorder %s116, %s117
    %p129 = scmp.eq.s32.totalorder %s23, 1
    %p130 = por %p128, %p129
    %p132 = scmp.ne.s32.totalorder %s117, %s131
    %p133 = scmp.eq.s32.totalorder %s23, 0
    %p134 = por %p132, %p133
    %s136 = sadd.s32 %s135, 1
    %p139 = scmp.eq.s32.totalorder %s17, 1
    %p140 = scmp.ne.s32.totalorder %s135, %s137
    %p141 = scmp.eq.s32.totalorder %s17, 0
    %p142 = por %p140, %p141
    %p143 = scmp.ne.s32.totalorder %s135, %s137
    %p144 = scmp.eq.s32.totalorder %s22, 1
    %p145 = por %p143, %p144
    %p146 = scmp.ne.s32.totalorder %s137, %s138
    %p147 = scmp.eq.s32.totalorder %s22, 0
    %p148 = por %p146, %p147
    %p149 = scmp.ne.s32.totalorder %s137, %s138
    %p150 = scmp.eq.s32.totalorder %s23, 1
    %p151 = por %p149, %p150
    %p153 = scmp.ne.s32.totalorder %s138, %s152
    %p154 = scmp.eq.s32.totalorder %s23, 0
    %p155 = por %p153, %p154
    %s157 = sadd.s32 %s156, 1
    %p160 = scmp.eq.s32.totalorder %s17, 1
    %p161 = scmp.ne.s32.totalorder %s156, %s158
    %p162 = scmp.eq.s32.totalorder %s17, 0
    %p163 = por %p161, %p162
    %p164 = scmp.ne.s32.totalorder %s156, %s158
    %p165 = scmp.eq.s32.totalorder %s22, 1
    %p166 = por %p164, %p165
    %p167 = scmp.ne.s32.totalorder %s158, %s159
    %p168 = scmp.eq.s32.totalorder %s22, 0
    %p169 = por %p167, %p168
    %p170 = scmp.ne.s32.totalorder %s158, %s159
    %p171 = scmp.eq.s32.totalorder %s23, 1
    %p172 = por %p170, %p171
    %p174 = scmp.ne.s32.totalorder %s159, %s173
    %p175 = scmp.eq.s32.totalorder %s23, 0
    %p176 = por %p174, %p175
    %s178 = sadd.s32 %s177, 1
    %p181 = scmp.eq.s32.totalorder %s17, 1
    %p182 = scmp.ne.s32.totalorder %s177, %s179
    %p183 = scmp.eq.s32.totalorder %s17, 0
    %p184 = por %p182, %p183
    %p185 = scmp.ne.s32.totalorder %s177, %s179
    %p186 = scmp.eq.s32.totalorder %s22, 1
    %p187 = por %p185, %p186
    %p188 = scmp.ne.s32.totalorder %s179, %s180
    %p189 = scmp.eq.s32.totalorder %s22, 0
    %p190 = por %p188, %p189
    %p191 = scmp.ne.s32.totalorder %s179, %s180
    %p192 = scmp.eq.s32.totalorder %s23, 1
    %p193 = por %p191, %p192
    %p195 = scmp.ne.s32.totalorder %s180, %s194
    %p196 = scmp.eq.s32.totalorder %s23, 0
    %p197 = por %p195, %p196
    %s199 = sadd.s32 %s198, 1
    %p202 = scmp.eq.s32.totalorder %s17, 1
    %p203 = scmp.ne.s32.totalorder %s198, %s200
    %p204 = scmp.eq.s32.totalorder %s17, 0
    %p205 = por %p203, %p204
    %p206 = scmp.ne.s32.totalorder %s198, %s200
    %p207 = scmp.eq.s32.totalorder %s22, 1
    %p208 = por %p206, %p207
    %p209 = scmp.ne.s32.totalorder %s200, %s201
    %p210 = scmp.eq.s32.totalorder %s22, 0
    %p211 = por %p209, %p210
    %p212 = scmp.ne.s32.totalorder %s200, %s201
    %p213 = scmp.eq.s32.totalorder %s23, 1
    %p214 = por %p212, %p213
    %p216 = scmp.ne.s32.totalorder %s201, %s215
    %p217 = scmp.eq.s32.totalorder %s23, 0
    %p218 = por %p216, %p217
    %s219 = ssub.s32 %s17, %s24
    %p220 = scmp.eq.s32.totalorder %s219, 0
    %s222 = sadd.s32 %s221, 1
    %s223 = scalar_select %p220, %s221, %s222
    %p226 = pneg %p220
    %p227 = scmp.eq.s32.totalorder %s17, 1
    %p228 = por %p226, %p227
    %p229 = scmp.ne.s32.totalorder %s221, %s224
    %p230 = scmp.eq.s32.totalorder %s17, 0
    %p231 = por %p229, %p230
    %p232 = scmp.ne.s32.totalorder %s221, %s224
    %p233 = scmp.eq.s32.totalorder %s22, 1
    %p234 = por %p232, %p233
    %p235 = scmp.ne.s32.totalorder %s224, %s225
    %p236 = scmp.eq.s32.totalorder %s22, 0
    %p237 = por %p235, %p236
    %p238 = scmp.ne.s32.totalorder %s224, %s225
    %p239 = scmp.eq.s32.totalorder %s23, 1
    %p240 = por %p238, %p239
    %p242 = scmp.ne.s32.totalorder %s225, %s241
    %p243 = scmp.eq.s32.totalorder %s23, 0
    %p244 = por %p242, %p243
    %s245 = ssub.s32 %s17, %s24
    %p246 = scmp.eq.s32.totalorder %s245, 0
    %s248 = sadd.s32 %s247, 1
    %s249 = scalar_select %p246, %s247, %s248
    %p252 = pneg %p246
    %p253 = scmp.eq.s32.totalorder %s17, 1
    %p254 = por %p252, %p253
    %p255 = scmp.ne.s32.totalorder %s247, %s250
    %p256 = scmp.eq.s32.totalorder %s17, 0
    %p257 = por %p255, %p256
    %p258 = scmp.ne.s32.totalorder %s247, %s250
    %p259 = scmp.eq.s32.totalorder %s22, 1
    %p260 = por %p258, %p259
    %p261 = scmp.ne.s32.totalorder %s250, %s251
    %p262 = scmp.eq.s32.totalorder %s22, 0
    %p263 = por %p261, %p262
    %p264 = scmp.ne.s32.totalorder %s250, %s251
    %p265 = scmp.eq.s32.totalorder %s23, 1
    %p266 = por %p264, %p265
    %p268 = scmp.ne.s32.totalorder %s251, %s267
    %p269 = scmp.eq.s32.totalorder %s23, 0
    %p270 = por %p268, %p269
    %p271 = scmp.le.s32.totalorder 1, %s17
    %p272 = scmp.lt.s32.totalorder %s17, 3
    %p273 = pnand %p271, %p272
    %p274 = pneg %p273
    // Predicated region
    $region9: #{rpn_forward.3} parent=5 // pred_check
      _
    $region10: #{rpn_forward.3} parent=5 // pred_check_branch
      %276 = sbr.rel (%p273) target = $region12
    $region11: #{rpn_forward.3} parent=5 // pred_region
      %s277 = ssub.s32 %s17, 1
      // Predicated region
      $region13: #{rpn_forward.3} parent=11 // pred_check
        %p278 = pneg %p64
      $region14: #{rpn_forward.3} parent=11 // pred_check_branch
        %280 = sbr.rel (%p278) target = $region16
      $region15: #{rpn_forward.3} parent=11 // pred_region
        _
      $region16: #{rpn_forward.3} parent=11 // pred_fallthru
        _
      // Predicated region
      $region17: #{rpn_forward.3} parent=11 // pred_check
        %p281 = pneg %p85
      $region18: #{rpn_forward.3} parent=11 // pred_check_branch
        %283 = sbr.rel (%p281) target = $region20
      $region19: #{rpn_forward.3} parent=11 // pred_region
        _
      $region20: #{rpn_forward.3} parent=11 // pred_fallthru
        _
      // Predicated region
      $region21: #{rpn_forward.3} parent=11 // pred_check
        %p284 = pneg %p106
      $region22: #{rpn_forward.3} parent=11 // pred_check_branch
        %286 = sbr.rel (%p284) target = $region24
      $region23: #{rpn_forward.3} parent=11 // pred_region
        _
      $region24: #{rpn_forward.3} parent=11 // pred_fallthru
        _
      // Predicated region
      $region25: #{rpn_forward.3} parent=11 // pred_check
        %p287 = pneg %p127
      $region26: #{rpn_forward.3} parent=11 // pred_check_branch
        %289 = sbr.rel (%p287) target = $region28
      $region27: #{rpn_forward.3} parent=11 // pred_region
        _
      $region28: #{rpn_forward.3} parent=11 // pred_fallthru
        _
      // Predicated region
      $region29: #{rpn_forward.3} parent=11 // pred_check
        %p290 = pneg %p148
      $region30: #{rpn_forward.3} parent=11 // pred_check_branch
        %292 = sbr.rel (%p290) target = $region32
      $region31: #{rpn_forward.3} parent=11 // pred_region
        _
      $region32: #{rpn_forward.3} parent=11 // pred_fallthru
        _
      // Predicated region
      $region33: #{rpn_forward.3} parent=11 // pred_check
        %p293 = pneg %p169
      $region34: #{rpn_forward.3} parent=11 // pred_check_branch
        %295 = sbr.rel (%p293) target = $region36
      $region35: #{rpn_forward.3} parent=11 // pred_region
        _
      $region36: #{rpn_forward.3} parent=11 // pred_fallthru
        _
      // Predicated region
      $region37: #{rpn_forward.3} parent=11 // pred_check
        %p296 = pneg %p190
      $region38: #{rpn_forward.3} parent=11 // pred_check_branch
        %298 = sbr.rel (%p296) target = $region40
      $region39: #{rpn_forward.3} parent=11 // pred_region
        _
      $region40: #{rpn_forward.3} parent=11 // pred_fallthru
        _
      // Predicated region
      $region41: #{rpn_forward.3} parent=11 // pred_check
        %p299 = pneg %p211
      $region42: #{rpn_forward.3} parent=11 // pred_check_branch
        %301 = sbr.rel (%p299) target = $region44
      $region43: #{rpn_forward.3} parent=11 // pred_region
        _
      $region44: #{rpn_forward.3} parent=11 // pred_fallthru
        _
    $region12: #{rpn_forward.3} parent=5 // pred_fallthru
      _
    %p302 = scmp.lt.s32.totalorder %s17, 2
    // Predicated region
    $region45: #{rpn_forward.3} parent=5 // pred_check
      %p303 = pneg %p302
    $region46: #{rpn_forward.3} parent=5 // pred_check_branch
      %305 = sbr.rel (%p303) target = $region48
    $region47: #{rpn_forward.3} parent=5 // pred_region
      // Predicated region
      $region49: #{rpn_forward.3} parent=47 // pred_check
        %p306 = pneg %p37
      $region50: #{rpn_forward.3} parent=47 // pred_check_branch
        %308 = sbr.rel (%p306) target = $region52
      $region51: #{rpn_forward.3} parent=47 // pred_region
        %p309 = scmp.lt.s32.totalorder %s17, 1
        %s310 = scalar_select %p309, %s17, 1
        %s311 = smul.addr %s310, 5
        %s312 = smul.addr %s311, 8
        %s313 = scalar_lea.vmem %s0, %s312
      $region52: #{rpn_forward.3} parent=47 // pred_fallthru
        _
    $region48: #{rpn_forward.3} parent=5 // pred_fallthru
      _
    %p314 = scmp.le.s32.totalorder 1, %s17
    %p315 = scmp.lt.s32.totalorder %s17, 3
    %p316 = pnand %p314, %p315
    %p317 = pneg %p316
    // Predicated region
    $region53: #{rpn_forward.3} parent=5 // pred_check
      _
    $region54: #{rpn_forward.3} parent=5 // pred_check_branch
      %319 = sbr.rel (%p316) target = $region56
    $region55: #{rpn_forward.3} parent=5 // pred_region
      %s320 = ssub.s32 %s17, 1
      %p321 = scmp.lt.s32.totalorder %s22, 1
      %s322 = scalar_select %p321, %s22, 1
      %s323 = smul.addr %s322, 5
      %s324 = smul.addr %s323, 8
      %s325 = scalar_lea.vmem %s0, %s324
      %p326 = pneg %p43
      %p327 = pneg %p40
      %p328 = pneg %p64
      %p329 = pneg %p61
      %p330 = pneg %p85
      %p331 = pneg %p82
      %p332 = pneg %p106
      %p333 = pneg %p103
      %p334 = pneg %p127
      %p335 = pneg %p124
      %p336 = pneg %p148
      %p337 = pneg %p145
      %p338 = pneg %p169
      %p339 = pneg %p166
      %p340 = pneg %p190
      %p341 = pneg %p187
      %p342 = pneg %p211
      %p343 = pneg %p208
      %p344 = pneg %p237
      %p345 = pneg %p234
      %p346 = scmp.lt.s32.totalorder %s22, 1
      %s347 = scalar_select %p346, %s22, 1
      %s348 = smul.addr %s347, 3
      %s349 = smul.addr %s348, 8
      %s350 = scalar_lea.vmem %s9, %s349
      %p351 = pneg %p263
      %p352 = pneg %p260
      %p353 = scmp.lt.s32.totalorder %s22, 1
      %s354 = scalar_select %p353, %s22, 1
      %s355 = smul.addr %s354, 6
      %s356 = smul.addr %s355, 8
      %s357 = scalar_lea.vmem %s10, %s356
      %p358 = scmp.lt.s32.totalorder %s22, 1
      %s359 = scalar_select %p358, %s22, 1
      %s360 = smul.addr %s359, 5
      %s361 = smul.addr %s360, 8
      %s362 = scalar_lea.vmem %s0, %s361
      %p363 = scmp.lt.s32.totalorder %s22, 1
      %s364 = scalar_select %p363, %s22, 1
      %s365 = smul.addr %s364, 3
      %s366 = smul.addr %s365, 8
      %s367 = scalar_lea.vmem %s9, %s366
      %p368 = scmp.lt.s32.totalorder %s22, 1
      %s369 = scalar_select %p368, %s22, 1
      %s370 = smul.addr %s369, 6
      %s371 = smul.addr %s370, 8
      %s372 = scalar_lea.vmem %s10, %s371
      %v373 = vlaneseq
      %v374 = vshrl.u32 %v373, 7
      %v375 = vadd.s32 %v374, 8
      %v376 = vadd.s32 %v374, 16
      %vm377 = vcmp.lt.s32.totalorder %v374, 0
      %v378 = vsub.s32 0, %v374
      %v379 = vsel %vm377, %v378, %v374
      %v380 = vmul.u32.u64.compose %v379, 2863311531
      %v381 = vextract.low.u32 %v380
      %v382 = vextract.high.u32 %v380
      %v383 = vshrl.u32 %v382, 2
      %v384 = vmul.u32 %v383, 6
      %v385 = vsub.s32 %v379, %v384
      %v386 = vsub.s32 0, %v385
      %v387 = vsel %vm377, %v386, %v385
      %vm388 = vcmp.lt.s32.totalorder %v375, 0
      %v389 = vsub.s32 0, %v375
      %v390 = vsel %vm388, %v389, %v375
      %v391 = vmul.u32.u64.compose %v390, 2863311531
      %v392 = vextract.low.u32 %v391
      %v393 = vextract.high.u32 %v391
      %v394 = vshrl.u32 %v393, 2
      %v395 = vmul.u32 %v394, 6
      %v396 = vsub.s32 %v390, %v395
      %v397 = vsub.s32 0, %v396
      %v398 = vsel %vm388, %v397, %v396
      %vm399 = vcmp.lt.s32.totalorder %v376, 0
      %v400 = vsub.s32 0, %v376
      %v401 = vsel %vm399, %v400, %v376
      %v402 = vmul.u32.u64.compose %v401, 2863311531
      %v403 = vextract.low.u32 %v402
      %v404 = vextract.high.u32 %v402
      %v405 = vshrl.u32 %v404, 2
      %v406 = vmul.u32 %v405, 6
      %v407 = vsub.s32 %v401, %v406
      %v408 = vsub.s32 0, %v407
      %v409 = vsel %vm399, %v408, %v407
      %vm410 = vcmp.ne.s32.totalorder %v387, 0
      %vm411 = vcmp.ne.s32.totalorder %v398, 0
      %vm412 = vcmp.ne.s32.totalorder %v409, 0
      %vm413 = vcmp.lt.s32.totalorder %v387, 0
      %vm414 = vcmp.lt.s32.totalorder %v398, 0
      %vm415 = vcmp.lt.s32.totalorder %v409, 0
      %vm416 = vmand %vm413, %vm410
      %vm417 = vmand %vm414, %vm411
      %vm418 = vmand %vm415, %vm412
      %v419 = vadd.s32 %v387, 6
      %v420 = vadd.s32 %v398, 6
      %v421 = vadd.s32 %v409, 6
      %v422 = vsel %vm416, %v419, %v387
      %v423 = vsel %vm417, %v420, %v398
      %v424 = vsel %vm418, %v421, %v409
      %vm425 = vcmp.ne.s32.totalorder %v422, 0
      %vm426 = vcmp.ne.s32.totalorder %v423, 0
      %vm427 = vcmp.ne.s32.totalorder %v424, 0
      %vm428 = vcmp.ne.s32.totalorder %v422, 5
      %vm429 = vcmp.ne.s32.totalorder %v423, 5
      %vm430 = vcmp.ne.s32.totalorder %v424, 5
      %vm431 = vmand %vm425, %vm428
      %vm432 = vmand %vm426, %vm429
      %vm433 = vmand %vm427, %vm430
      %vm434 = vcmask 523264
      %435 = vst.msk [vmem:[#allocation2] sm:$0xff] %vm434, 0.0
      %436 = vst.msk [vmem:[#allocation2 + $0x20] sm:$0xff] %vm434, 0.0
      %v437 = vld [vmem:[%s362 + $0x1] sm:$0xff]
      %v438 = vld [vmem:[%s362 + $0x9] sm:$0xff]
      %v439 = vld [vmem:[%s362 + $0x11] sm:$0xff]
      %v440 = vld [vmem:[%s1] sm:$0xff]
      %v441 = vld [vmem:[%s1 + $0x8] sm:$0xff]
      %v442 = vld [vmem:[%s1 + $0x10] sm:$0xff]
      %v443 = vld [vmem:[%s1 + $0x18] sm:$0xff]
      %v444 = vld [vmem:[%s1 + $0x20] sm:$0xff]
      %v445 = vld [vmem:[%s1 + $0x28] sm:$0xff]
      %v446 = vld [vmem:[%s1 + $0x30] sm:$0xff]
      %v447 = vld [vmem:[%s1 + $0x38] sm:$0xff]
      %v448 = vld [vmem:[%s1 + $0x40] sm:$0xff]
      %v449 = vld [vmem:[%s1 + $0x48] sm:$0xff]
      %v450 = vld [vmem:[%s1 + $0x50] sm:$0xff]
      %v451 = vld [vmem:[%s1 + $0x58] sm:$0xff]
      %v452 = vld [vmem:[%s1 + $0x60] sm:$0xff]
      %v453 = vld [vmem:[%s1 + $0x68] sm:$0xff]
      %v454 = vld [vmem:[%s1 + $0x70] sm:$0xff]
      %v455 = vld [vmem:[%s1 + $0x78] sm:$0xff]
      %v456 = vld [vmem:[%s362 + $0x2] sm:$0xff]
      %v457 = vld [vmem:[%s362 + $0xa] sm:$0xff]
      %v458 = vld [vmem:[%s362 + $0x12] sm:$0xff]
      %v459 = vld [vmem:[%s1 + $0x80] sm:$0xff]
      %v460 = vld [vmem:[%s1 + $0x88] sm:$0xff]
      %v461 = vld [vmem:[%s1 + $0x90] sm:$0xff]
      %v462 = vld [vmem:[%s1 + $0x98] sm:$0xff]
      %v463 = vld [vmem:[%s1 + $0xa0] sm:$0xff]
      %v464 = vld [vmem:[%s1 + $0xa8] sm:$0xff]
      %v465 = vld [vmem:[%s1 + $0xb0] sm:$0xff]
      %v466 = vld [vmem:[%s1 + $0xb8] sm:$0xff]
      %v467 = vld [vmem:[%s1 + $0xc0] sm:$0xff]
      %v468 = vld [vmem:[%s1 + $0xc8] sm:$0xff]
      %v469 = vld [vmem:[%s1 + $0xd0] sm:$0xff]
      %v470 = vld [vmem:[%s1 + $0xd8] sm:$0xff]
      %v471 = vld [vmem:[%s1 + $0xe0] sm:$0xff]
      %v472 = vld [vmem:[%s1 + $0xe8] sm:$0xff]
      %v473 = vld [vmem:[%s1 + $0xf0] sm:$0xff]
      %v474 = vld [vmem:[%s1 + $0xf8] sm:$0xff]
      %475 = vmatprep.subr.mxu0 0.0
      %476 = vmatpush1.msra.mxu0 %v474
      %477 = vmatprep.subr.mxu0 0.0
      %478 = vmatpush1.msra.mxu0 %v473
      %479 = vmatprep.subr.mxu0 0.0
      %480 = vmatpush1.msra.mxu0 %v472
      %481 = vmatprep.subr.mxu0 0.0
      %482 = vmatpush1.msra.mxu0 %v471
      %483 = vmatprep.subr.mxu0 0.0
      %484 = vmatpush1.msra.mxu0 %v470
      %485 = vmatprep.subr.mxu0 0.0
      %486 = vmatpush1.msra.mxu0 %v469
      %487 = vmatprep.subr.mxu0 0.0
      %488 = vmatpush1.msra.mxu0 %v468
      %489 = vmatprep.subr.mxu0 0.0
      %490 = vmatpush1.msra.mxu0 %v467
      %491 = vmatprep.subr.mxu0 0.0
      %492 = vmatpush1.msra.mxu0 %v466
      %493 = vmatprep.subr.mxu0 0.0
      %494 = vmatpush1.msra.mxu0 %v465
      %495 = vmatprep.subr.mxu0 0.0
      %496 = vmatpush1.msra.mxu0 %v464
      %497 = vmatprep.subr.mxu0 0.0
      %498 = vmatpush1.msra.mxu0 %v463
      %499 = vmatprep.subr.mxu0 0.0
      %500 = vmatpush1.msra.mxu0 %v462
      %501 = vmatprep.subr.mxu0 0.0
      %502 = vmatpush1.msra.mxu0 %v461
      %503 = vmatprep.subr.mxu0 0.0
      %504 = vmatpush1.msra.mxu0 %v460
      %505 = vmatprep.subr.mxu0 0.0
      %506 = vmatpush1.msra.mxu0 %v459
      %507 = vmatprep.subr.mxu0 0.0
      %508 = vmatpush2.msra.mxu0 0.0
      %509 = vmatprep.subr.mxu0 0.0
      %510 = vmatpush2.msra.mxu0 0.0
      %511 = vmatprep.subr.mxu0 0.0
      %512 = vmatpush2.msra.mxu0 0.0
      %513 = vmatprep.subr.mxu0 0.0
      %514 = vmatpush2.msra.mxu0 0.0
      %515 = vmatprep.subr.mxu0 0.0
      %516 = vmatpush2.msra.mxu0 0.0
      %517 = vmatprep.subr.mxu0 0.0
      %518 = vmatpush2.msra.mxu0 0.0
      %519 = vmatprep.subr.mxu0 0.0
      %520 = vmatpush2.msra.mxu0 0.0
      %521 = vmatprep.subr.mxu0 0.0
      %522 = vmatpush2.msra.mxu0 0.0
      %523 = vmatprep.subr.mxu0 0.0
      %524 = vmatpush2.msra.mxu0 0.0
      %525 = vmatprep.subr.mxu0 0.0
      %526 = vmatpush2.msra.mxu0 0.0
      %527 = vmatprep.subr.mxu0 0.0
      %528 = vmatpush2.msra.mxu0 0.0
      %529 = vmatprep.subr.mxu0 0.0
      %530 = vmatpush2.msra.mxu0 0.0
      %531 = vmatprep.subr.mxu0 0.0
      %532 = vmatpush2.msra.mxu0 0.0
      %533 = vmatprep.subr.mxu0 0.0
      %534 = vmatpush2.msra.mxu0 0.0
      %535 = vmatprep.subr.mxu0 0.0
      %536 = vmatpush2.msra.mxu0 0.0
      %537 = vmatprep.subr.mxu0 0.0
      %538 = vmatpush2.msra.mxu0 0.0
      %539 = vmatprep.mubr.f32.mxu0 0.0
      %540 = vmatmul.mubr.f32.gmra.mxu0 %v456
      %v541 = vpop.f32.mrf.mxu0
      %v542 = vadd.f32 0.0, %v541
      %v543 = vpop.f32.mrf.mxu0
      %544 = vmatprep.mubr.f32.mxu0 0.0
      %545 = vmatmul.mubr.f32.gmra.mxu0 %v457
      %v546 = vpop.f32.mrf.mxu0
      %v547 = vadd.f32 0.0, %v546
      %v548 = vpop.f32.mrf.mxu0
      %549 = vmatprep.mubr.f32.mxu0 0.0
      %550 = vmatmul.mubr.f32.gmra.mxu0 %v458
      %v551 = vpop.f32.mrf.mxu0
      %v552 = vadd.f32 0.0, %v551
      %v553 = vpop.f32.mrf.mxu0
      %554 = vdwg.mxu0
      %555 = vmatprep.subr.mxu0 0.0
      %556 = vmatpush1.msra.mxu0 %v455
      %557 = vmatprep.subr.mxu0 0.0
      %558 = vmatpush1.msra.mxu0 %v454
      %559 = vmatprep.subr.mxu0 0.0
      %560 = vmatpush1.msra.mxu0 %v453
      %561 = vmatprep.subr.mxu0 0.0
      %562 = vmatpush1.msra.mxu0 %v452
      %563 = vmatprep.subr.mxu0 0.0
      %564 = vmatpush1.msra.mxu0 %v451
      %565 = vmatprep.subr.mxu0 0.0
      %566 = vmatpush1.msra.mxu0 %v450
      %567 = vmatprep.subr.mxu0 0.0
      %568 = vmatpush1.msra.mxu0 %v449
      %569 = vmatprep.subr.mxu0 0.0
      %570 = vmatpush1.msra.mxu0 %v448
      %571 = vmatprep.subr.mxu0 0.0
      %572 = vmatpush1.msra.mxu0 %v447
      %573 = vmatprep.subr.mxu0 0.0
      %574 = vmatpush1.msra.mxu0 %v446
      %575 = vmatprep.subr.mxu0 0.0
      %576 = vmatpush1.msra.mxu0 %v445
      %577 = vmatprep.subr.mxu0 0.0
      %578 = vmatpush1.msra.mxu0 %v444
      %579 = vmatprep.subr.mxu0 0.0
      %580 = vmatpush1.msra.mxu0 %v443
      %581 = vmatprep.subr.mxu0 0.0
      %582 = vmatpush1.msra.mxu0 %v442
      %583 = vmatprep.subr.mxu0 0.0
      %584 = vmatpush1.msra.mxu0 %v441
      %585 = vmatprep.subr.mxu0 0.0
      %586 = vmatpush1.msra.mxu0 %v440
      %587 = vmatprep.subr.mxu0 0.0
      %588 = vmatpush2.msra.mxu0 0.0
      %589 = vmatprep.subr.mxu0 0.0
      %590 = vmatpush2.msra.mxu0 0.0
      %591 = vmatprep.subr.mxu0 0.0
      %592 = vmatpush2.msra.mxu0 0.0
      %593 = vmatprep.subr.mxu0 0.0
      %594 = vmatpush2.msra.mxu0 0.0
      %595 = vmatprep.subr.mxu0 0.0
      %596 = vmatpush2.msra.mxu0 0.0
      %597 = vmatprep.subr.mxu0 0.0
      %598 = vmatpush2.msra.mxu0 0.0
      %599 = vmatprep.subr.mxu0 0.0
      %600 = vmatpush2.msra.mxu0 0.0
      %601 = vmatprep.subr.mxu0 0.0
      %602 = vmatpush2.msra.mxu0 0.0
      %603 = vmatprep.subr.mxu0 0.0
      %604 = vmatpush2.msra.mxu0 0.0
      %605 = vmatprep.subr.mxu0 0.0
      %606 = vmatpush2.msra.mxu0 0.0
      %607 = vmatprep.subr.mxu0 0.0
      %608 = vmatpush2.msra.mxu0 0.0
      %609 = vmatprep.subr.mxu0 0.0
      %610 = vmatpush2.msra.mxu0 0.0
      %611 = vmatprep.subr.mxu0 0.0
      %612 = vmatpush2.msra.mxu0 0.0
      %613 = vmatprep.subr.mxu0 0.0
      %614 = vmatpush2.msra.mxu0 0.0
      %615 = vmatprep.subr.mxu0 0.0
      %616 = vmatpush2.msra.mxu0 0.0
      %617 = vmatprep.subr.mxu0 0.0
      %618 = vmatpush2.msra.mxu0 0.0
      %619 = vmatprep.mubr.f32.mxu0 0.0
      %620 = vmatmul.mubr.f32.gmra.mxu0 %v437
      %v621 = vpop.f32.mrf.mxu0
      %v622 = vadd.f32 %v542, %v621
      %v623 = vpop.f32.mrf.mxu0
      %624 = vmatprep.mubr.f32.mxu0 0.0
      %625 = vmatmul.mubr.f32.gmra.mxu0 %v438
      %v626 = vpop.f32.mrf.mxu0
      %v627 = vadd.f32 %v547, %v626
      %v628 = vpop.f32.mrf.mxu0
      %629 = vmatprep.mubr.f32.mxu0 0.0
      %630 = vmatmul.mubr.f32.gmra.mxu0 %v439
      %v631 = vpop.f32.mrf.mxu0
      %v632 = vadd.f32 %v552, %v631
      %v633 = vpop.f32.mrf.mxu0
      %634 = vdwg.mxu0
      %v635 = vld [vmem:[%s362 + $0x7] sm:$0xff]
      %v636 = vld [vmem:[%s362 + $0xf] sm:$0xff]
      %v637 = vld [vmem:[%s362 + $0x17] sm:$0xff]
      %v638 = vld [vmem:[%s1 + $0x100] sm:$0xff]
      %v639 = vld [vmem:[%s1 + $0x108] sm:$0xff]
      %v640 = vld [vmem:[%s1 + $0x110] sm:$0xff]
      %v641 = vld [vmem:[%s1 + $0x118] sm:$0xff]
      %v642 = vld [vmem:[%s1 + $0x120] sm:$0xff]
      %v643 = vld [vmem:[%s1 + $0x128] sm:$0xff]
      %v644 = vld [vmem:[%s1 + $0x130] sm:$0xff]
      %v645 = vld [vmem:[%s1 + $0x138] sm:$0xff]
      %v646 = vld [vmem:[%s1 + $0x140] sm:$0xff]
      %v647 = vld [vmem:[%s1 + $0x148] sm:$0xff]
      %v648 = vld [vmem:[%s1 + $0x150] sm:$0xff]
      %v649 = vld [vmem:[%s1 + $0x158] sm:$0xff]
      %v650 = vld [vmem:[%s1 + $0x160] sm:$0xff]
      %v651 = vld [vmem:[%s1 + $0x168] sm:$0xff]
      %v652 = vld [vmem:[%s1 + $0x170] sm:$0xff]
      %v653 = vld [vmem:[%s1 + $0x178] sm:$0xff]
      %654 = vmatprep.subr.mxu0 0.0
      %655 = vmatpush1.msra.mxu0 %v653
      %656 = vmatprep.subr.mxu0 0.0
      %657 = vmatpush1.msra.mxu0 %v652
      %658 = vmatprep.subr.mxu0 0.0
      %659 = vmatpush1.msra.mxu0 %v651
      %660 = vmatprep.subr.mxu0 0.0
      %661 = vmatpush1.msra.mxu0 %v650
      %662 = vmatprep.subr.mxu0 0.0
      %663 = vmatpush1.msra.mxu0 %v649
      %664 = vmatprep.subr.mxu0 0.0
      %665 = vmatpush1.msra.mxu0 %v648
      %666 = vmatprep.subr.mxu0 0.0
      %667 = vmatpush1.msra.mxu0 %v647
      %668 = vmatprep.subr.mxu0 0.0
      %669 = vmatpush1.msra.mxu0 %v646
      %670 = vmatprep.subr.mxu0 0.0
      %671 = vmatpush1.msra.mxu0 %v645
      %672 = vmatprep.subr.mxu0 0.0
      %673 = vmatpush1.msra.mxu0 %v644
      %674 = vmatprep.subr.mxu0 0.0
      %675 = vmatpush1.msra.mxu0 %v643
      %676 = vmatprep.subr.mxu0 0.0
      %677 = vmatpush1.msra.mxu0 %v642
      %678 = vmatprep.subr.mxu0 0.0
      %679 = vmatpush1.msra.mxu0 %v641
      %680 = vmatprep.subr.mxu0 0.0
      %681 = vmatpush1.msra.mxu0 %v640
      %682 = vmatprep.subr.mxu0 0.0
      %683 = vmatpush1.msra.mxu0 %v639
      %684 = vmatprep.subr.mxu0 0.0
      %685 = vmatpush1.msra.mxu0 %v638
      %686 = vmatprep.subr.mxu0 0.0
      %687 = vmatpush2.msra.mxu0 0.0
      %688 = vmatprep.subr.mxu0 0.0
      %689 = vmatpush2.msra.mxu0 0.0
      %690 = vmatprep.subr.mxu0 0.0
      %691 = vmatpush2.msra.mxu0 0.0
      %692 = vmatprep.subr.mxu0 0.0
      %693 = vmatpush2.msra.mxu0 0.0
      %694 = vmatprep.subr.mxu0 0.0
      %695 = vmatpush2.msra.mxu0 0.0
      %696 = vmatprep.subr.mxu0 0.0
      %697 = vmatpush2.msra.mxu0 0.0
      %698 = vmatprep.subr.mxu0 0.0
      %699 = vmatpush2.msra.mxu0 0.0
      %700 = vmatprep.subr.mxu0 0.0
      %701 = vmatpush2.msra.mxu0 0.0
      %702 = vmatprep.subr.mxu0 0.0
      %703 = vmatpush2.msra.mxu0 0.0
      %704 = vmatprep.subr.mxu0 0.0
      %705 = vmatpush2.msra.mxu0 0.0
      %706 = vmatprep.subr.mxu0 0.0
      %707 = vmatpush2.msra.mxu0 0.0
      %708 = vmatprep.subr.mxu0 0.0
      %709 = vmatpush2.msra.mxu0 0.0
      %710 = vmatprep.subr.mxu0 0.0
      %711 = vmatpush2.msra.mxu0 0.0
      %712 = vmatprep.subr.mxu0 0.0
      %713 = vmatpush2.msra.mxu0 0.0
      %714 = vmatprep.subr.mxu0 0.0
      %715 = vmatpush2.msra.mxu0 0.0
      %716 = vmatprep.subr.mxu0 0.0
      %717 = vmatpush2.msra.mxu0 0.0
      %718 = vmatprep.mubr.f32.mxu0 0.0
      %719 = vmatmul.mubr.f32.gmra.mxu0 %v635
      %v720 = vpop.f32.mrf.mxu0
      %v721 = vadd.f32 0.0, %v720
      %v722 = vpop.f32.mrf.mxu0
      %723 = vmatprep.mubr.f32.mxu0 0.0
      %724 = vmatmul.mubr.f32.gmra.mxu0 %v636
      %v725 = vpop.f32.mrf.mxu0
      %v726 = vadd.f32 0.0, %v725
      %v727 = vpop.f32.mrf.mxu0
      %728 = vmatprep.mubr.f32.mxu0 0.0
      %729 = vmatmul.mubr.f32.gmra.mxu0 %v637
      %v730 = vpop.f32.mrf.mxu0
      %v731 = vadd.f32 0.0, %v730
      %v732 = vpop.f32.mrf.mxu0
      %733 = vdwg.mxu0
      %v734 = vadd.f32 %v622, %v721
      %v735 = vadd.f32 %v627, %v726
      %v736 = vadd.f32 %v632, %v731
      %v737 = vld [vmem:[%s362 + $0x8] sm:$0xff]
      %v738 = vld [vmem:[%s362 + $0x10] sm:$0xff]
      %v739 = vld [vmem:[%s362 + $0x18] sm:$0xff]
      %v740 = vld [vmem:[%s1 + $0x180] sm:$0xff]
      %v741 = vld [vmem:[%s1 + $0x188] sm:$0xff]
      %v742 = vld [vmem:[%s1 + $0x190] sm:$0xff]
      %v743 = vld [vmem:[%s1 + $0x198] sm:$0xff]
      %v744 = vld [vmem:[%s1 + $0x1a0] sm:$0xff]
      %v745 = vld [vmem:[%s1 + $0x1a8] sm:$0xff]
      %v746 = vld [vmem:[%s1 + $0x1b0] sm:$0xff]
      %v747 = vld [vmem:[%s1 + $0x1b8] sm:$0xff]
      %v748 = vld [vmem:[%s1 + $0x1c0] sm:$0xff]
      %v749 = vld [vmem:[%s1 + $0x1c8] sm:$0xff]
      %v750 = vld [vmem:[%s1 + $0x1d0] sm:$0xff]
      %v751 = vld [vmem:[%s1 + $0x1d8] sm:$0xff]
      %v752 = vld [vmem:[%s1 + $0x1e0] sm:$0xff]
      %v753 = vld [vmem:[%s1 + $0x1e8] sm:$0xff]
      %v754 = vld [vmem:[%s1 + $0x1f0] sm:$0xff]
      %v755 = vld [vmem:[%s1 + $0x1f8] sm:$0xff]
      %756 = vmatprep.subr.mxu0 0.0
      %757 = vmatpush1.msra.mxu0 %v755
      %758 = vmatprep.subr.mxu0 0.0
      %759 = vmatpush1.msra.mxu0 %v754
      %760 = vmatprep.subr.mxu0 0.0
      %761 = vmatpush1.msra.mxu0 %v753
      %762 = vmatprep.subr.mxu0 0.0
      %763 = vmatpush1.msra.mxu0 %v752
      %764 = vmatprep.subr.mxu0 0.0
      %765 = vmatpush1.msra.mxu0 %v751
      %766 = vmatprep.subr.mxu0 0.0
      %767 = vmatpush1.msra.mxu0 %v750
      %768 = vmatprep.subr.mxu0 0.0
      %769 = vmatpush1.msra.mxu0 %v749
      %770 = vmatprep.subr.mxu0 0.0
      %771 = vmatpush1.msra.mxu0 %v748
      %772 = vmatprep.subr.mxu0 0.0
      %773 = vmatpush1.msra.mxu0 %v747
      %774 = vmatprep.subr.mxu0 0.0
      %775 = vmatpush1.msra.mxu0 %v746
      %776 = vmatprep.subr.mxu0 0.0
      %777 = vmatpush1.msra.mxu0 %v745
      %778 = vmatprep.subr.mxu0 0.0
      %779 = vmatpush1.msra.mxu0 %v744
      %780 = vmatprep.subr.mxu0 0.0
      %781 = vmatpush1.msra.mxu0 %v743
      %782 = vmatprep.subr.mxu0 0.0
      %783 = vmatpush1.msra.mxu0 %v742
      %784 = vmatprep.subr.mxu0 0.0
      %785 = vmatpush1.msra.mxu0 %v741
      %786 = vmatprep.subr.mxu0 0.0
      %787 = vmatpush1.msra.mxu0 %v740
      %788 = vmatprep.subr.mxu0 0.0
      %789 = vmatpush2.msra.mxu0 0.0
      %790 = vmatprep.subr.mxu0 0.0
      %791 = vmatpush2.msra.mxu0 0.0
      %792 = vmatprep.subr.mxu0 0.0
      %793 = vmatpush2.msra.mxu0 0.0
      %794 = vmatprep.subr.mxu0 0.0
      %795 = vmatpush2.msra.mxu0 0.0
      %796 = vmatprep.subr.mxu0 0.0
      %797 = vmatpush2.msra.mxu0 0.0
      %798 = vmatprep.subr.mxu0 0.0
      %799 = vmatpush2.msra.mxu0 0.0
      %800 = vmatprep.subr.mxu0 0.0
      %801 = vmatpush2.msra.mxu0 0.0
      %802 = vmatprep.subr.mxu0 0.0
      %803 = vmatpush2.msra.mxu0 0.0
      %804 = vmatprep.subr.mxu0 0.0
      %805 = vmatpush2.msra.mxu0 0.0
      %806 = vmatprep.subr.mxu0 0.0
      %807 = vmatpush2.msra.mxu0 0.0
      %808 = vmatprep.subr.mxu0 0.0
      %809 = vmatpush2.msra.mxu0 0.0
      %810 = vmatprep.subr.mxu0 0.0
      %811 = vmatpush2.msra.mxu0 0.0
      %812 = vmatprep.subr.mxu0 0.0
      %813 = vmatpush2.msra.mxu0 0.0
      %814 = vmatprep.subr.mxu0 0.0
      %815 = vmatpush2.msra.mxu0 0.0
      %816 = vmatprep.subr.mxu0 0.0
      %817 = vmatpush2.msra.mxu0 0.0
      %818 = vmatprep.subr.mxu0 0.0
      %819 = vmatpush2.msra.mxu0 0.0
      %820 = vmatprep.mubr.f32.mxu0 0.0
      %821 = vmatmul.mubr.f32.gmra.mxu0 %v737
      %v822 = vpop.f32.mrf.mxu0
      %v823 = vadd.f32 0.0, %v822
      %v824 = vpop.f32.mrf.mxu0
      %825 = vmatprep.mubr.f32.mxu0 0.0
      %826 = vmatmul.mubr.f32.gmra.mxu0 %v738
      %v827 = vpop.f32.mrf.mxu0
      %v828 = vadd.f32 0.0, %v827
      %v829 = vpop.f32.mrf.mxu0
      %830 = vmatprep.mubr.f32.mxu0 0.0
      %831 = vmatmul.mubr.f32.gmra.mxu0 %v739
      %v832 = vpop.f32.mrf.mxu0
      %v833 = vadd.f32 0.0, %v832
      %v834 = vpop.f32.mrf.mxu0
      %835 = vdwg.mxu0
      %v836 = vadd.f32 %v734, %v823
      %v837 = vadd.f32 %v735, %v828
      %v838 = vadd.f32 %v736, %v833
      %v839 = vld [vmem:[%s2] sm:$0x1]
      %v841 = vlaneseq
      %v842 = vshrl.u32 %v841, 7
      %v843 = vsub.s32 0, %v842
      %v844 = vrot.slane %v839, %v843
      %v846 = vadd.f32 %v836, %v844
      %v847 = vadd.f32 %v837, %v844
      %v848 = vadd.f32 %v838, %v844
      %v849 = vmax.f32 %v846, 0.0
      %v850 = vmax.f32 %v847, 0.0
      %v851 = vmax.f32 %v848, 0.0
      %v852 = vsel %vm431, 1, 0
      %v853 = vsel %vm432, 1, 0
      %v854 = vsel %vm433, 1, 0
      %vm855 = vcmp.eq.s32.totalorder %v852, 1
      %vm856 = vcmp.eq.s32.totalorder %v853, 1
      %vm857 = vcmp.eq.s32.totalorder %v854, 1
      %v858 = vsel %vm855, %v849, 0.0
      %v859 = vsel %vm856, %v850, 0.0
      %v860 = vsel %vm857, %v851, 0.0
      %861 = vst.msk [vmem:[#allocation2 + $0x8] sm:$0xff] %vm434, %v858
      %862 = vst.msk [vmem:[#allocation2 + $0x10] sm:$0xff] %vm434, %v859
      %863 = vst.msk [vmem:[#allocation2 + $0x18] sm:$0xff] %vm434, %v860
      %v864 = vld [vmem:[#allocation2 + $0x1] sm:$0xff]
      %v865 = vld [vmem:[#allocation2 + $0x9] sm:$0xff]
      %v866 = vld [vmem:[#allocation2 + $0x11] sm:$0xff]
      %v867 = vld [vmem:[#allocation2 + $0x2] sm:$0xff]
      %v868 = vld [vmem:[#allocation2 + $0xa] sm:$0xff]
      %v869 = vld [vmem:[#allocation2 + $0x12] sm:$0xff]
      %v870 = vld [vmem:[#allocation2 + $0x3] sm:$0xff]
      %v871 = vld [vmem:[#allocation2 + $0xb] sm:$0xff]
      %v872 = vld [vmem:[#allocation2 + $0x13] sm:$0xff]
      %v873 = vld [vmem:[#allocation2 + $0x7] sm:$0xff]
      %v874 = vld [vmem:[#allocation2 + $0xf] sm:$0xff]
      %v875 = vld [vmem:[#allocation2 + $0x17] sm:$0xff]
      %v876 = vld [vmem:[#allocation2 + $0x8] sm:$0xff]
      %v877 = vld [vmem:[#allocation2 + $0x10] sm:$0xff]
      %v878 = vld [vmem:[#allocation2 + $0x18] sm:$0xff]
      %v879 = vld [vmem:[#allocation2 + $0x19] sm:$0xff]
      %v880 = vld [vmem:[#allocation2 + $0xd] sm:$0xff]
      %v881 = vld [vmem:[#allocation2 + $0x15] sm:$0xff]
      %v882 = vld [vmem:[#allocation2 + $0x1d] sm:$0xff]
      %v883 = vld [vmem:[#allocation2 + $0xe] sm:$0xff]
      %v884 = vld [vmem:[#allocation2 + $0x16] sm:$0xff]
      %v885 = vld [vmem:[#allocation2 + $0x1e] sm:$0xff]
      %v886 = vld [vmem:[#allocation2 + $0x1f] sm:$0xff]
      %890 = vrot.lane.b32.xlu0 %v867, 64
      %v891 = vpop.permute.xlu0 %890
      %892 = vrot.lane.b32.xlu0 %v868, 64
      %v893 = vpop.permute.xlu0 %892
      %894 = vrot.lane.b32.xlu0 %v869, 64
      %v895 = vpop.permute.xlu0 %894
      %902 = vrot.lane.b32.xlu0 %v873, 64
      %v903 = vpop.permute.xlu0 %902
      %904 = vrot.lane.b32.xlu0 %v874, 64
      %v905 = vpop.permute.xlu0 %904
      %906 = vrot.lane.b32.xlu0 %v875, 64
      %v907 = vpop.permute.xlu0 %906
      %914 = vrot.lane.b32.xlu0 %v865, 64
      %v915 = vpop.permute.xlu0 %914
      %916 = vrot.lane.b32.xlu0 %v866, 64
      %v917 = vpop.permute.xlu0 %916
      %918 = vrot.lane.b32.xlu0 %v879, 64
      %v919 = vpop.permute.xlu0 %918
      %926 = vrot.lane.b32.xlu0 %v883, 64
      %v927 = vpop.permute.xlu0 %926
      %928 = vrot.lane.b32.xlu0 %v884, 64
      %v929 = vpop.permute.xlu0 %928
      %930 = vrot.lane.b32.xlu0 %v885, 64
      %v931 = vpop.permute.xlu0 %930
      %v935 = vsel %vm434, %v864, %v891
      %v936 = vsel %vm434, %v865, %v893
      %v937 = vsel %vm434, %v866, %v895
      %v938 = vsel %vm434, %v870, %v903
      %v939 = vsel %vm434, %v871, %v905
      %v940 = vsel %vm434, %v872, %v907
      %v941 = vsel %vm434, %v876, %v915
      %v942 = vsel %vm434, %v877, %v917
      %v943 = vsel %vm434, %v878, %v919
      %v944 = vsel %vm434, %v880, %v927
      %v945 = vsel %vm434, %v881, %v929
      %v946 = vsel %vm434, %v882, %v931
      %v947 = vld [vmem:[%s3] sm:$0xff]
      %v948 = vld [vmem:[%s3 + $0x8] sm:$0xff]
      %v949 = vld [vmem:[%s3 + $0x10] sm:$0xff]
      %v950 = vld [vmem:[%s3 + $0x18] sm:$0xff]
      %v951 = vld [vmem:[%s3 + $0x20] sm:$0xff]
      %v952 = vld [vmem:[%s3 + $0x28] sm:$0xff]
      %v953 = vld [vmem:[%s3 + $0x30] sm:$0xff]
      %v954 = vld [vmem:[%s3 + $0x38] sm:$0xff]
      %v955 = vld [vmem:[%s3 + $0x40] sm:$0xff]
      %v956 = vld [vmem:[%s3 + $0x48] sm:$0xff]
      %v957 = vld [vmem:[%s3 + $0x50] sm:$0xff]
      %v958 = vld [vmem:[%s3 + $0x58] sm:$0xff]
      %v959 = vld [vmem:[%s3 + $0x60] sm:$0xff]
      %v960 = vld [vmem:[%s3 + $0x68] sm:$0xff]
      %v961 = vld [vmem:[%s3 + $0x70] sm:$0xff]
      %v962 = vld [vmem:[%s3 + $0x78] sm:$0xff]
      %v963 = vld [vmem:[%s3 + $0x80] sm:$0xff]
      %v964 = vld [vmem:[%s3 + $0x88] sm:$0xff]
      %v965 = vld [vmem:[%s3 + $0x90] sm:$0xff]
      %v966 = vld [vmem:[%s3 + $0x98] sm:$0xff]
      %v967 = vld [vmem:[%s3 + $0xa0] sm:$0xff]
      %v968 = vld [vmem:[%s3 + $0xa8] sm:$0xff]
      %v969 = vld [vmem:[%s3 + $0xb0] sm:$0xff]
      %v970 = vld [vmem:[%s3 + $0xb8] sm:$0xff]
      %v971 = vld [vmem:[%s3 + $0xc0] sm:$0xff]
      %v972 = vld [vmem:[%s3 + $0xc8] sm:$0xff]
      %v973 = vld [vmem:[%s3 + $0xd0] sm:$0xff]
      %v974 = vld [vmem:[%s3 + $0xd8] sm:$0xff]
      %v975 = vld [vmem:[%s3 + $0xe0] sm:$0xff]
      %v976 = vld [vmem:[%s3 + $0xe8] sm:$0xff]
      %v977 = vld [vmem:[%s3 + $0xf0] sm:$0xff]
      %v978 = vld [vmem:[%s3 + $0xf8] sm:$0xff]
      %v979 = vld [vmem:[%s3 + $0x100] sm:$0xff]
      %v980 = vld [vmem:[%s3 + $0x108] sm:$0xff]
      %v981 = vld [vmem:[%s3 + $0x110] sm:$0xff]
      %v982 = vld [vmem:[%s3 + $0x118] sm:$0xff]
      %v983 = vld [vmem:[%s3 + $0x120] sm:$0xff]
      %v984 = vld [vmem:[%s3 + $0x128] sm:$0xff]
      %v985 = vld [vmem:[%s3 + $0x130] sm:$0xff]
      %v986 = vld [vmem:[%s3 + $0x138] sm:$0xff]
      %v987 = vld [vmem:[%s3 + $0x140] sm:$0xff]
      %v988 = vld [vmem:[%s3 + $0x148] sm:$0xff]
      %v989 = vld [vmem:[%s3 + $0x150] sm:$0xff]
      %v990 = vld [vmem:[%s3 + $0x158] sm:$0xff]
      %v991 = vld [vmem:[%s3 + $0x160] sm:$0xff]
      %v992 = vld [vmem:[%s3 + $0x168] sm:$0xff]
      %v993 = vld [vmem:[%s3 + $0x170] sm:$0xff]
      %v994 = vld [vmem:[%s3 + $0x178] sm:$0xff]
      %v995 = vld [vmem:[%s3 + $0x180] sm:$0xff]
      %v996 = vld [vmem:[%s3 + $0x188] sm:$0xff]
      %v997 = vld [vmem:[%s3 + $0x190] sm:$0xff]
      %v998 = vld [vmem:[%s3 + $0x198] sm:$0xff]
      %v999 = vld [vmem:[%s3 + $0x1a0] sm:$0xff]
      %v1000 = vld [vmem:[%s3 + $0x1a8] sm:$0xff]
      %v1001 = vld [vmem:[%s3 + $0x1b0] sm:$0xff]
      %v1002 = vld [vmem:[%s3 + $0x1b8] sm:$0xff]
      %v1003 = vld [vmem:[%s3 + $0x1c0] sm:$0xff]
      %v1004 = vld [vmem:[%s3 + $0x1c8] sm:$0xff]
      %v1005 = vld [vmem:[%s3 + $0x1d0] sm:$0xff]
      %v1006 = vld [vmem:[%s3 + $0x1d8] sm:$0xff]
      %v1007 = vld [vmem:[%s3 + $0x1e0] sm:$0xff]
      %v1008 = vld [vmem:[%s3 + $0x1e8] sm:$0xff]
      %v1009 = vld [vmem:[%s3 + $0x1f0] sm:$0xff]
      %v1010 = vld [vmem:[%s3 + $0x1f8] sm:$0xff]
      %v1011 = vld [vmem:[%s3 + $0x200] sm:$0xff]
      %v1012 = vld [vmem:[%s3 + $0x208] sm:$0xff]
      %v1013 = vld [vmem:[%s3 + $0x210] sm:$0xff]
      %v1014 = vld [vmem:[%s3 + $0x218] sm:$0xff]
      %v1015 = vld [vmem:[%s3 + $0x220] sm:$0xff]
      %v1016 = vld [vmem:[%s3 + $0x228] sm:$0xff]
      %v1017 = vld [vmem:[%s3 + $0x230] sm:$0xff]
      %v1018 = vld [vmem:[%s3 + $0x238] sm:$0xff]
      %v1019 = vld [vmem:[%s4] sm:$0x1]
      %v1021 = vlaneseq
      %v1022 = vshrl.u32 %v1021, 7
      %v1023 = vsub.s32 0, %v1022
      %v1024 = vrot.slane %v1019, %v1023
      %v1026 = vsel %vm434, %v874, 0
      %v1028 = vsel %vm434, %v875, 0
      %v1031 = vsel %vm434, %v886, 0
      %1033 = vmatprep.subr.mxu0 0.0
      %1034 = vmatpush1.msra.mxu0 %v962
      %1035 = vmatprep.subr.mxu0 0.0
      %1036 = vmatpush1.msra.mxu0 %v961
      %1037 = vmatprep.subr.mxu0 0.0
      %1038 = vmatpush1.msra.mxu0 %v960
      %1039 = vmatprep.subr.mxu0 0.0
      %1040 = vmatpush1.msra.mxu0 %v959
      %1041 = vmatprep.subr.mxu0 0.0
      %1042 = vmatpush1.msra.mxu0 %v958
      %1043 = vmatprep.subr.mxu0 0.0
      %1044 = vmatpush1.msra.mxu0 %v957
      %1045 = vmatprep.subr.mxu0 0.0
      %1046 = vmatpush1.msra.mxu0 %v956
      %1047 = vmatprep.subr.mxu0 0.0
      %1048 = vmatpush1.msra.mxu0 %v955
      %1049 = vmatprep.subr.mxu0 0.0
      %1050 = vmatpush1.msra.mxu0 %v954
      %1051 = vmatprep.subr.mxu0 0.0
      %1052 = vmatpush1.msra.mxu0 %v953
      %1053 = vmatprep.subr.mxu0 0.0
      %1054 = vmatpush1.msra.mxu0 %v952
      %1055 = vmatprep.subr.mxu0 0.0
      %1056 = vmatpush1.msra.mxu0 %v951
      %1057 = vmatprep.subr.mxu0 0.0
      %1058 = vmatpush1.msra.mxu0 %v950
      %1059 = vmatprep.subr.mxu0 0.0
      %1060 = vmatpush1.msra.mxu0 %v949
      %1061 = vmatprep.subr.mxu0 0.0
      %1062 = vmatpush1.msra.mxu0 %v948
      %1063 = vmatprep.subr.mxu0 0.0
      %1064 = vmatpush1.msra.mxu0 %v947
      %1065 = vmatprep.subr.mxu0 0.0
      %1066 = vmatpush2.msra.mxu0 %v978
      %1067 = vmatprep.subr.mxu0 0.0
      %1068 = vmatpush2.msra.mxu0 %v977
      %1069 = vmatprep.subr.mxu0 0.0
      %1070 = vmatpush2.msra.mxu0 %v976
      %1071 = vmatprep.subr.mxu0 0.0
      %1072 = vmatpush2.msra.mxu0 %v975
      %1073 = vmatprep.subr.mxu0 0.0
      %1074 = vmatpush2.msra.mxu0 %v974
      %1075 = vmatprep.subr.mxu0 0.0
      %1076 = vmatpush2.msra.mxu0 %v973
      %1077 = vmatprep.subr.mxu0 0.0
      %1078 = vmatpush2.msra.mxu0 %v972
      %1079 = vmatprep.subr.mxu0 0.0
      %1080 = vmatpush2.msra.mxu0 %v971
      %1081 = vmatprep.subr.mxu0 0.0
      %1082 = vmatpush2.msra.mxu0 %v970
      %1083 = vmatprep.subr.mxu0 0.0
      %1084 = vmatpush2.msra.mxu0 %v969
      %1085 = vmatprep.subr.mxu0 0.0
      %1086 = vmatpush2.msra.mxu0 %v968
      %1087 = vmatprep.subr.mxu0 0.0
      %1088 = vmatpush2.msra.mxu0 %v967
      %1089 = vmatprep.subr.mxu0 0.0
      %1090 = vmatpush2.msra.mxu0 %v966
      %1091 = vmatprep.subr.mxu0 0.0
      %1092 = vmatpush2.msra.mxu0 %v965
      %1093 = vmatprep.subr.mxu0 0.0
      %1094 = vmatpush2.msra.mxu0 %v964
      %1095 = vmatprep.subr.mxu0 0.0
      %1096 = vmatpush2.msra.mxu0 %v963
      %1097 = vmatprep.mubr.f32.mxu0 %v938
      %1098 = vmatmul.mubr.f32.gmra.mxu0 %v935
      %v1099 = vpop.f32.mrf.mxu0
      %v1100 = vadd.f32 %v1024, %v1099
      %v1101 = vpop.f32.mrf.mxu0
      %1102 = vmatprep.mubr.f32.mxu0 %v939
      %1103 = vmatmul.mubr.f32.gmra.mxu0 %v936
      %v1104 = vpop.f32.mrf.mxu0
      %v1105 = vadd.f32 %v1024, %v1104
      %v1106 = vpop.f32.mrf.mxu0
      %1107 = vmatprep.mubr.f32.mxu0 %v940
      %1108 = vmatmul.mubr.f32.gmra.mxu0 %v937
      %v1109 = vpop.f32.mrf.mxu0
      %v1110 = vadd.f32 %v1024, %v1109
      %v1111 = vpop.f32.mrf.mxu0
      %1112 = vdwg.mxu0
      %1113 = vmatprep.subr.mxu0 0.0
      %1114 = vmatpush1.msra.mxu0 %v994
      %1115 = vmatprep.subr.mxu0 0.0
      %1116 = vmatpush1.msra.mxu0 %v993
      %1117 = vmatprep.subr.mxu0 0.0
      %1118 = vmatpush1.msra.mxu0 %v992
      %1119 = vmatprep.subr.mxu0 0.0
      %1120 = vmatpush1.msra.mxu0 %v991
      %1121 = vmatprep.subr.mxu0 0.0
      %1122 = vmatpush1.msra.mxu0 %v990
      %1123 = vmatprep.subr.mxu0 0.0
      %1124 = vmatpush1.msra.mxu0 %v989
      %1125 = vmatprep.subr.mxu0 0.0
      %1126 = vmatpush1.msra.mxu0 %v988
      %1127 = vmatprep.subr.mxu0 0.0
      %1128 = vmatpush1.msra.mxu0 %v987
      %1129 = vmatprep.subr.mxu0 0.0
      %1130 = vmatpush1.msra.mxu0 %v986
      %1131 = vmatprep.subr.mxu0 0.0
      %1132 = vmatpush1.msra.mxu0 %v985
      %1133 = vmatprep.subr.mxu0 0.0
      %1134 = vmatpush1.msra.mxu0 %v984
      %1135 = vmatprep.subr.mxu0 0.0
      %1136 = vmatpush1.msra.mxu0 %v983
      %1137 = vmatprep.subr.mxu0 0.0
      %1138 = vmatpush1.msra.mxu0 %v982
      %1139 = vmatprep.subr.mxu0 0.0
      %1140 = vmatpush1.msra.mxu0 %v981
      %1141 = vmatprep.subr.mxu0 0.0
      %1142 = vmatpush1.msra.mxu0 %v980
      %1143 = vmatprep.subr.mxu0 0.0
      %1144 = vmatpush1.msra.mxu0 %v979
      %1145 = vmatprep.subr.mxu0 0.0
      %1146 = vmatpush2.msra.mxu0 %v1010
      %1147 = vmatprep.subr.mxu0 0.0
      %1148 = vmatpush2.msra.mxu0 %v1009
      %1149 = vmatprep.subr.mxu0 0.0
      %1150 = vmatpush2.msra.mxu0 %v1008
      %1151 = vmatprep.subr.mxu0 0.0
      %1152 = vmatpush2.msra.mxu0 %v1007
      %1153 = vmatprep.subr.mxu0 0.0
      %1154 = vmatpush2.msra.mxu0 %v1006
      %1155 = vmatprep.subr.mxu0 0.0
      %1156 = vmatpush2.msra.mxu0 %v1005
      %1157 = vmatprep.subr.mxu0 0.0
      %1158 = vmatpush2.msra.mxu0 %v1004
      %1159 = vmatprep.subr.mxu0 0.0
      %1160 = vmatpush2.msra.mxu0 %v1003
      %1161 = vmatprep.subr.mxu0 0.0
      %1162 = vmatpush2.msra.mxu0 %v1002
      %1163 = vmatprep.subr.mxu0 0.0
      %1164 = vmatpush2.msra.mxu0 %v1001
      %1165 = vmatprep.subr.mxu0 0.0
      %1166 = vmatpush2.msra.mxu0 %v1000
      %1167 = vmatprep.subr.mxu0 0.0
      %1168 = vmatpush2.msra.mxu0 %v999
      %1169 = vmatprep.subr.mxu0 0.0
      %1170 = vmatpush2.msra.mxu0 %v998
      %1171 = vmatprep.subr.mxu0 0.0
      %1172 = vmatpush2.msra.mxu0 %v997
      %1173 = vmatprep.subr.mxu0 0.0
      %1174 = vmatpush2.msra.mxu0 %v996
      %1175 = vmatprep.subr.mxu0 0.0
      %1176 = vmatpush2.msra.mxu0 %v995
      %1177 = vmatprep.mubr.f32.mxu0 %v944
      %1178 = vmatmul.mubr.f32.gmra.mxu0 %v941
      %v1179 = vpop.f32.mrf.mxu0
      %v1180 = vadd.f32 %v1100, %v1179
      %v1181 = vpop.f32.mrf.mxu0
      %1182 = vmatprep.mubr.f32.mxu0 %v945
      %1183 = vmatmul.mubr.f32.gmra.mxu0 %v942
      %v1184 = vpop.f32.mrf.mxu0
      %v1185 = vadd.f32 %v1105, %v1184
      %v1186 = vpop.f32.mrf.mxu0
      %1187 = vmatprep.mubr.f32.mxu0 %v946
      %1188 = vmatmul.mubr.f32.gmra.mxu0 %v943
      %v1189 = vpop.f32.mrf.mxu0
      %v1190 = vadd.f32 %v1110, %v1189
      %v1191 = vpop.f32.mrf.mxu0
      %1192 = vdwg.mxu0
      %1193 = vmatprep.subr.mxu0 0.0
      %1194 = vmatpush1.msra.mxu0 0.0
      %1195 = vmatprep.subr.mxu0 0.0
      %1196 = vmatpush1.msra.mxu0 0.0
      %1197 = vmatprep.subr.mxu0 0.0
      %1198 = vmatpush1.msra.mxu0 0.0
      %1199 = vmatprep.subr.mxu0 0.0
      %1200 = vmatpush1.msra.mxu0 0.0
      %1201 = vmatprep.subr.mxu0 0.0
      %1202 = vmatpush1.msra.mxu0 0.0
      %1203 = vmatprep.subr.mxu0 0.0
      %1204 = vmatpush1.msra.mxu0 0.0
      %1205 = vmatprep.subr.mxu0 0.0
      %1206 = vmatpush1.msra.mxu0 0.0
      %1207 = vmatprep.subr.mxu0 0.0
      %1208 = vmatpush1.msra.mxu0 0.0
      %1209 = vmatprep.subr.mxu0 0.0
      %1210 = vmatpush1.msra.mxu0 %v1018
      %1211 = vmatprep.subr.mxu0 0.0
      %1212 = vmatpush1.msra.mxu0 %v1017
      %1213 = vmatprep.subr.mxu0 0.0
      %1214 = vmatpush1.msra.mxu0 %v1016
      %1215 = vmatprep.subr.mxu0 0.0
      %1216 = vmatpush1.msra.mxu0 %v1015
      %1217 = vmatprep.subr.mxu0 0.0
      %1218 = vmatpush1.msra.mxu0 %v1014
      %1219 = vmatprep.subr.mxu0 0.0
      %1220 = vmatpush1.msra.mxu0 %v1013
      %1221 = vmatprep.subr.mxu0 0.0
      %1222 = vmatpush1.msra.mxu0 %v1012
      %1223 = vmatprep.subr.mxu0 0.0
      %1224 = vmatpush1.msra.mxu0 %v1011
      %1225 = vmatprep.subr.mxu0 0.0
      %1226 = vmatpush2.msra.mxu0 0.0
      %1227 = vmatprep.subr.mxu0 0.0
      %1228 = vmatpush2.msra.mxu0 0.0
      %1229 = vmatprep.subr.mxu0 0.0
      %1230 = vmatpush2.msra.mxu0 0.0
      %1231 = vmatprep.subr.mxu0 0.0
      %1232 = vmatpush2.msra.mxu0 0.0
      %1233 = vmatprep.subr.mxu0 0.0
      %1234 = vmatpush2.msra.mxu0 0.0
      %1235 = vmatprep.subr.mxu0 0.0
      %1236 = vmatpush2.msra.mxu0 0.0
      %1237 = vmatprep.subr.mxu0 0.0
      %1238 = vmatpush2.msra.mxu0 0.0
      %1239 = vmatprep.subr.mxu0 0.0
      %1240 = vmatpush2.msra.mxu0 0.0
      %1241 = vmatprep.subr.mxu0 0.0
      %1242 = vmatpush2.msra.mxu0 0.0
      %1243 = vmatprep.subr.mxu0 0.0
      %1244 = vmatpush2.msra.mxu0 0.0
      %1245 = vmatprep.subr.mxu0 0.0
      %1246 = vmatpush2.msra.mxu0 0.0
      %1247 = vmatprep.subr.mxu0 0.0
      %1248 = vmatpush2.msra.mxu0 0.0
      %1249 = vmatprep.subr.mxu0 0.0
      %1250 = vmatpush2.msra.mxu0 0.0
      %1251 = vmatprep.subr.mxu0 0.0
      %1252 = vmatpush2.msra.mxu0 0.0
      %1253 = vmatprep.subr.mxu0 0.0
      %1254 = vmatpush2.msra.mxu0 0.0
      %1255 = vmatprep.subr.mxu0 0.0
      %1256 = vmatpush2.msra.mxu0 0.0
      %1257 = vmatprep.mubr.f32.mxu0 0.0
      %1258 = vmatmul.mubr.f32.gmra.mxu0 %v1026
      %v1259 = vpop.f32.mrf.mxu0
      %v1260 = vadd.f32 %v1180, %v1259
      %v1261 = vpop.f32.mrf.mxu0
      %1262 = vmatprep.mubr.f32.mxu0 0.0
      %1263 = vmatmul.mubr.f32.gmra.mxu0 %v1028
      %v1264 = vpop.f32.mrf.mxu0
      %v1265 = vadd.f32 %v1185, %v1264
      %v1266 = vpop.f32.mrf.mxu0
      %1267 = vmatprep.mubr.f32.mxu0 0.0
      %1268 = vmatmul.mubr.f32.gmra.mxu0 %v1031
      %v1269 = vpop.f32.mrf.mxu0
      %v1270 = vadd.f32 %v1190, %v1269
      %v1271 = vpop.f32.mrf.mxu0
      %1272 = vdwg.mxu0
      %v1273 = vmax.f32 %v1260, 0.0
      %v1274 = vmax.f32 %v1265, 0.0
      %v1275 = vmax.f32 %v1270, 0.0
      %v1276 = vsel %vm855, %v1273, 0.0
      %v1277 = vsel %vm856, %v1274, 0.0
      %v1278 = vsel %vm857, %v1275, 0.0
      %1279 = vst.msk [vmem:[#allocation2 + $0x8] sm:$0xff] %vm434, %v1276
      %1280 = vst.msk [vmem:[#allocation2 + $0x10] sm:$0xff] %vm434, %v1277
      %1281 = vst.msk [vmem:[#allocation2 + $0x18] sm:$0xff] %vm434, %v1278
      %v1282 = vld [vmem:[#allocation2 + $0x1] sm:$0xff]
      %v1283 = vld [vmem:[#allocation2 + $0x9] sm:$0xff]
      %v1284 = vld [vmem:[#allocation2 + $0x11] sm:$0xff]
      %v1285 = vld [vmem:[#allocation2 + $0x2] sm:$0xff]
      %v1286 = vld [vmem:[#allocation2 + $0xa] sm:$0xff]
      %v1287 = vld [vmem:[#allocation2 + $0x12] sm:$0xff]
      %v1288 = vld [vmem:[#allocation2 + $0x3] sm:$0xff]
      %v1289 = vld [vmem:[#allocation2 + $0xb] sm:$0xff]
      %v1290 = vld [vmem:[#allocation2 + $0x13] sm:$0xff]
      %v1291 = vld [vmem:[#allocation2 + $0x7] sm:$0xff]
      %v1292 = vld [vmem:[#allocation2 + $0xf] sm:$0xff]
      %v1293 = vld [vmem:[#allocation2 + $0x17] sm:$0xff]
      %v1294 = vld [vmem:[#allocation2 + $0x8] sm:$0xff]
      %v1295 = vld [vmem:[#allocation2 + $0x10] sm:$0xff]
      %v1296 = vld [vmem:[#allocation2 + $0x18] sm:$0xff]
      %v1297 = vld [vmem:[#allocation2 + $0x19] sm:$0xff]
      %v1298 = vld [vmem:[#allocation2 + $0xd] sm:$0xff]
      %v1299 = vld [vmem:[#allocation2 + $0x15] sm:$0xff]
      %v1300 = vld [vmem:[#allocation2 + $0x1d] sm:$0xff]
      %v1301 = vld [vmem:[#allocation2 + $0xe] sm:$0xff]
      %v1302 = vld [vmem:[#allocation2 + $0x16] sm:$0xff]
      %v1303 = vld [vmem:[#allocation2 + $0x1e] sm:$0xff]
      %v1304 = vld [vmem:[#allocation2 + $0x1f] sm:$0xff]
      %1308 = vrot.lane.b32.xlu0 %v1285, 64
      %v1309 = vpop.permute.xlu0 %1308
      %1310 = vrot.lane.b32.xlu0 %v1286, 64
      %v1311 = vpop.permute.xlu0 %1310
      %1312 = vrot.lane.b32.xlu0 %v1287, 64
      %v1313 = vpop.permute.xlu0 %1312
      %1320 = vrot.lane.b32.xlu0 %v1291, 64
      %v1321 = vpop.permute.xlu0 %1320
      %1322 = vrot.lane.b32.xlu0 %v1292, 64
      %v1323 = vpop.permute.xlu0 %1322
      %1324 = vrot.lane.b32.xlu0 %v1293, 64
      %v1325 = vpop.permute.xlu0 %1324
      %1332 = vrot.lane.b32.xlu0 %v1283, 64
      %v1333 = vpop.permute.xlu0 %1332
      %1334 = vrot.lane.b32.xlu0 %v1284, 64
      %v1335 = vpop.permute.xlu0 %1334
      %1336 = vrot.lane.b32.xlu0 %v1297, 64
      %v1337 = vpop.permute.xlu0 %1336
      %1344 = vrot.lane.b32.xlu0 %v1301, 64
      %v1345 = vpop.permute.xlu0 %1344
      %1346 = vrot.lane.b32.xlu0 %v1302, 64
      %v1347 = vpop.permute.xlu0 %1346
      %1348 = vrot.lane.b32.xlu0 %v1303, 64
      %v1349 = vpop.permute.xlu0 %1348
      %v1353 = vsel %vm434, %v1282, %v1309
      %v1354 = vsel %vm434, %v1283, %v1311
      %v1355 = vsel %vm434, %v1284, %v1313
      %v1356 = vsel %vm434, %v1288, %v1321
      %v1357 = vsel %vm434, %v1289, %v1323
      %v1358 = vsel %vm434, %v1290, %v1325
      %v1359 = vsel %vm434, %v1294, %v1333
      %v1360 = vsel %vm434, %v1295, %v1335
      %v1361 = vsel %vm434, %v1296, %v1337
      %v1362 = vsel %vm434, %v1298, %v1345
      %v1363 = vsel %vm434, %v1299, %v1347
      %v1364 = vsel %vm434, %v1300, %v1349
      %v1365 = vld [vmem:[%s5] sm:$0xff]
      %v1366 = vld [vmem:[%s5 + $0x8] sm:$0xff]
      %v1367 = vld [vmem:[%s5 + $0x10] sm:$0xff]
      %v1368 = vld [vmem:[%s5 + $0x18] sm:$0xff]
      %v1369 = vld [vmem:[%s5 + $0x20] sm:$0xff]
      %v1370 = vld [vmem:[%s5 + $0x28] sm:$0xff]
      %v1371 = vld [vmem:[%s5 + $0x30] sm:$0xff]
      %v1372 = vld [vmem:[%s5 + $0x38] sm:$0xff]
      %v1373 = vld [vmem:[%s5 + $0x40] sm:$0xff]
      %v1374 = vld [vmem:[%s5 + $0x48] sm:$0xff]
      %v1375 = vld [vmem:[%s5 + $0x50] sm:$0xff]
      %v1376 = vld [vmem:[%s5 + $0x58] sm:$0xff]
      %v1377 = vld [vmem:[%s5 + $0x60] sm:$0xff]
      %v1378 = vld [vmem:[%s5 + $0x68] sm:$0xff]
      %v1379 = vld [vmem:[%s5 + $0x70] sm:$0xff]
      %v1380 = vld [vmem:[%s5 + $0x78] sm:$0xff]
      %v1381 = vld [vmem:[%s5 + $0x80] sm:$0xff]
      %v1382 = vld [vmem:[%s5 + $0x88] sm:$0xff]
      %v1383 = vld [vmem:[%s5 + $0x90] sm:$0xff]
      %v1384 = vld [vmem:[%s5 + $0x98] sm:$0xff]
      %v1385 = vld [vmem:[%s5 + $0xa0] sm:$0xff]
      %v1386 = vld [vmem:[%s5 + $0xa8] sm:$0xff]
      %v1387 = vld [vmem:[%s5 + $0xb0] sm:$0xff]
      %v1388 = vld [vmem:[%s5 + $0xb8] sm:$0xff]
      %v1389 = vld [vmem:[%s5 + $0xc0] sm:$0xff]
      %v1390 = vld [vmem:[%s5 + $0xc8] sm:$0xff]
      %v1391 = vld [vmem:[%s5 + $0xd0] sm:$0xff]
      %v1392 = vld [vmem:[%s5 + $0xd8] sm:$0xff]
      %v1393 = vld [vmem:[%s5 + $0xe0] sm:$0xff]
      %v1394 = vld [vmem:[%s5 + $0xe8] sm:$0xff]
      %v1395 = vld [vmem:[%s5 + $0xf0] sm:$0xff]
      %v1396 = vld [vmem:[%s5 + $0xf8] sm:$0xff]
      %v1397 = vld [vmem:[%s5 + $0x100] sm:$0xff]
      %v1398 = vld [vmem:[%s5 + $0x108] sm:$0xff]
      %v1399 = vld [vmem:[%s5 + $0x110] sm:$0xff]
      %v1400 = vld [vmem:[%s5 + $0x118] sm:$0xff]
      %v1401 = vld [vmem:[%s5 + $0x120] sm:$0xff]
      %v1402 = vld [vmem:[%s5 + $0x128] sm:$0xff]
      %v1403 = vld [vmem:[%s5 + $0x130] sm:$0xff]
      %v1404 = vld [vmem:[%s5 + $0x138] sm:$0xff]
      %v1405 = vld [vmem:[%s5 + $0x140] sm:$0xff]
      %v1406 = vld [vmem:[%s5 + $0x148] sm:$0xff]
      %v1407 = vld [vmem:[%s5 + $0x150] sm:$0xff]
      %v1408 = vld [vmem:[%s5 + $0x158] sm:$0xff]
      %v1409 = vld [vmem:[%s5 + $0x160] sm:$0xff]
      %v1410 = vld [vmem:[%s5 + $0x168] sm:$0xff]
      %v1411 = vld [vmem:[%s5 + $0x170] sm:$0xff]
      %v1412 = vld [vmem:[%s5 + $0x178] sm:$0xff]
      %v1413 = vld [vmem:[%s5 + $0x180] sm:$0xff]
      %v1414 = vld [vmem:[%s5 + $0x188] sm:$0xff]
      %v1415 = vld [vmem:[%s5 + $0x190] sm:$0xff]
      %v1416 = vld [vmem:[%s5 + $0x198] sm:$0xff]
      %v1417 = vld [vmem:[%s5 + $0x1a0] sm:$0xff]
      %v1418 = vld [vmem:[%s5 + $0x1a8] sm:$0xff]
      %v1419 = vld [vmem:[%s5 + $0x1b0] sm:$0xff]
      %v1420 = vld [vmem:[%s5 + $0x1b8] sm:$0xff]
      %v1421 = vld [vmem:[%s5 + $0x1c0] sm:$0xff]
      %v1422 = vld [vmem:[%s5 + $0x1c8] sm:$0xff]
      %v1423 = vld [vmem:[%s5 + $0x1d0] sm:$0xff]
      %v1424 = vld [vmem:[%s5 + $0x1d8] sm:$0xff]
      %v1425 = vld [vmem:[%s5 + $0x1e0] sm:$0xff]
      %v1426 = vld [vmem:[%s5 + $0x1e8] sm:$0xff]
      %v1427 = vld [vmem:[%s5 + $0x1f0] sm:$0xff]
      %v1428 = vld [vmem:[%s5 + $0x1f8] sm:$0xff]
      %v1429 = vld [vmem:[%s5 + $0x200] sm:$0xff]
      %v1430 = vld [vmem:[%s5 + $0x208] sm:$0xff]
      %v1431 = vld [vmem:[%s5 + $0x210] sm:$0xff]
      %v1432 = vld [vmem:[%s5 + $0x218] sm:$0xff]
      %v1433 = vld [vmem:[%s5 + $0x220] sm:$0xff]
      %v1434 = vld [vmem:[%s5 + $0x228] sm:$0xff]
      %v1435 = vld [vmem:[%s5 + $0x230] sm:$0xff]
      %v1436 = vld [vmem:[%s5 + $0x238] sm:$0xff]
      %v1437 = vld [vmem:[%s6] sm:$0x1]
      %v1439 = vlaneseq
      %v1440 = vshrl.u32 %v1439, 7
      %v1441 = vsub.s32 0, %v1440
      %v1442 = vrot.slane %v1437, %v1441
      %v1444 = vsel %vm434, %v1292, 0
      %v1446 = vsel %vm434, %v1293, 0
      %v1449 = vsel %vm434, %v1304, 0
      %1451 = vmatprep.subr.mxu0 0.0
      %1452 = vmatpush1.msra.mxu0 %v1380
      %1453 = vmatprep.subr.mxu0 0.0
      %1454 = vmatpush1.msra.mxu0 %v1379
      %1455 = vmatprep.subr.mxu0 0.0
      %1456 = vmatpush1.msra.mxu0 %v1378
      %1457 = vmatprep.subr.mxu0 0.0
      %1458 = vmatpush1.msra.mxu0 %v1377
      %1459 = vmatprep.subr.mxu0 0.0
      %1460 = vmatpush1.msra.mxu0 %v1376
      %1461 = vmatprep.subr.mxu0 0.0
      %1462 = vmatpush1.msra.mxu0 %v1375
      %1463 = vmatprep.subr.mxu0 0.0
      %1464 = vmatpush1.msra.mxu0 %v1374
      %1465 = vmatprep.subr.mxu0 0.0
      %1466 = vmatpush1.msra.mxu0 %v1373
      %1467 = vmatprep.subr.mxu0 0.0
      %1468 = vmatpush1.msra.mxu0 %v1372
      %1469 = vmatprep.subr.mxu0 0.0
      %1470 = vmatpush1.msra.mxu0 %v1371
      %1471 = vmatprep.subr.mxu0 0.0
      %1472 = vmatpush1.msra.mxu0 %v1370
      %1473 = vmatprep.subr.mxu0 0.0
      %1474 = vmatpush1.msra.mxu0 %v1369
      %1475 = vmatprep.subr.mxu0 0.0
      %1476 = vmatpush1.msra.mxu0 %v1368
      %1477 = vmatprep.subr.mxu0 0.0
      %1478 = vmatpush1.msra.mxu0 %v1367
      %1479 = vmatprep.subr.mxu0 0.0
      %1480 = vmatpush1.msra.mxu0 %v1366
      %1481 = vmatprep.subr.mxu0 0.0
      %1482 = vmatpush1.msra.mxu0 %v1365
      %1483 = vmatprep.subr.mxu0 0.0
      %1484 = vmatpush2.msra.mxu0 %v1396
      %1485 = vmatprep.subr.mxu0 0.0
      %1486 = vmatpush2.msra.mxu0 %v1395
      %1487 = vmatprep.subr.mxu0 0.0
      %1488 = vmatpush2.msra.mxu0 %v1394
      %1489 = vmatprep.subr.mxu0 0.0
      %1490 = vmatpush2.msra.mxu0 %v1393
      %1491 = vmatprep.subr.mxu0 0.0
      %1492 = vmatpush2.msra.mxu0 %v1392
      %1493 = vmatprep.subr.mxu0 0.0
      %1494 = vmatpush2.msra.mxu0 %v1391
      %1495 = vmatprep.subr.mxu0 0.0
      %1496 = vmatpush2.msra.mxu0 %v1390
      %1497 = vmatprep.subr.mxu0 0.0
      %1498 = vmatpush2.msra.mxu0 %v1389
      %1499 = vmatprep.subr.mxu0 0.0
      %1500 = vmatpush2.msra.mxu0 %v1388
      %1501 = vmatprep.subr.mxu0 0.0
      %1502 = vmatpush2.msra.mxu0 %v1387
      %1503 = vmatprep.subr.mxu0 0.0
      %1504 = vmatpush2.msra.mxu0 %v1386
      %1505 = vmatprep.subr.mxu0 0.0
      %1506 = vmatpush2.msra.mxu0 %v1385
      %1507 = vmatprep.subr.mxu0 0.0
      %1508 = vmatpush2.msra.mxu0 %v1384
      %1509 = vmatprep.subr.mxu0 0.0
      %1510 = vmatpush2.msra.mxu0 %v1383
      %1511 = vmatprep.subr.mxu0 0.0
      %1512 = vmatpush2.msra.mxu0 %v1382
      %1513 = vmatprep.subr.mxu0 0.0
      %1514 = vmatpush2.msra.mxu0 %v1381
      %1515 = vmatprep.mubr.f32.mxu0 %v1356
      %1516 = vmatmul.mubr.f32.gmra.mxu0 %v1353
      %v1517 = vpop.f32.mrf.mxu0
      %v1518 = vadd.f32 %v1442, %v1517
      %v1519 = vpop.f32.mrf.mxu0
      %1520 = vmatprep.mubr.f32.mxu0 %v1357
      %1521 = vmatmul.mubr.f32.gmra.mxu0 %v1354
      %v1522 = vpop.f32.mrf.mxu0
      %v1523 = vadd.f32 %v1442, %v1522
      %v1524 = vpop.f32.mrf.mxu0
      %1525 = vmatprep.mubr.f32.mxu0 %v1358
      %1526 = vmatmul.mubr.f32.gmra.mxu0 %v1355
      %v1527 = vpop.f32.mrf.mxu0
      %v1528 = vadd.f32 %v1442, %v1527
      %v1529 = vpop.f32.mrf.mxu0
      %1530 = vdwg.mxu0
      %1531 = vmatprep.subr.mxu0 0.0
      %1532 = vmatpush1.msra.mxu0 %v1412
      %1533 = vmatprep.subr.mxu0 0.0
      %1534 = vmatpush1.msra.mxu0 %v1411
      %1535 = vmatprep.subr.mxu0 0.0
      %1536 = vmatpush1.msra.mxu0 %v1410
      %1537 = vmatprep.subr.mxu0 0.0
      %1538 = vmatpush1.msra.mxu0 %v1409
      %1539 = vmatprep.subr.mxu0 0.0
      %1540 = vmatpush1.msra.mxu0 %v1408
      %1541 = vmatprep.subr.mxu0 0.0
      %1542 = vmatpush1.msra.mxu0 %v1407
      %1543 = vmatprep.subr.mxu0 0.0
      %1544 = vmatpush1.msra.mxu0 %v1406
      %1545 = vmatprep.subr.mxu0 0.0
      %1546 = vmatpush1.msra.mxu0 %v1405
      %1547 = vmatprep.subr.mxu0 0.0
      %1548 = vmatpush1.msra.mxu0 %v1404
      %1549 = vmatprep.subr.mxu0 0.0
      %1550 = vmatpush1.msra.mxu0 %v1403
      %1551 = vmatprep.subr.mxu0 0.0
      %1552 = vmatpush1.msra.mxu0 %v1402
      %1553 = vmatprep.subr.mxu0 0.0
      %1554 = vmatpush1.msra.mxu0 %v1401
      %1555 = vmatprep.subr.mxu0 0.0
      %1556 = vmatpush1.msra.mxu0 %v1400
      %1557 = vmatprep.subr.mxu0 0.0
      %1558 = vmatpush1.msra.mxu0 %v1399
      %1559 = vmatprep.subr.mxu0 0.0
      %1560 = vmatpush1.msra.mxu0 %v1398
      %1561 = vmatprep.subr.mxu0 0.0
      %1562 = vmatpush1.msra.mxu0 %v1397
      %1563 = vmatprep.subr.mxu0 0.0
      %1564 = vmatpush2.msra.mxu0 %v1428
      %1565 = vmatprep.subr.mxu0 0.0
      %1566 = vmatpush2.msra.mxu0 %v1427
      %1567 = vmatprep.subr.mxu0 0.0
      %1568 = vmatpush2.msra.mxu0 %v1426
      %1569 = vmatprep.subr.mxu0 0.0
      %1570 = vmatpush2.msra.mxu0 %v1425
      %1571 = vmatprep.subr.mxu0 0.0
      %1572 = vmatpush2.msra.mxu0 %v1424
      %1573 = vmatprep.subr.mxu0 0.0
      %1574 = vmatpush2.msra.mxu0 %v1423
      %1575 = vmatprep.subr.mxu0 0.0
      %1576 = vmatpush2.msra.mxu0 %v1422
      %1577 = vmatprep.subr.mxu0 0.0
      %1578 = vmatpush2.msra.mxu0 %v1421
      %1579 = vmatprep.subr.mxu0 0.0
      %1580 = vmatpush2.msra.mxu0 %v1420
      %1581 = vmatprep.subr.mxu0 0.0
      %1582 = vmatpush2.msra.mxu0 %v1419
      %1583 = vmatprep.subr.mxu0 0.0
      %1584 = vmatpush2.msra.mxu0 %v1418
      %1585 = vmatprep.subr.mxu0 0.0
      %1586 = vmatpush2.msra.mxu0 %v1417
      %1587 = vmatprep.subr.mxu0 0.0
      %1588 = vmatpush2.msra.mxu0 %v1416
      %1589 = vmatprep.subr.mxu0 0.0
      %1590 = vmatpush2.msra.mxu0 %v1415
      %1591 = vmatprep.subr.mxu0 0.0
      %1592 = vmatpush2.msra.mxu0 %v1414
      %1593 = vmatprep.subr.mxu0 0.0
      %1594 = vmatpush2.msra.mxu0 %v1413
      %1595 = vmatprep.mubr.f32.mxu0 %v1362
      %1596 = vmatmul.mubr.f32.gmra.mxu0 %v1359
      %v1597 = vpop.f32.mrf.mxu0
      %v1598 = vadd.f32 %v1518, %v1597
      %v1599 = vpop.f32.mrf.mxu0
      %1600 = vmatprep.mubr.f32.mxu0 %v1363
      %1601 = vmatmul.mubr.f32.gmra.mxu0 %v1360
      %v1602 = vpop.f32.mrf.mxu0
      %v1603 = vadd.f32 %v1523, %v1602
      %v1604 = vpop.f32.mrf.mxu0
      %1605 = vmatprep.mubr.f32.mxu0 %v1364
      %1606 = vmatmul.mubr.f32.gmra.mxu0 %v1361
      %v1607 = vpop.f32.mrf.mxu0
      %v1608 = vadd.f32 %v1528, %v1607
      %v1609 = vpop.f32.mrf.mxu0
      %1610 = vdwg.mxu0
      %1611 = vmatprep.subr.mxu0 0.0
      %1612 = vmatpush1.msra.mxu0 0.0
      %1613 = vmatprep.subr.mxu0 0.0
      %1614 = vmatpush1.msra.mxu0 0.0
      %1615 = vmatprep.subr.mxu0 0.0
      %1616 = vmatpush1.msra.mxu0 0.0
      %1617 = vmatprep.subr.mxu0 0.0
      %1618 = vmatpush1.msra.mxu0 0.0
      %1619 = vmatprep.subr.mxu0 0.0
      %1620 = vmatpush1.msra.mxu0 0.0
      %1621 = vmatprep.subr.mxu0 0.0
      %1622 = vmatpush1.msra.mxu0 0.0
      %1623 = vmatprep.subr.mxu0 0.0
      %1624 = vmatpush1.msra.mxu0 0.0
      %1625 = vmatprep.subr.mxu0 0.0
      %1626 = vmatpush1.msra.mxu0 0.0
      %1627 = vmatprep.subr.mxu0 0.0
      %1628 = vmatpush1.msra.mxu0 %v1436
      %1629 = vmatprep.subr.mxu0 0.0
      %1630 = vmatpush1.msra.mxu0 %v1435
      %1631 = vmatprep.subr.mxu0 0.0
      %1632 = vmatpush1.msra.mxu0 %v1434
      %1633 = vmatprep.subr.mxu0 0.0
      %1634 = vmatpush1.msra.mxu0 %v1433
      %1635 = vmatprep.subr.mxu0 0.0
      %1636 = vmatpush1.msra.mxu0 %v1432
      %1637 = vmatprep.subr.mxu0 0.0
      %1638 = vmatpush1.msra.mxu0 %v1431
      %1639 = vmatprep.subr.mxu0 0.0
      %1640 = vmatpush1.msra.mxu0 %v1430
      %1641 = vmatprep.subr.mxu0 0.0
      %1642 = vmatpush1.msra.mxu0 %v1429
      %1643 = vmatprep.subr.mxu0 0.0
      %1644 = vmatpush2.msra.mxu0 0.0
      %1645 = vmatprep.subr.mxu0 0.0
      %1646 = vmatpush2.msra.mxu0 0.0
      %1647 = vmatprep.subr.mxu0 0.0
      %1648 = vmatpush2.msra.mxu0 0.0
      %1649 = vmatprep.subr.mxu0 0.0
      %1650 = vmatpush2.msra.mxu0 0.0
      %1651 = vmatprep.subr.mxu0 0.0
      %1652 = vmatpush2.msra.mxu0 0.0
      %1653 = vmatprep.subr.mxu0 0.0
      %1654 = vmatpush2.msra.mxu0 0.0
      %1655 = vmatprep.subr.mxu0 0.0
      %1656 = vmatpush2.msra.mxu0 0.0
      %1657 = vmatprep.subr.mxu0 0.0
      %1658 = vmatpush2.msra.mxu0 0.0
      %1659 = vmatprep.subr.mxu0 0.0
      %1660 = vmatpush2.msra.mxu0 0.0
      %1661 = vmatprep.subr.mxu0 0.0
      %1662 = vmatpush2.msra.mxu0 0.0
      %1663 = vmatprep.subr.mxu0 0.0
      %1664 = vmatpush2.msra.mxu0 0.0
      %1665 = vmatprep.subr.mxu0 0.0
      %1666 = vmatpush2.msra.mxu0 0.0
      %1667 = vmatprep.subr.mxu0 0.0
      %1668 = vmatpush2.msra.mxu0 0.0
      %1669 = vmatprep.subr.mxu0 0.0
      %1670 = vmatpush2.msra.mxu0 0.0
      %1671 = vmatprep.subr.mxu0 0.0
      %1672 = vmatpush2.msra.mxu0 0.0
      %1673 = vmatprep.subr.mxu0 0.0
      %1674 = vmatpush2.msra.mxu0 0.0
      %1675 = vmatprep.mubr.f32.mxu0 0.0
      %1676 = vmatmul.mubr.f32.gmra.mxu0 %v1444
      %v1677 = vpop.f32.mrf.mxu0
      %v1678 = vadd.f32 %v1598, %v1677
      %v1679 = vpop.f32.mrf.mxu0
      %1680 = vmatprep.mubr.f32.mxu0 0.0
      %1681 = vmatmul.mubr.f32.gmra.mxu0 %v1446
      %v1682 = vpop.f32.mrf.mxu0
      %v1683 = vadd.f32 %v1603, %v1682
      %v1684 = vpop.f32.mrf.mxu0
      %1685 = vmatprep.mubr.f32.mxu0 0.0
      %1686 = vmatmul.mubr.f32.gmra.mxu0 %v1449
      %v1687 = vpop.f32.mrf.mxu0
      %v1688 = vadd.f32 %v1608, %v1687
      %v1689 = vpop.f32.mrf.mxu0
      %1690 = vdwg.mxu0
      %v1691 = vmax.f32 %v1678, 0.0
      %v1692 = vmax.f32 %v1683, 0.0
      %v1693 = vmax.f32 %v1688, 0.0
      %1694 = vst.msk [vmem:[%s367] sm:$0xff] %vm434, %v1691
      %1695 = vst.msk [vmem:[%s367 + $0x8] sm:$0xff] %vm434, %v1692
      %1696 = vst.msk [vmem:[%s367 + $0x10] sm:$0xff] %vm434, %v1693
      %v1697 = vld [vmem:[%s7] sm:$0xff]
      %v1698 = vld [vmem:[%s7 + $0x8] sm:$0xff]
      %v1699 = vld [vmem:[%s7 + $0x10] sm:$0xff]
      %v1700 = vld [vmem:[%s7 + $0x18] sm:$0xff]
      %v1701 = vld [vmem:[%s7 + $0x20] sm:$0xff]
      %v1702 = vld [vmem:[%s7 + $0x28] sm:$0xff]
      %v1703 = vld [vmem:[%s7 + $0x30] sm:$0xff]
      %v1704 = vld [vmem:[%s7 + $0x38] sm:$0xff]
      %v1705 = vld [vmem:[%s7 + $0x40] sm:$0xff]
      %v1706 = vld [vmem:[%s7 + $0x48] sm:$0xff]
      %v1707 = vld [vmem:[%s7 + $0x50] sm:$0xff]
      %v1708 = vld [vmem:[%s7 + $0x58] sm:$0xff]
      %v1709 = vld [vmem:[%s7 + $0x60] sm:$0xff]
      %v1710 = vld [vmem:[%s7 + $0x68] sm:$0xff]
      %v1711 = vld [vmem:[%s7 + $0x70] sm:$0xff]
      %v1712 = vld [vmem:[%s7 + $0x78] sm:$0xff]
      %v1713 = vld [vmem:[%s8] sm:$0x3]
      %v1715 = vlaneseq
      %v1716 = vshrl.u32 %v1715, 7
      %v1717 = vsub.s32 0, %v1716
      %v1718 = vrot.slane %v1713, %v1717
      %v1719 = vlaneseq
      %v1720 = vshrl.u32 %v1719, 7
      %v1721 = vsub.s32 1, %v1720
      %v1722 = vrot.slane %v1713, %v1721
      %v1726 = vsel %vm434, %v1691, 0
      %v1729 = vsel %vm434, %v1692, 0
      %v1732 = vsel %vm434, %v1693, 0
      %1734 = vmatprep.subr.mxu0 0.0
      %1735 = vmatpush1.msra.mxu0 0.0
      %1736 = vmatprep.subr.mxu0 0.0
      %1737 = vmatpush1.msra.mxu0 0.0
      %1738 = vmatprep.subr.mxu0 0.0
      %1739 = vmatpush1.msra.mxu0 0.0
      %1740 = vmatprep.subr.mxu0 0.0
      %1741 = vmatpush1.msra.mxu0 0.0
      %1742 = vmatprep.subr.mxu0 0.0
      %1743 = vmatpush1.msra.mxu0 0.0
      %1744 = vmatprep.subr.mxu0 0.0
      %1745 = vmatpush1.msra.mxu0 0.0
      %1746 = vmatprep.subr.mxu0 0.0
      %1747 = vmatpush1.msra.mxu0 0.0
      %1748 = vmatprep.subr.mxu0 0.0
      %1749 = vmatpush1.msra.mxu0 0.0
      %1750 = vmatprep.subr.mxu0 %v1712
      %1751 = vmatpush1.msra.mxu0 %v1711
      %1752 = vmatprep.subr.mxu0 %v1710
      %1753 = vmatpush1.msra.mxu0 %v1709
      %1754 = vmatprep.subr.mxu0 %v1708
      %1755 = vmatpush1.msra.mxu0 %v1707
      %1756 = vmatprep.subr.mxu0 %v1706
      %1757 = vmatpush1.msra.mxu0 %v1705
      %1758 = vmatprep.subr.mxu0 %v1704
      %1759 = vmatpush1.msra.mxu0 %v1703
      %1760 = vmatprep.subr.mxu0 %v1702
      %1761 = vmatpush1.msra.mxu0 %v1701
      %1762 = vmatprep.subr.mxu0 %v1700
      %1763 = vmatpush1.msra.mxu0 %v1699
      %1764 = vmatprep.subr.mxu0 %v1698
      %1765 = vmatpush1.msra.mxu0 %v1697
      %1766 = vmatprep.subr.mxu0 0.0
      %1767 = vmatpush2.msra.mxu0 0.0
      %1768 = vmatprep.subr.mxu0 0.0
      %1769 = vmatpush2.msra.mxu0 0.0
      %1770 = vmatprep.subr.mxu0 0.0
      %1771 = vmatpush2.msra.mxu0 0.0
      %1772 = vmatprep.subr.mxu0 0.0
      %1773 = vmatpush2.msra.mxu0 0.0
      %1774 = vmatprep.subr.mxu0 0.0
      %1775 = vmatpush2.msra.mxu0 0.0
      %1776 = vmatprep.subr.mxu0 0.0
      %1777 = vmatpush2.msra.mxu0 0.0
      %1778 = vmatprep.subr.mxu0 0.0
      %1779 = vmatpush2.msra.mxu0 0.0
      %1780 = vmatprep.subr.mxu0 0.0
      %1781 = vmatpush2.msra.mxu0 0.0
      %1782 = vmatprep.subr.mxu0 0.0
      %1783 = vmatpush2.msra.mxu0 0.0
      %1784 = vmatprep.subr.mxu0 0.0
      %1785 = vmatpush2.msra.mxu0 0.0
      %1786 = vmatprep.subr.mxu0 0.0
      %1787 = vmatpush2.msra.mxu0 0.0
      %1788 = vmatprep.subr.mxu0 0.0
      %1789 = vmatpush2.msra.mxu0 0.0
      %1790 = vmatprep.subr.mxu0 0.0
      %1791 = vmatpush2.msra.mxu0 0.0
      %1792 = vmatprep.subr.mxu0 0.0
      %1793 = vmatpush2.msra.mxu0 0.0
      %1794 = vmatprep.subr.mxu0 0.0
      %1795 = vmatpush2.msra.mxu0 0.0
      %1796 = vmatprep.subr.mxu0 0.0
      %1797 = vmatpush2.msra.mxu0 0.0
      %1798 = vmatprep.mubr.f32.mxu0 0.0
      %1799 = vmatmul.mubr.f32.gmra.mxu0 %v1726
      %v1800 = vpop.f32.mrf.mxu0
      %v1801 = vadd.f32 %v1718, %v1800
      %v1802 = vpop.f32.mrf.mxu0
      %v1803 = vadd.f32 %v1722, %v1802
      %1804 = vmatprep.mubr.f32.mxu0 0.0
      %1805 = vmatmul.mubr.f32.gmra.mxu0 %v1729
      %v1806 = vpop.f32.mrf.mxu0
      %v1807 = vadd.f32 %v1718, %v1806
      %v1808 = vpop.f32.mrf.mxu0
      %v1809 = vadd.f32 %v1722, %v1808
      %1810 = vmatprep.mubr.f32.mxu0 0.0
      %1811 = vmatmul.mubr.f32.gmra.mxu0 %v1732
      %v1812 = vpop.f32.mrf.mxu0
      %v1813 = vadd.f32 %v1718, %v1812
      %v1814 = vpop.f32.mrf.mxu0
      %v1815 = vadd.f32 %v1722, %v1814
      %1816 = vdwg.mxu0
      %v1817 = vmax.f32 %v1801, 0.0
      %v1818 = vmax.f32 %v1803, 0.0
      %v1819 = vmax.f32 %v1807, 0.0
      %v1820 = vmax.f32 %v1809, 0.0
      %v1821 = vmax.f32 %v1813, 0.0
      %v1822 = vmax.f32 %v1815, 0.0
      %1823 = vst [vmem:[%s372] sm:$0xff] %v1817
      %1824 = vst [vmem:[%s372 + $0x8] sm:$0xff] %v1818
      %1825 = vst [vmem:[%s372 + $0x10] sm:$0xff] %v1819
      %1826 = vst [vmem:[%s372 + $0x18] sm:$0xff] %v1820
      %1827 = vst [vmem:[%s372 + $0x20] sm:$0xff] %v1821
      %1828 = vst [vmem:[%s372 + $0x28] sm:$0xff] %v1822
      %p1829 = scmp.lt.s32.totalorder %s22, 1
      %s1830 = scalar_select %p1829, %s22, 1
      %s1831 = smul.addr %s1830, 3
      %s1832 = smul.addr %s1831, 8
      %s1833 = scalar_lea.vmem %s9, %s1832
      %p1834 = scmp.lt.s32.totalorder %s22, 1
      %s1835 = scalar_select %p1834, %s22, 1
      %s1836 = smul.addr %s1835, 6
      %s1837 = smul.addr %s1836, 8
      %s1838 = scalar_lea.vmem %s10, %s1837
      // Predicated region
      $region57: #{rpn_forward.3} parent=55 // pred_check
        %p1839 = pneg %p234
      $region58: #{rpn_forward.3} parent=55 // pred_check_branch
        %1841 = sbr.rel (%p1839) target = $region60
      $region59: #{rpn_forward.3} parent=55 // pred_region
        _
      $region60: #{rpn_forward.3} parent=55 // pred_fallthru
        _
      // Predicated region
      $region61: #{rpn_forward.3} parent=55 // pred_check
        %p1842 = pneg %p260
      $region62: #{rpn_forward.3} parent=55 // pred_check_branch
        %1844 = sbr.rel (%p1842) target = $region64
      $region63: #{rpn_forward.3} parent=55 // pred_region
        _
      $region64: #{rpn_forward.3} parent=55 // pred_fallthru
        _
    $region56: #{rpn_forward.3} parent=5 // pred_fallthru
      _
    %p1845 = scmp.le.s32.totalorder 2, %s17
    // Predicated region
    $region65: #{rpn_forward.3} parent=5 // pred_check
      %p1846 = pneg %p1845
    $region66: #{rpn_forward.3} parent=5 // pred_check_branch
      %1848 = sbr.rel (%p1846) target = $region68
    $region67: #{rpn_forward.3} parent=5 // pred_region
      %s1849 = ssub.s32 %s17, 2
      // Predicated region
      $region69: #{rpn_forward.3} parent=67 // pred_check
        %p1850 = pneg %p240
      $region70: #{rpn_forward.3} parent=67 // pred_check_branch
        %1852 = sbr.rel (%p1850) target = $region72
      $region71: #{rpn_forward.3} parent=67 // pred_region
        %p1853 = scmp.lt.s32.totalorder %s23, 1
        %s1854 = scalar_select %p1853, %s23, 1
        %s1855 = smul.addr %s1854, 3
        %s1856 = smul.addr %s1855, 8
        %s1857 = scalar_lea.vmem %s9, %s1856
      $region72: #{rpn_forward.3} parent=67 // pred_fallthru
        _
      // Predicated region
      $region73: #{rpn_forward.3} parent=67 // pred_check
        %p1858 = pneg %p266
      $region74: #{rpn_forward.3} parent=67 // pred_check_branch
        %1860 = sbr.rel (%p1858) target = $region76
      $region75: #{rpn_forward.3} parent=67 // pred_region
        %p1861 = scmp.lt.s32.totalorder %s23, 1
        %s1862 = scalar_select %p1861, %s23, 1
        %s1863 = smul.addr %s1862, 6
        %s1864 = smul.addr %s1863, 8
        %s1865 = scalar_lea.vmem %s10, %s1864
      $region76: #{rpn_forward.3} parent=67 // pred_fallthru
        _
    $region68: #{rpn_forward.3} parent=5 // pred_fallthru
      _
  $region6: #{rpn_forward.3} parent=0 // loop_footer
    %s21 = sadd.s32 1, %s17
  $region7: #{rpn_forward.3} parent=0 // loop_footer_branch
    %16 = sbr.rel target = $region3
  $region8: #{rpn_forward.3} parent=0 // loop_exit
    _

</llo_original>
